<compile_context>
chip_gen: v7x
topology: tpu7x:2x2x1
jax: 0.10.0
libtpu: 0.0.40
codegen_flags: <defaults>
</compile_context>

<pallas_src>
import math
from functools import partial

import jax
import jax.numpy as jnp
from jax.experimental import pallas as pl
from jax.experimental.pallas import tpu as pltpu

# ----------------------------- config ---------------------------------------
B = 2          # batch
S = 8          # text sequence length
D = 64         # hidden_dim
H = 2          # attention heads
DH = D // H    # head dim
I = 128        # FFN intermediate
V = 128        # vocab size
L = 2          # encoder layers
MAX_POS = 64
LN_EPS = 1e-12
GELU_C = 0.7978845608028654      # sqrt(2/pi)


# --------------------------- kernel helpers ----------------------------------
def _gelu(y):
    # TODO(synk): HF BERT "gelu" is erf-based; tanh approximation differs by ~1e-3.
    return 0.5 * y * (1.0 + jnp.tanh(GELU_C * (y + 0.044715 * y * y * y)))


def _layernorm(y, g, b):
    mu = jnp.mean(y, axis=-1, keepdims=True)
    var = jnp.mean((y - mu) * (y - mu), axis=-1, keepdims=True)
    return (y - mu) * jax.lax.rsqrt(var + LN_EPS) * g + b


# --------------------------- fused forward kernel ----------------------------
def _fused_forward_kernel(
        # per-batch inputs
        img_ref, tok_ref, mask_ref, lab_ref,
        # weights (constant across the grid)
        vis_w_ref, vis_b_ref, pos_ref, type0_ref, eg_ref, eb_ref,
        qkvw_ref, qkvb_ref, ow_ref, ob_ref, l1g_ref, l1b_ref,
        f1w_ref, f1b_ref, f2w_ref, f2b_ref, l2g_ref, l2b_ref,
        mlmw_ref, mlmb_ref, mlg_ref, mlb_ref, wemb_ref, decb_ref,
        # outputs
        logits_ref, loss_ref,
        *, t_pad):
    f32 = jnp.float32
    scale = 1.0 / math.sqrt(DH)

    def matmul(a, w, bias):
        return jnp.dot(a, w, preferred_element_type=f32) + bias

    # ---- embeddings: visual token + word + position + type, LayerNorm -------
    vis = matmul(img_ref[0].astype(f32), vis_w_ref[...], vis_b_ref[...])   # (1, D)
    tok = tok_ref[0].astype(f32)                                           # (t_pad, D)
    row = jax.lax.broadcasted_iota(jnp.int32, (t_pad, D), 0)
    combined = jnp.where(row == 0, vis, tok)        # prepend visual token at row 0
    emb = combined + pos_ref[...] + type0_ref[...]
    x = _layernorm(emb, eg_ref[...], eb_ref[...])                          # (t_pad, D)

    add_mask = mask_ref[0]                                                 # (1, t_pad)

    # ---- BERT encoder layers -------------------------------------------------
    for l in range(L):
        attn = ob_ref[l]                       # (1, D) output-proj bias, accumulated per head
        for h in range(H):
            def _proj(c, _l=l, _h=h):
                idx = (_l * 3 + c) * H + _h
                return jnp.dot(x, qkvw_ref[idx],
                               preferred_element_type=f32) + qkvb_ref[idx]
            q = _proj(0)                                                    # (t_pad, DH)
            k = _proj(1)
            v = _proj(2)
            s = jax.lax.dot_general(q, k, (((1,), (1,)), ((), ())),
                                    preferred_element_type=f32) * scale     # (t_pad, t_pad)
            s = s + add_mask
            s = s - jnp.max(s, axis=-1, keepdims=True)
            p = jnp.exp(s)
            p = p * pl.reciprocal(jnp.sum(p, axis=-1, keepdims=True), approx=True)
            ctx_h = jnp.dot(p, v, preferred_element_type=f32)               # (t_pad, DH)
            attn = attn + jnp.dot(ctx_h, ow_ref[l * H + h],
                                  preferred_element_type=f32)               # (t_pad, D)
        x = _layernorm(attn + x, l1g_ref[l], l1b_ref[l])                    # add + LN
        ff = _gelu(matmul(x, f1w_ref[l], f1b_ref[l]))                       # (t_pad, I)
        ff = matmul(ff, f2w_ref[l], f2b_ref[l])                             # (t_pad, D)
        x = _layernorm(ff + x, l2g_ref[l], l2b_ref[l])                      # add + LN

    # ---- MLM head: dense+GELU, LN, decoder tied to word embeddings ----------
    hid = _gelu(matmul(x, mlmw_ref[...], mlmb_ref[...]))
    hid = _layernorm(hid, mlg_ref[...], mlb_ref[...])
    logits = jax.lax.dot_general(hid, wemb_ref[...], (((1,), (1,)), ((), ())),
                                 preferred_element_type=f32) + decb_ref[...]  # (t_pad, V)
    logits_ref[0] = logits.astype(logits_ref.dtype)

    # ---- cross entropy partial sums (ignore_index = -100) -------------------
    lab = lab_ref[0]                                                        # (t_pad, 1) int32
    m = jnp.max(logits, axis=-1, keepdims=True)
    lse = jnp.log(jnp.sum(jnp.exp(logits - m), axis=-1, keepdims=True)) + m
    col = jax.lax.broadcasted_iota(jnp.int32, logits.shape, 1)
    tgt = jnp.sum(jnp.where(col == lab, logits, 0.0), axis=-1, keepdims=True)
    valid = (lab != -100).astype(f32)
    nll_sum = jnp.sum((lse - tgt) * valid, keepdims=True)                   # (1, 1)
    cnt = jnp.sum(valid, keepdims=True)                                     # (1, 1)
    lane = jax.lax.broadcasted_iota(jnp.int32, (1, 128), 1)
    loss_ref[0] = jnp.where(lane == 0, nll_sum,
                            jnp.where(lane == 1, cnt, 0.0))                 # lane-dense row


# --------------------------- params ------------------------------------------
def init_params(key):
    def nrm(k, shape, scale=0.02):
        return scale * jax.random.normal(k, shape, dtype=jnp.float32)

    keys = iter(jax.random.split(key, 16))
    zeros, ones = jnp.zeros, jnp.ones
    p = {
        "vis_w": nrm(next(keys), (D, D)), "vis_b": zeros((1, D), jnp.float32),
        "word_emb": nrm(next(keys), (V, D)),
        "pos_emb": nrm(next(keys), (MAX_POS, D)),
        "type0": nrm(next(keys), (1, D)),
        "emb_ln_g": ones((1, D), jnp.float32), "emb_ln_b": zeros((1, D), jnp.float32),
        # Q/K/V packed: (L*3*H, D, DH); output proj per head: (L*H, DH, D)
        "qkv_w": nrm(next(keys), (L * 3 * H, D, DH)),
        "qkv_b": zeros((L * 3 * H, 1, DH), jnp.float32),
        "o_w": nrm(next(keys), (L * H, DH, D)),
        "o_b": zeros((L, 1, D), jnp.float32),
        "ln1_g": ones((L, 1, D), jnp.float32), "ln1_b": zeros((L, 1, D), jnp.float32),
        "ff1_w": nrm(next(keys), (L, D, I)), "ff1_b": zeros((L, 1, I), jnp.float32),
        "ff2_w": nrm(next(keys), (L, I, D)), "ff2_b": zeros((L, 1, D), jnp.float32),
        "ln2_g": ones((L, 1, D), jnp.float32), "ln2_b": zeros((L, 1, D), jnp.float32),
        "mlm_w": nrm(next(keys), (D, D)), "mlm_b": zeros((1, D), jnp.float32),
        "mlm_ln_g": ones((1, D), jnp.float32), "mlm_ln_b": zeros((1, D), jnp.float32),
        "dec_b": zeros((1, V), jnp.float32),
    }
    return p


# --------------------------- wrapper ------------------------------------------
def forward(params, image_embeds, input_ids, attention_mask, labels):
    Bx, Dx = image_embeds.shape
    Sx = input_ids.shape[1]
    T = Sx + 1
    t_pad = max(8, ((T + 7) // 8) * 8)          # pad rows to a multiple of 8 sublanes
    assert t_pad <= MAX_POS

    # word-embedding gather (XLA glue); the table itself is passed to the kernel
    # untransposed and reused for the tied decoder.
    tok = jnp.take(params["word_emb"], input_ids, axis=0)                    # (B, S, D)
    tok_pad = jnp.zeros((Bx, t_pad, Dx), jnp.float32).at[:, 1:T, :].set(tok)

    # extended attention mask (1 for the visual token), additive, pads masked out
    expanded = jnp.concatenate(
        [jnp.ones((Bx, 1), attention_mask.dtype), attention_mask], axis=1).astype(jnp.float32)
    mask_pad = jnp.zeros((Bx, t_pad), jnp.float32).at[:, :T].set(expanded)
    add_mask = ((1.0 - mask_pad) * -1e9).reshape(Bx, 1, t_pad)

    # shifted labels: -100 for the visual token, -100 for padded rows
    shifted = jnp.concatenate(
        [jnp.full((Bx, 1), -100, jnp.int32), labels.astype(jnp.int32)], axis=1)
    lab_pad = jnp.full((Bx, t_pad, 1), -100, jnp.int32).at[:, :T, 0].set(shifted)

    img3 = image_embeds.reshape(Bx, 1, Dx)
    pos_pad = params["pos_emb"][:t_pad]                                      # (t_pad, D)

    weights = [
        params["vis_w"], params["vis_b"], pos_pad, params["type0"],
        params["emb_ln_g"], params["emb_ln_b"],
        params["qkv_w"], params["qkv_b"], params["o_w"], params["o_b"],
        params["ln1_g"], params["ln1_b"],
        params["ff1_w"], params["ff1_b"], params["ff2_w"], params["ff2_b"],
        params["ln2_g"], params["ln2_b"],
        params["mlm_w"], params["mlm_b"], params["mlm_ln_g"], params["mlm_ln_b"],
        params["word_emb"], params["dec_b"],
    ]

    def full_spec(arr):
        return pl.BlockSpec(arr.shape, lambda b, _nd=arr.ndim: (0,) * _nd)

    in_specs = [
        pl.BlockSpec((1, 1, Dx), lambda b: (b, 0, 0)),         # image embed
        pl.BlockSpec((1, t_pad, Dx), lambda b: (b, 0, 0)),     # padded token embeddings
        pl.BlockSpec((1, 1, t_pad), lambda b: (b, 0, 0)),      # additive attention mask
        pl.BlockSpec((1, t_pad, 1), lambda b: (b, 0, 0)),      # labels column
    ] + [full_spec(w) for w in weights]

    out_specs = [
        pl.BlockSpec((1, t_pad, V), lambda b: (b, 0, 0)),      # logits (lane-dense V=128)
        pl.BlockSpec((1, 1, 128), lambda b: (b, 0, 0)),        # (nll_sum, valid_count) row
    ]

    logits_pad, loss_parts = pl.pallas_call(
        partial(_fused_forward_kernel, t_pad=t_pad),
        grid=(Bx,),
        in_specs=in_specs,
        out_specs=out_specs,
        out_shape=[
            jax.ShapeDtypeStruct((Bx, t_pad, V), jnp.float32),
            jax.ShapeDtypeStruct((Bx, 1, 128), jnp.float32),
        ],
        compiler_params=pltpu.CompilerParams(
            dimension_semantics=("parallel",)),    # shards batch across v7x's 2 TCs
    )(img3, tok_pad, add_mask, lab_pad, *weights)

    nll_total = jnp.sum(loss_parts[:, 0, 0])
    cnt_total = jnp.sum(loss_parts[:, 0, 1])
    loss = nll_total / jnp.maximum(cnt_total, 1.0)
    logits = logits_pad[:, :T, :]
    return loss, logits


# ------------------------------- main ----------------------------------------
if __name__ == "__main__":
    key = jax.random.PRNGKey(0)
    kp, ki, kid, klab = jax.random.split(key, 4)

    params = init_params(kp)
    image_embeds = jax.random.normal(ki, (B, D), dtype=jnp.float32)
    input_ids = jax.random.randint(kid, (B, S), 0, V, dtype=jnp.int32)
    attention_mask = jnp.ones((B, S), jnp.int32).at[1, S - 2:].set(0)  # pad last 2 of batch 1
    labels = jax.random.randint(klab, (B, S), 0, V, dtype=jnp.int32)
    labels = labels.at[0, 0].set(-100)                                 # an ignored label
    labels = jnp.where(attention_mask == 0, -100, labels)              # ignore padded positions

    loss, logits = jax.jit(forward)(params, image_embeds, input_ids, attention_mask, labels)
    jax.block_until_ready((loss, logits))
    assert logits.shape == (B, S + 1, V)
    assert jnp.isfinite(loss)
    print("KERNEL_OK")
</pallas_src>

<mosaic_0001>
module attributes {stable_mosaic.version = 11 : i64} {
  func.func @_fused_forward_kernel(%arg0: i32, %arg1: memref<1x1x64xf32, #tpu.memory_space<vmem>>, %arg2: memref<1x16x64xf32, #tpu.memory_space<vmem>>, %arg3: memref<1x1x16xf32, #tpu.memory_space<vmem>>, %arg4: memref<1x16x1xi32, #tpu.memory_space<vmem>>, %arg5: memref<64x64xf32, #tpu.memory_space<vmem>>, %arg6: memref<1x64xf32, #tpu.memory_space<vmem>>, %arg7: memref<16x64xf32, #tpu.memory_space<vmem>>, %arg8: memref<1x64xf32, #tpu.memory_space<vmem>>, %arg9: memref<1x64xf32, #tpu.memory_space<vmem>>, %arg10: memref<1x64xf32, #tpu.memory_space<vmem>>, %arg11: memref<12x64x32xf32, #tpu.memory_space<vmem>>, %arg12: memref<12x1x32xf32, #tpu.memory_space<vmem>>, %arg13: memref<4x32x64xf32, #tpu.memory_space<vmem>>, %arg14: memref<2x1x64xf32, #tpu.memory_space<vmem>>, %arg15: memref<2x1x64xf32, #tpu.memory_space<vmem>>, %arg16: memref<2x1x64xf32, #tpu.memory_space<vmem>>, %arg17: memref<2x64x128xf32, #tpu.memory_space<vmem>>, %arg18: memref<2x1x128xf32, #tpu.memory_space<vmem>>, %arg19: memref<2x128x64xf32, #tpu.memory_space<vmem>>, %arg20: memref<2x1x64xf32, #tpu.memory_space<vmem>>, %arg21: memref<2x1x64xf32, #tpu.memory_space<vmem>>, %arg22: memref<2x1x64xf32, #tpu.memory_space<vmem>>, %arg23: memref<64x64xf32, #tpu.memory_space<vmem>>, %arg24: memref<1x64xf32, #tpu.memory_space<vmem>>, %arg25: memref<1x64xf32, #tpu.memory_space<vmem>>, %arg26: memref<1x64xf32, #tpu.memory_space<vmem>>, %arg27: memref<128x64xf32, #tpu.memory_space<vmem>>, %arg28: memref<1x128xf32, #tpu.memory_space<vmem>>, %arg29: memref<1x16x128xf32, #tpu.memory_space<vmem>>, %arg30: memref<1x1x128xf32, #tpu.memory_space<vmem>>) attributes {dimension_semantics = [#tpu.dimension_semantics<parallel>], iteration_bounds = array<i64: 2>, scalar_prefetch = 0 : i64, scratch_operands = 0 : i64, tpu.core_type = #tpu.core_type<tc>, window_params = [{transform_indices = @transform_0, window_bounds = array<i64: 1, 1, 64>}, {transform_indices = @transform_1, window_bounds = array<i64: 1, 16, 64>}, {transform_indices = @transform_2, window_bounds = array<i64: 1, 1, 16>}, {transform_indices = @transform_3, window_bounds = array<i64: 1, 16, 1>}, {pipeline_mode = #tpu.pipeline_mode<synchronous>, transform_indices = @transform_4, window_bounds = array<i64: 64, 64>}, {pipeline_mode = #tpu.pipeline_mode<synchronous>, transform_indices = @transform_5, window_bounds = array<i64: 1, 64>}, {pipeline_mode = #tpu.pipeline_mode<synchronous>, transform_indices = @transform_6, window_bounds = array<i64: 16, 64>}, {pipeline_mode = #tpu.pipeline_mode<synchronous>, transform_indices = @transform_7, window_bounds = array<i64: 1, 64>}, {pipeline_mode = #tpu.pipeline_mode<synchronous>, transform_indices = @transform_8, window_bounds = array<i64: 1, 64>}, {pipeline_mode = #tpu.pipeline_mode<synchronous>, transform_indices = @transform_9, window_bounds = array<i64: 1, 64>}, {pipeline_mode = #tpu.pipeline_mode<synchronous>, transform_indices = @transform_10, window_bounds = array<i64: 12, 64, 32>}, {pipeline_mode = #tpu.pipeline_mode<synchronous>, transform_indices = @transform_11, window_bounds = array<i64: 12, 1, 32>}, {pipeline_mode = #tpu.pipeline_mode<synchronous>, transform_indices = @transform_12, window_bounds = array<i64: 4, 32, 64>}, {pipeline_mode = #tpu.pipeline_mode<synchronous>, transform_indices = @transform_13, window_bounds = array<i64: 2, 1, 64>}, {pipeline_mode = #tpu.pipeline_mode<synchronous>, transform_indices = @transform_14, window_bounds = array<i64: 2, 1, 64>}, {pipeline_mode = #tpu.pipeline_mode<synchronous>, transform_indices = @transform_15, window_bounds = array<i64: 2, 1, 64>}, {pipeline_mode = #tpu.pipeline_mode<synchronous>, transform_indices = @transform_16, window_bounds = array<i64: 2, 64, 128>}, {pipeline_mode = #tpu.pipeline_mode<synchronous>, transform_indices = @transform_17, window_bounds = array<i64: 2, 1, 128>}, {pipeline_mode = #tpu.pipeline_mode<synchronous>, transform_indices = @transform_18, window_bounds = array<i64: 2, 128, 64>}, {pipeline_mode = #tpu.pipeline_mode<synchronous>, transform_indices = @transform_19, window_bounds = array<i64: 2, 1, 64>}, {pipeline_mode = #tpu.pipeline_mode<synchronous>, transform_indices = @transform_20, window_bounds = array<i64: 2, 1, 64>}, {pipeline_mode = #tpu.pipeline_mode<synchronous>, transform_indices = @transform_21, window_bounds = array<i64: 2, 1, 64>}, {pipeline_mode = #tpu.pipeline_mode<synchronous>, transform_indices = @transform_22, window_bounds = array<i64: 64, 64>}, {pipeline_mode = #tpu.pipeline_mode<synchronous>, transform_indices = @transform_23, window_bounds = array<i64: 1, 64>}, {pipeline_mode = #tpu.pipeline_mode<synchronous>, transform_indices = @transform_24, window_bounds = array<i64: 1, 64>}, {pipeline_mode = #tpu.pipeline_mode<synchronous>, transform_indices = @transform_25, window_bounds = array<i64: 1, 64>}, {pipeline_mode = #tpu.pipeline_mode<synchronous>, transform_indices = @transform_26, window_bounds = array<i64: 128, 64>}, {pipeline_mode = #tpu.pipeline_mode<synchronous>, transform_indices = @transform_27, window_bounds = array<i64: 1, 128>}, {transform_indices = @transform_28, window_bounds = array<i64: 1, 16, 128>}, {transform_indices = @transform_29, window_bounds = array<i64: 1, 1, 128>}]} {
    %c0 = arith.constant 0 : index
    %c0_0 = arith.constant 0 : index
    %c0_1 = arith.constant 0 : index
    %0 = vector.load %arg1[%c0, %c0_0, %c0_1] : memref<1x1x64xf32, #tpu.memory_space<vmem>>, vector<1x1x64xf32>
    %1 = vector.shape_cast %0 : vector<1x1x64xf32> to vector<1x64xf32>
    %c0_2 = arith.constant 0 : index
    %c0_3 = arith.constant 0 : index
    %2 = vector.load %arg5[%c0_2, %c0_3] : memref<64x64xf32, #tpu.memory_space<vmem>>, vector<64x64xf32>
    %c0_4 = arith.constant 0 : index
    %c0_5 = arith.constant 0 : index
    %3 = vector.load %arg6[%c0_4, %c0_5] : memref<1x64xf32, #tpu.memory_space<vmem>>, vector<1x64xf32>
    %cst = arith.constant dense<0.000000e+00> : vector<1x64xf32>
    %4 = tpu.matmul %1, %2, %cst {dimension_numbers = #tpu.dot_dimension_numbers<[1], [0], [0], [1], [0, 0, 1, 1], [], []>} : vector<1x64xf32>, vector<64x64xf32>, vector<1x64xf32> -> vector<1x64xf32>
    %5 = arith.addf %4, %3 : vector<1x64xf32>
    %c0_6 = arith.constant 0 : index
    %c0_7 = arith.constant 0 : index
    %c0_8 = arith.constant 0 : index
    %6 = vector.load %arg2[%c0_6, %c0_7, %c0_8] : memref<1x16x64xf32, #tpu.memory_space<vmem>>, vector<1x16x64xf32>
    %7 = vector.shape_cast %6 : vector<1x16x64xf32> to vector<16x64xf32>
    %8 = tpu.iota {dimensions = array<i32: 0>} : vector<16x64xi32>
    %c0_i32 = arith.constant 0 : i32
    %9 = vector.broadcast %c0_i32 : i32 to vector<16x64xi32>
    %10 = arith.cmpi eq, %8, %9 : vector<16x64xi32>
    %11 = vector.shape_cast %5 : vector<1x64xf32> to vector<1x64xf32>
    %12 = vector.broadcast %11 : vector<1x64xf32> to vector<16x64xf32>
    %13 = arith.select %10, %12, %7 : vector<16x64xi1>, vector<16x64xf32>
    %c0_9 = arith.constant 0 : index
    %c0_10 = arith.constant 0 : index
    %14 = vector.load %arg7[%c0_9, %c0_10] : memref<16x64xf32, #tpu.memory_space<vmem>>, vector<16x64xf32>
    %15 = arith.addf %13, %14 : vector<16x64xf32>
    %c0_11 = arith.constant 0 : index
    %c0_12 = arith.constant 0 : index
    %16 = vector.load %arg8[%c0_11, %c0_12] : memref<1x64xf32, #tpu.memory_space<vmem>>, vector<1x64xf32>
    %17 = vector.broadcast %16 : vector<1x64xf32> to vector<16x64xf32>
    %18 = arith.addf %15, %17 : vector<16x64xf32>
    %c0_13 = arith.constant 0 : index
    %c0_14 = arith.constant 0 : index
    %19 = vector.load %arg9[%c0_13, %c0_14] : memref<1x64xf32, #tpu.memory_space<vmem>>, vector<1x64xf32>
    %c0_15 = arith.constant 0 : index
    %c0_16 = arith.constant 0 : index
    %20 = vector.load %arg10[%c0_15, %c0_16] : memref<1x64xf32, #tpu.memory_space<vmem>>, vector<1x64xf32>
    %cst_17 = arith.constant dense<0.000000e+00> : vector<16xf32>
    %21 = vector.multi_reduction <add>, %18, %cst_17 [1] : vector<16x64xf32> to vector<16xf32>
    %22 = vector.shape_cast %21 : vector<16xf32> to vector<16x1xf32>
    %cst_18 = arith.constant 6.400000e+01 : f32
    %23 = vector.broadcast %cst_18 : f32 to vector<16x1xf32>
    %24 = arith.divf %22, %23 : vector<16x1xf32>
    %25 = vector.broadcast %24 : vector<16x1xf32> to vector<16x64xf32>
    %26 = arith.subf %18, %25 : vector<16x64xf32>
    %27 = vector.broadcast %24 : vector<16x1xf32> to vector<16x64xf32>
    %28 = arith.subf %18, %27 : vector<16x64xf32>
    %29 = arith.mulf %26, %28 : vector<16x64xf32>
    %cst_19 = arith.constant dense<0.000000e+00> : vector<16xf32>
    %30 = vector.multi_reduction <add>, %29, %cst_19 [1] : vector<16x64xf32> to vector<16xf32>
    %31 = vector.shape_cast %30 : vector<16xf32> to vector<16x1xf32>
    %cst_20 = arith.constant 6.400000e+01 : f32
    %32 = vector.broadcast %cst_20 : f32 to vector<16x1xf32>
    %33 = arith.divf %31, %32 : vector<16x1xf32>
    %34 = vector.broadcast %24 : vector<16x1xf32> to vector<16x64xf32>
    %35 = arith.subf %18, %34 : vector<16x64xf32>
    %cst_21 = arith.constant 9.99999996E-13 : f32
    %36 = vector.broadcast %cst_21 : f32 to vector<16x1xf32>
    %37 = arith.addf %33, %36 : vector<16x1xf32>
    %38 = math.rsqrt %37 : vector<16x1xf32>
    %39 = vector.broadcast %38 : vector<16x1xf32> to vector<16x64xf32>
    %40 = arith.mulf %35, %39 : vector<16x64xf32>
    %41 = vector.broadcast %19 : vector<1x64xf32> to vector<16x64xf32>
    %42 = arith.mulf %40, %41 : vector<16x64xf32>
    %43 = vector.broadcast %20 : vector<1x64xf32> to vector<16x64xf32>
    %44 = arith.addf %42, %43 : vector<16x64xf32>
    %c0_22 = arith.constant 0 : index
    %c0_23 = arith.constant 0 : index
    %c0_24 = arith.constant 0 : index
    %45 = vector.load %arg3[%c0_22, %c0_23, %c0_24] : memref<1x1x16xf32, #tpu.memory_space<vmem>>, vector<1x1x16xf32>
    %46 = vector.shape_cast %45 : vector<1x1x16xf32> to vector<1x16xf32>
    %c0_25 = arith.constant 0 : index
    %c0_26 = arith.constant 0 : index
    %c0_27 = arith.constant 0 : index
    %47 = vector.load %arg14[%c0_25, %c0_26, %c0_27] : memref<2x1x64xf32, #tpu.memory_space<vmem>>, vector<1x1x64xf32>
    %48 = vector.shape_cast %47 : vector<1x1x64xf32> to vector<1x64xf32>
    %c0_28 = arith.constant 0 : index
    %c0_29 = arith.constant 0 : index
    %c0_30 = arith.constant 0 : index
    %49 = vector.load %arg11[%c0_28, %c0_29, %c0_30] : memref<12x64x32xf32, #tpu.memory_space<vmem>>, vector<1x64x32xf32>
    %50 = vector.shape_cast %49 : vector<1x64x32xf32> to vector<64x32xf32>
    %cst_31 = arith.constant dense<0.000000e+00> : vector<16x32xf32>
    %51 = tpu.matmul %44, %50, %cst_31 {dimension_numbers = #tpu.dot_dimension_numbers<[1], [0], [0], [1], [0, 0, 1, 1], [], []>} : vector<16x64xf32>, vector<64x32xf32>, vector<16x32xf32> -> vector<16x32xf32>
    %c0_32 = arith.constant 0 : index
    %c0_33 = arith.constant 0 : index
    %c0_34 = arith.constant 0 : index
    %52 = vector.load %arg12[%c0_32, %c0_33, %c0_34] : memref<12x1x32xf32, #tpu.memory_space<vmem>>, vector<1x1x32xf32>
    %53 = vector.shape_cast %52 : vector<1x1x32xf32> to vector<1x32xf32>
    %54 = vector.broadcast %53 : vector<1x32xf32> to vector<16x32xf32>
    %55 = arith.addf %51, %54 : vector<16x32xf32>
    %c2 = arith.constant 2 : index
    %c0_35 = arith.constant 0 : index
    %c0_36 = arith.constant 0 : index
    %56 = vector.load %arg11[%c2, %c0_35, %c0_36] : memref<12x64x32xf32, #tpu.memory_space<vmem>>, vector<1x64x32xf32>
    %57 = vector.shape_cast %56 : vector<1x64x32xf32> to vector<64x32xf32>
    %cst_37 = arith.constant dense<0.000000e+00> : vector<16x32xf32>
    %58 = tpu.matmul %44, %57, %cst_37 {dimension_numbers = #tpu.dot_dimension_numbers<[1], [0], [0], [1], [0, 0, 1, 1], [], []>} : vector<16x64xf32>, vector<64x32xf32>, vector<16x32xf32> -> vector<16x32xf32>
    %c2_38 = arith.constant 2 : index
    %c0_39 = arith.constant 0 : index
    %c0_40 = arith.constant 0 : index
    %59 = vector.load %arg12[%c2_38, %c0_39, %c0_40] : memref<12x1x32xf32, #tpu.memory_space<vmem>>, vector<1x1x32xf32>
    %60 = vector.shape_cast %59 : vector<1x1x32xf32> to vector<1x32xf32>
    %61 = vector.broadcast %60 : vector<1x32xf32> to vector<16x32xf32>
    %62 = arith.addf %58, %61 : vector<16x32xf32>
    %c4 = arith.constant 4 : index
    %c0_41 = arith.constant 0 : index
    %c0_42 = arith.constant 0 : index
    %63 = vector.load %arg11[%c4, %c0_41, %c0_42] : memref<12x64x32xf32, #tpu.memory_space<vmem>>, vector<1x64x32xf32>
    %64 = vector.shape_cast %63 : vector<1x64x32xf32> to vector<64x32xf32>
    %cst_43 = arith.constant dense<0.000000e+00> : vector<16x32xf32>
    %65 = tpu.matmul %44, %64, %cst_43 {dimension_numbers = #tpu.dot_dimension_numbers<[1], [0], [0], [1], [0, 0, 1, 1], [], []>} : vector<16x64xf32>, vector<64x32xf32>, vector<16x32xf32> -> vector<16x32xf32>
    %c4_44 = arith.constant 4 : index
    %c0_45 = arith.constant 0 : index
    %c0_46 = arith.constant 0 : index
    %66 = vector.load %arg12[%c4_44, %c0_45, %c0_46] : memref<12x1x32xf32, #tpu.memory_space<vmem>>, vector<1x1x32xf32>
    %67 = vector.shape_cast %66 : vector<1x1x32xf32> to vector<1x32xf32>
    %68 = vector.broadcast %67 : vector<1x32xf32> to vector<16x32xf32>
    %69 = arith.addf %65, %68 : vector<16x32xf32>
    %cst_47 = arith.constant dense<0.000000e+00> : vector<16x16xf32>
    %70 = tpu.matmul %55, %62, %cst_47 {dimension_numbers = #tpu.dot_dimension_numbers<[1], [1], [0], [0], [0, 0, 1, 0], [], []>} : vector<16x32xf32>, vector<16x32xf32>, vector<16x16xf32> -> vector<16x16xf32>
    %cst_48 = arith.constant 0.176776692 : f32
    %71 = vector.broadcast %cst_48 : f32 to vector<16x16xf32>
    %72 = arith.mulf %70, %71 : vector<16x16xf32>
    %73 = vector.broadcast %46 : vector<1x16xf32> to vector<16x16xf32>
    %74 = arith.addf %72, %73 : vector<16x16xf32>
    %cst_49 = arith.constant dense<0xFF800000> : vector<16xf32>
    %75 = vector.multi_reduction <maximumf>, %74, %cst_49 [1] : vector<16x16xf32> to vector<16xf32>
    %76 = vector.shape_cast %75 : vector<16xf32> to vector<16x1xf32>
    %77 = vector.broadcast %76 : vector<16x1xf32> to vector<16x16xf32>
    %78 = arith.subf %74, %77 : vector<16x16xf32>
    %79 = math.exp %78 : vector<16x16xf32>
    %cst_50 = arith.constant dense<0.000000e+00> : vector<16xf32>
    %80 = vector.multi_reduction <add>, %79, %cst_50 [1] : vector<16x16xf32> to vector<16xf32>
    %81 = vector.shape_cast %80 : vector<16xf32> to vector<16x1xf32>
    %82 = tpu.reciprocal %81 {approx = true} : vector<16x1xf32> -> vector<16x1xf32>
    %83 = vector.broadcast %82 : vector<16x1xf32> to vector<16x16xf32>
    %84 = arith.mulf %79, %83 : vector<16x16xf32>
    %cst_51 = arith.constant dense<0.000000e+00> : vector<16x32xf32>
    %85 = tpu.matmul %84, %69, %cst_51 {dimension_numbers = #tpu.dot_dimension_numbers<[1], [0], [0], [1], [0, 0, 1, 1], [], []>} : vector<16x16xf32>, vector<16x32xf32>, vector<16x32xf32> -> vector<16x32xf32>
    %c0_52 = arith.constant 0 : index
    %c0_53 = arith.constant 0 : index
    %c0_54 = arith.constant 0 : index
    %86 = vector.load %arg13[%c0_52, %c0_53, %c0_54] : memref<4x32x64xf32, #tpu.memory_space<vmem>>, vector<1x32x64xf32>
    %87 = vector.shape_cast %86 : vector<1x32x64xf32> to vector<32x64xf32>
    %cst_55 = arith.constant dense<0.000000e+00> : vector<16x64xf32>
    %88 = tpu.matmul %85, %87, %cst_55 {dimension_numbers = #tpu.dot_dimension_numbers<[1], [0], [0], [1], [0, 0, 1, 1], [], []>} : vector<16x32xf32>, vector<32x64xf32>, vector<16x64xf32> -> vector<16x64xf32>
    %89 = vector.broadcast %48 : vector<1x64xf32> to vector<16x64xf32>
    %90 = arith.addf %89, %88 : vector<16x64xf32>
    %c1 = arith.constant 1 : index
    %c0_56 = arith.constant 0 : index
    %c0_57 = arith.constant 0 : index
    %91 = vector.load %arg11[%c1, %c0_56, %c0_57] : memref<12x64x32xf32, #tpu.memory_space<vmem>>, vector<1x64x32xf32>
    %92 = vector.shape_cast %91 : vector<1x64x32xf32> to vector<64x32xf32>
    %cst_58 = arith.constant dense<0.000000e+00> : vector<16x32xf32>
    %93 = tpu.matmul %44, %92, %cst_58 {dimension_numbers = #tpu.dot_dimension_numbers<[1], [0], [0], [1], [0, 0, 1, 1], [], []>} : vector<16x64xf32>, vector<64x32xf32>, vector<16x32xf32> -> vector<16x32xf32>
    %c1_59 = arith.constant 1 : index
    %c0_60 = arith.constant 0 : index
    %c0_61 = arith.constant 0 : index
    %94 = vector.load %arg12[%c1_59, %c0_60, %c0_61] : memref<12x1x32xf32, #tpu.memory_space<vmem>>, vector<1x1x32xf32>
    %95 = vector.shape_cast %94 : vector<1x1x32xf32> to vector<1x32xf32>
    %96 = vector.broadcast %95 : vector<1x32xf32> to vector<16x32xf32>
    %97 = arith.addf %93, %96 : vector<16x32xf32>
    %c3 = arith.constant 3 : index
    %c0_62 = arith.constant 0 : index
    %c0_63 = arith.constant 0 : index
    %98 = vector.load %arg11[%c3, %c0_62, %c0_63] : memref<12x64x32xf32, #tpu.memory_space<vmem>>, vector<1x64x32xf32>
    %99 = vector.shape_cast %98 : vector<1x64x32xf32> to vector<64x32xf32>
    %cst_64 = arith.constant dense<0.000000e+00> : vector<16x32xf32>
    %100 = tpu.matmul %44, %99, %cst_64 {dimension_numbers = #tpu.dot_dimension_numbers<[1], [0], [0], [1], [0, 0, 1, 1], [], []>} : vector<16x64xf32>, vector<64x32xf32>, vector<16x32xf32> -> vector<16x32xf32>
    %c3_65 = arith.constant 3 : index
    %c0_66 = arith.constant 0 : index
    %c0_67 = arith.constant 0 : index
    %101 = vector.load %arg12[%c3_65, %c0_66, %c0_67] : memref<12x1x32xf32, #tpu.memory_space<vmem>>, vector<1x1x32xf32>
    %102 = vector.shape_cast %101 : vector<1x1x32xf32> to vector<1x32xf32>
    %103 = vector.broadcast %102 : vector<1x32xf32> to vector<16x32xf32>
    %104 = arith.addf %100, %103 : vector<16x32xf32>
    %c5 = arith.constant 5 : index
    %c0_68 = arith.constant 0 : index
    %c0_69 = arith.constant 0 : index
    %105 = vector.load %arg11[%c5, %c0_68, %c0_69] : memref<12x64x32xf32, #tpu.memory_space<vmem>>, vector<1x64x32xf32>
    %106 = vector.shape_cast %105 : vector<1x64x32xf32> to vector<64x32xf32>
    %cst_70 = arith.constant dense<0.000000e+00> : vector<16x32xf32>
    %107 = tpu.matmul %44, %106, %cst_70 {dimension_numbers = #tpu.dot_dimension_numbers<[1], [0], [0], [1], [0, 0, 1, 1], [], []>} : vector<16x64xf32>, vector<64x32xf32>, vector<16x32xf32> -> vector<16x32xf32>
    %c5_71 = arith.constant 5 : index
    %c0_72 = arith.constant 0 : index
    %c0_73 = arith.constant 0 : index
    %108 = vector.load %arg12[%c5_71, %c0_72, %c0_73] : memref<12x1x32xf32, #tpu.memory_space<vmem>>, vector<1x1x32xf32>
    %109 = vector.shape_cast %108 : vector<1x1x32xf32> to vector<1x32xf32>
    %110 = vector.broadcast %109 : vector<1x32xf32> to vector<16x32xf32>
    %111 = arith.addf %107, %110 : vector<16x32xf32>
    %cst_74 = arith.constant dense<0.000000e+00> : vector<16x16xf32>
    %112 = tpu.matmul %97, %104, %cst_74 {dimension_numbers = #tpu.dot_dimension_numbers<[1], [1], [0], [0], [0, 0, 1, 0], [], []>} : vector<16x32xf32>, vector<16x32xf32>, vector<16x16xf32> -> vector<16x16xf32>
    %cst_75 = arith.constant 0.176776692 : f32
    %113 = vector.broadcast %cst_75 : f32 to vector<16x16xf32>
    %114 = arith.mulf %112, %113 : vector<16x16xf32>
    %115 = vector.broadcast %46 : vector<1x16xf32> to vector<16x16xf32>
    %116 = arith.addf %114, %115 : vector<16x16xf32>
    %cst_76 = arith.constant dense<0xFF800000> : vector<16xf32>
    %117 = vector.multi_reduction <maximumf>, %116, %cst_76 [1] : vector<16x16xf32> to vector<16xf32>
    %118 = vector.shape_cast %117 : vector<16xf32> to vector<16x1xf32>
    %119 = vector.broadcast %118 : vector<16x1xf32> to vector<16x16xf32>
    %120 = arith.subf %116, %119 : vector<16x16xf32>
    %121 = math.exp %120 : vector<16x16xf32>
    %cst_77 = arith.constant dense<0.000000e+00> : vector<16xf32>
    %122 = vector.multi_reduction <add>, %121, %cst_77 [1] : vector<16x16xf32> to vector<16xf32>
    %123 = vector.shape_cast %122 : vector<16xf32> to vector<16x1xf32>
    %124 = tpu.reciprocal %123 {approx = true} : vector<16x1xf32> -> vector<16x1xf32>
    %125 = vector.broadcast %124 : vector<16x1xf32> to vector<16x16xf32>
    %126 = arith.mulf %121, %125 : vector<16x16xf32>
    %cst_78 = arith.constant dense<0.000000e+00> : vector<16x32xf32>
    %127 = tpu.matmul %126, %111, %cst_78 {dimension_numbers = #tpu.dot_dimension_numbers<[1], [0], [0], [1], [0, 0, 1, 1], [], []>} : vector<16x16xf32>, vector<16x32xf32>, vector<16x32xf32> -> vector<16x32xf32>
    %c1_79 = arith.constant 1 : index
    %c0_80 = arith.constant 0 : index
    %c0_81 = arith.constant 0 : index
    %128 = vector.load %arg13[%c1_79, %c0_80, %c0_81] : memref<4x32x64xf32, #tpu.memory_space<vmem>>, vector<1x32x64xf32>
    %129 = vector.shape_cast %128 : vector<1x32x64xf32> to vector<32x64xf32>
    %cst_82 = arith.constant dense<0.000000e+00> : vector<16x64xf32>
    %130 = tpu.matmul %127, %129, %cst_82 {dimension_numbers = #tpu.dot_dimension_numbers<[1], [0], [0], [1], [0, 0, 1, 1], [], []>} : vector<16x32xf32>, vector<32x64xf32>, vector<16x64xf32> -> vector<16x64xf32>
    %131 = arith.addf %90, %130 : vector<16x64xf32>
    %132 = arith.addf %131, %44 : vector<16x64xf32>
    %c0_83 = arith.constant 0 : index
    %c0_84 = arith.constant 0 : index
    %c0_85 = arith.constant 0 : index
    %133 = vector.load %arg15[%c0_83, %c0_84, %c0_85] : memref<2x1x64xf32, #tpu.memory_space<vmem>>, vector<1x1x64xf32>
    %134 = vector.shape_cast %133 : vector<1x1x64xf32> to vector<1x64xf32>
    %c0_86 = arith.constant 0 : index
    %c0_87 = arith.constant 0 : index
    %c0_88 = arith.constant 0 : index
    %135 = vector.load %arg16[%c0_86, %c0_87, %c0_88] : memref<2x1x64xf32, #tpu.memory_space<vmem>>, vector<1x1x64xf32>
    %136 = vector.shape_cast %135 : vector<1x1x64xf32> to vector<1x64xf32>
    %cst_89 = arith.constant dense<0.000000e+00> : vector<16xf32>
    %137 = vector.multi_reduction <add>, %132, %cst_89 [1] : vector<16x64xf32> to vector<16xf32>
    %138 = vector.shape_cast %137 : vector<16xf32> to vector<16x1xf32>
    %cst_90 = arith.constant 6.400000e+01 : f32
    %139 = vector.broadcast %cst_90 : f32 to vector<16x1xf32>
    %140 = arith.divf %138, %139 : vector<16x1xf32>
    %141 = vector.broadcast %140 : vector<16x1xf32> to vector<16x64xf32>
    %142 = arith.subf %132, %141 : vector<16x64xf32>
    %143 = vector.broadcast %140 : vector<16x1xf32> to vector<16x64xf32>
    %144 = arith.subf %132, %143 : vector<16x64xf32>
    %145 = arith.mulf %142, %144 : vector<16x64xf32>
    %cst_91 = arith.constant dense<0.000000e+00> : vector<16xf32>
    %146 = vector.multi_reduction <add>, %145, %cst_91 [1] : vector<16x64xf32> to vector<16xf32>
    %147 = vector.shape_cast %146 : vector<16xf32> to vector<16x1xf32>
    %cst_92 = arith.constant 6.400000e+01 : f32
    %148 = vector.broadcast %cst_92 : f32 to vector<16x1xf32>
    %149 = arith.divf %147, %148 : vector<16x1xf32>
    %150 = vector.broadcast %140 : vector<16x1xf32> to vector<16x64xf32>
    %151 = arith.subf %132, %150 : vector<16x64xf32>
    %cst_93 = arith.constant 9.99999996E-13 : f32
    %152 = vector.broadcast %cst_93 : f32 to vector<16x1xf32>
    %153 = arith.addf %149, %152 : vector<16x1xf32>
    %154 = math.rsqrt %153 : vector<16x1xf32>
    %155 = vector.broadcast %154 : vector<16x1xf32> to vector<16x64xf32>
    %156 = arith.mulf %151, %155 : vector<16x64xf32>
    %157 = vector.broadcast %134 : vector<1x64xf32> to vector<16x64xf32>
    %158 = arith.mulf %156, %157 : vector<16x64xf32>
    %159 = vector.broadcast %136 : vector<1x64xf32> to vector<16x64xf32>
    %160 = arith.addf %158, %159 : vector<16x64xf32>
    %c0_94 = arith.constant 0 : index
    %c0_95 = arith.constant 0 : index
    %c0_96 = arith.constant 0 : index
    %161 = vector.load %arg17[%c0_94, %c0_95, %c0_96] : memref<2x64x128xf32, #tpu.memory_space<vmem>>, vector<1x64x128xf32>
    %162 = vector.shape_cast %161 : vector<1x64x128xf32> to vector<64x128xf32>
    %c0_97 = arith.constant 0 : index
    %c0_98 = arith.constant 0 : index
    %c0_99 = arith.constant 0 : index
    %163 = vector.load %arg18[%c0_97, %c0_98, %c0_99] : memref<2x1x128xf32, #tpu.memory_space<vmem>>, vector<1x1x128xf32>
    %164 = vector.shape_cast %163 : vector<1x1x128xf32> to vector<1x128xf32>
    %cst_100 = arith.constant dense<0.000000e+00> : vector<16x128xf32>
    %165 = tpu.matmul %160, %162, %cst_100 {dimension_numbers = #tpu.dot_dimension_numbers<[1], [0], [0], [1], [0, 0, 1, 1], [], []>} : vector<16x64xf32>, vector<64x128xf32>, vector<16x128xf32> -> vector<16x128xf32>
    %166 = vector.broadcast %164 : vector<1x128xf32> to vector<16x128xf32>
    %167 = arith.addf %165, %166 : vector<16x128xf32>
    %cst_101 = arith.constant 5.000000e-01 : f32
    %168 = vector.broadcast %cst_101 : f32 to vector<16x128xf32>
    %169 = arith.mulf %168, %167 : vector<16x128xf32>
    %cst_102 = arith.constant 4.471500e-02 : f32
    %170 = vector.broadcast %cst_102 : f32 to vector<16x128xf32>
    %171 = arith.mulf %170, %167 : vector<16x128xf32>
    %172 = arith.mulf %171, %167 : vector<16x128xf32>
    %173 = arith.mulf %172, %167 : vector<16x128xf32>
    %174 = arith.addf %167, %173 : vector<16x128xf32>
    %cst_103 = arith.constant 0.797884583 : f32
    %175 = vector.broadcast %cst_103 : f32 to vector<16x128xf32>
    %176 = arith.mulf %175, %174 : vector<16x128xf32>
    %177 = math.tanh %176 : vector<16x128xf32>
    %cst_104 = arith.constant 1.000000e+00 : f32
    %178 = vector.broadcast %cst_104 : f32 to vector<16x128xf32>
    %179 = arith.addf %178, %177 : vector<16x128xf32>
    %180 = arith.mulf %169, %179 : vector<16x128xf32>
    %c0_105 = arith.constant 0 : index
    %c0_106 = arith.constant 0 : index
    %c0_107 = arith.constant 0 : index
    %181 = vector.load %arg19[%c0_105, %c0_106, %c0_107] : memref<2x128x64xf32, #tpu.memory_space<vmem>>, vector<1x128x64xf32>
    %182 = vector.shape_cast %181 : vector<1x128x64xf32> to vector<128x64xf32>
    %c0_108 = arith.constant 0 : index
    %c0_109 = arith.constant 0 : index
    %c0_110 = arith.constant 0 : index
    %183 = vector.load %arg20[%c0_108, %c0_109, %c0_110] : memref<2x1x64xf32, #tpu.memory_space<vmem>>, vector<1x1x64xf32>
    %184 = vector.shape_cast %183 : vector<1x1x64xf32> to vector<1x64xf32>
    %cst_111 = arith.constant dense<0.000000e+00> : vector<16x64xf32>
    %185 = tpu.matmul %180, %182, %cst_111 {dimension_numbers = #tpu.dot_dimension_numbers<[1], [0], [0], [1], [0, 0, 1, 1], [], []>} : vector<16x128xf32>, vector<128x64xf32>, vector<16x64xf32> -> vector<16x64xf32>
    %186 = vector.broadcast %184 : vector<1x64xf32> to vector<16x64xf32>
    %187 = arith.addf %185, %186 : vector<16x64xf32>
    %188 = arith.addf %187, %160 : vector<16x64xf32>
    %c0_112 = arith.constant 0 : index
    %c0_113 = arith.constant 0 : index
    %c0_114 = arith.constant 0 : index
    %189 = vector.load %arg21[%c0_112, %c0_113, %c0_114] : memref<2x1x64xf32, #tpu.memory_space<vmem>>, vector<1x1x64xf32>
    %190 = vector.shape_cast %189 : vector<1x1x64xf32> to vector<1x64xf32>
    %c0_115 = arith.constant 0 : index
    %c0_116 = arith.constant 0 : index
    %c0_117 = arith.constant 0 : index
    %191 = vector.load %arg22[%c0_115, %c0_116, %c0_117] : memref<2x1x64xf32, #tpu.memory_space<vmem>>, vector<1x1x64xf32>
    %192 = vector.shape_cast %191 : vector<1x1x64xf32> to vector<1x64xf32>
    %cst_118 = arith.constant dense<0.000000e+00> : vector<16xf32>
    %193 = vector.multi_reduction <add>, %188, %cst_118 [1] : vector<16x64xf32> to vector<16xf32>
    %194 = vector.shape_cast %193 : vector<16xf32> to vector<16x1xf32>
    %cst_119 = arith.constant 6.400000e+01 : f32
    %195 = vector.broadcast %cst_119 : f32 to vector<16x1xf32>
    %196 = arith.divf %194, %195 : vector<16x1xf32>
    %197 = vector.broadcast %196 : vector<16x1xf32> to vector<16x64xf32>
    %198 = arith.subf %188, %197 : vector<16x64xf32>
    %199 = vector.broadcast %196 : vector<16x1xf32> to vector<16x64xf32>
    %200 = arith.subf %188, %199 : vector<16x64xf32>
    %201 = arith.mulf %198, %200 : vector<16x64xf32>
    %cst_120 = arith.constant dense<0.000000e+00> : vector<16xf32>
    %202 = vector.multi_reduction <add>, %201, %cst_120 [1] : vector<16x64xf32> to vector<16xf32>
    %203 = vector.shape_cast %202 : vector<16xf32> to vector<16x1xf32>
    %cst_121 = arith.constant 6.400000e+01 : f32
    %204 = vector.broadcast %cst_121 : f32 to vector<16x1xf32>
    %205 = arith.divf %203, %204 : vector<16x1xf32>
    %206 = vector.broadcast %196 : vector<16x1xf32> to vector<16x64xf32>
    %207 = arith.subf %188, %206 : vector<16x64xf32>
    %cst_122 = arith.constant 9.99999996E-13 : f32
    %208 = vector.broadcast %cst_122 : f32 to vector<16x1xf32>
    %209 = arith.addf %205, %208 : vector<16x1xf32>
    %210 = math.rsqrt %209 : vector<16x1xf32>
    %211 = vector.broadcast %210 : vector<16x1xf32> to vector<16x64xf32>
    %212 = arith.mulf %207, %211 : vector<16x64xf32>
    %213 = vector.broadcast %190 : vector<1x64xf32> to vector<16x64xf32>
    %214 = arith.mulf %212, %213 : vector<16x64xf32>
    %215 = vector.broadcast %192 : vector<1x64xf32> to vector<16x64xf32>
    %216 = arith.addf %214, %215 : vector<16x64xf32>
    %c1_123 = arith.constant 1 : index
    %c0_124 = arith.constant 0 : index
    %c0_125 = arith.constant 0 : index
    %217 = vector.load %arg14[%c1_123, %c0_124, %c0_125] : memref<2x1x64xf32, #tpu.memory_space<vmem>>, vector<1x1x64xf32>
    %218 = vector.shape_cast %217 : vector<1x1x64xf32> to vector<1x64xf32>
    %c6 = arith.constant 6 : index
    %c0_126 = arith.constant 0 : index
    %c0_127 = arith.constant 0 : index
    %219 = vector.load %arg11[%c6, %c0_126, %c0_127] : memref<12x64x32xf32, #tpu.memory_space<vmem>>, vector<1x64x32xf32>
    %220 = vector.shape_cast %219 : vector<1x64x32xf32> to vector<64x32xf32>
    %cst_128 = arith.constant dense<0.000000e+00> : vector<16x32xf32>
    %221 = tpu.matmul %216, %220, %cst_128 {dimension_numbers = #tpu.dot_dimension_numbers<[1], [0], [0], [1], [0, 0, 1, 1], [], []>} : vector<16x64xf32>, vector<64x32xf32>, vector<16x32xf32> -> vector<16x32xf32>
    %c6_129 = arith.constant 6 : index
    %c0_130 = arith.constant 0 : index
    %c0_131 = arith.constant 0 : index
    %222 = vector.load %arg12[%c6_129, %c0_130, %c0_131] : memref<12x1x32xf32, #tpu.memory_space<vmem>>, vector<1x1x32xf32>
    %223 = vector.shape_cast %222 : vector<1x1x32xf32> to vector<1x32xf32>
    %224 = vector.broadcast %223 : vector<1x32xf32> to vector<16x32xf32>
    %225 = arith.addf %221, %224 : vector<16x32xf32>
    %c8 = arith.constant 8 : index
    %c0_132 = arith.constant 0 : index
    %c0_133 = arith.constant 0 : index
    %226 = vector.load %arg11[%c8, %c0_132, %c0_133] : memref<12x64x32xf32, #tpu.memory_space<vmem>>, vector<1x64x32xf32>
    %227 = vector.shape_cast %226 : vector<1x64x32xf32> to vector<64x32xf32>
    %cst_134 = arith.constant dense<0.000000e+00> : vector<16x32xf32>
    %228 = tpu.matmul %216, %227, %cst_134 {dimension_numbers = #tpu.dot_dimension_numbers<[1], [0], [0], [1], [0, 0, 1, 1], [], []>} : vector<16x64xf32>, vector<64x32xf32>, vector<16x32xf32> -> vector<16x32xf32>
    %c8_135 = arith.constant 8 : index
    %c0_136 = arith.constant 0 : index
    %c0_137 = arith.constant 0 : index
    %229 = vector.load %arg12[%c8_135, %c0_136, %c0_137] : memref<12x1x32xf32, #tpu.memory_space<vmem>>, vector<1x1x32xf32>
    %230 = vector.shape_cast %229 : vector<1x1x32xf32> to vector<1x32xf32>
    %231 = vector.broadcast %230 : vector<1x32xf32> to vector<16x32xf32>
    %232 = arith.addf %228, %231 : vector<16x32xf32>
    %c10 = arith.constant 10 : index
    %c0_138 = arith.constant 0 : index
    %c0_139 = arith.constant 0 : index
    %233 = vector.load %arg11[%c10, %c0_138, %c0_139] : memref<12x64x32xf32, #tpu.memory_space<vmem>>, vector<1x64x32xf32>
    %234 = vector.shape_cast %233 : vector<1x64x32xf32> to vector<64x32xf32>
    %cst_140 = arith.constant dense<0.000000e+00> : vector<16x32xf32>
    %235 = tpu.matmul %216, %234, %cst_140 {dimension_numbers = #tpu.dot_dimension_numbers<[1], [0], [0], [1], [0, 0, 1, 1], [], []>} : vector<16x64xf32>, vector<64x32xf32>, vector<16x32xf32> -> vector<16x32xf32>
    %c10_141 = arith.constant 10 : index
    %c0_142 = arith.constant 0 : index
    %c0_143 = arith.constant 0 : index
    %236 = vector.load %arg12[%c10_141, %c0_142, %c0_143] : memref<12x1x32xf32, #tpu.memory_space<vmem>>, vector<1x1x32xf32>
    %237 = vector.shape_cast %236 : vector<1x1x32xf32> to vector<1x32xf32>
    %238 = vector.broadcast %237 : vector<1x32xf32> to vector<16x32xf32>
    %239 = arith.addf %235, %238 : vector<16x32xf32>
    %cst_144 = arith.constant dense<0.000000e+00> : vector<16x16xf32>
    %240 = tpu.matmul %225, %232, %cst_144 {dimension_numbers = #tpu.dot_dimension_numbers<[1], [1], [0], [0], [0, 0, 1, 0], [], []>} : vector<16x32xf32>, vector<16x32xf32>, vector<16x16xf32> -> vector<16x16xf32>
    %cst_145 = arith.constant 0.176776692 : f32
    %241 = vector.broadcast %cst_145 : f32 to vector<16x16xf32>
    %242 = arith.mulf %240, %241 : vector<16x16xf32>
    %243 = vector.broadcast %46 : vector<1x16xf32> to vector<16x16xf32>
    %244 = arith.addf %242, %243 : vector<16x16xf32>
    %cst_146 = arith.constant dense<0xFF800000> : vector<16xf32>
    %245 = vector.multi_reduction <maximumf>, %244, %cst_146 [1] : vector<16x16xf32> to vector<16xf32>
    %246 = vector.shape_cast %245 : vector<16xf32> to vector<16x1xf32>
    %247 = vector.broadcast %246 : vector<16x1xf32> to vector<16x16xf32>
    %248 = arith.subf %244, %247 : vector<16x16xf32>
    %249 = math.exp %248 : vector<16x16xf32>
    %cst_147 = arith.constant dense<0.000000e+00> : vector<16xf32>
    %250 = vector.multi_reduction <add>, %249, %cst_147 [1] : vector<16x16xf32> to vector<16xf32>
    %251 = vector.shape_cast %250 : vector<16xf32> to vector<16x1xf32>
    %252 = tpu.reciprocal %251 {approx = true} : vector<16x1xf32> -> vector<16x1xf32>
    %253 = vector.broadcast %252 : vector<16x1xf32> to vector<16x16xf32>
    %254 = arith.mulf %249, %253 : vector<16x16xf32>
    %cst_148 = arith.constant dense<0.000000e+00> : vector<16x32xf32>
    %255 = tpu.matmul %254, %239, %cst_148 {dimension_numbers = #tpu.dot_dimension_numbers<[1], [0], [0], [1], [0, 0, 1, 1], [], []>} : vector<16x16xf32>, vector<16x32xf32>, vector<16x32xf32> -> vector<16x32xf32>
    %c2_149 = arith.constant 2 : index
    %c0_150 = arith.constant 0 : index
    %c0_151 = arith.constant 0 : index
    %256 = vector.load %arg13[%c2_149, %c0_150, %c0_151] : memref<4x32x64xf32, #tpu.memory_space<vmem>>, vector<1x32x64xf32>
    %257 = vector.shape_cast %256 : vector<1x32x64xf32> to vector<32x64xf32>
    %cst_152 = arith.constant dense<0.000000e+00> : vector<16x64xf32>
    %258 = tpu.matmul %255, %257, %cst_152 {dimension_numbers = #tpu.dot_dimension_numbers<[1], [0], [0], [1], [0, 0, 1, 1], [], []>} : vector<16x32xf32>, vector<32x64xf32>, vector<16x64xf32> -> vector<16x64xf32>
    %259 = vector.broadcast %218 : vector<1x64xf32> to vector<16x64xf32>
    %260 = arith.addf %259, %258 : vector<16x64xf32>
    %c7 = arith.constant 7 : index
    %c0_153 = arith.constant 0 : index
    %c0_154 = arith.constant 0 : index
    %261 = vector.load %arg11[%c7, %c0_153, %c0_154] : memref<12x64x32xf32, #tpu.memory_space<vmem>>, vector<1x64x32xf32>
    %262 = vector.shape_cast %261 : vector<1x64x32xf32> to vector<64x32xf32>
    %cst_155 = arith.constant dense<0.000000e+00> : vector<16x32xf32>
    %263 = tpu.matmul %216, %262, %cst_155 {dimension_numbers = #tpu.dot_dimension_numbers<[1], [0], [0], [1], [0, 0, 1, 1], [], []>} : vector<16x64xf32>, vector<64x32xf32>, vector<16x32xf32> -> vector<16x32xf32>
    %c7_156 = arith.constant 7 : index
    %c0_157 = arith.constant 0 : index
    %c0_158 = arith.constant 0 : index
    %264 = vector.load %arg12[%c7_156, %c0_157, %c0_158] : memref<12x1x32xf32, #tpu.memory_space<vmem>>, vector<1x1x32xf32>
    %265 = vector.shape_cast %264 : vector<1x1x32xf32> to vector<1x32xf32>
    %266 = vector.broadcast %265 : vector<1x32xf32> to vector<16x32xf32>
    %267 = arith.addf %263, %266 : vector<16x32xf32>
    %c9 = arith.constant 9 : index
    %c0_159 = arith.constant 0 : index
    %c0_160 = arith.constant 0 : index
    %268 = vector.load %arg11[%c9, %c0_159, %c0_160] : memref<12x64x32xf32, #tpu.memory_space<vmem>>, vector<1x64x32xf32>
    %269 = vector.shape_cast %268 : vector<1x64x32xf32> to vector<64x32xf32>
    %cst_161 = arith.constant dense<0.000000e+00> : vector<16x32xf32>
    %270 = tpu.matmul %216, %269, %cst_161 {dimension_numbers = #tpu.dot_dimension_numbers<[1], [0], [0], [1], [0, 0, 1, 1], [], []>} : vector<16x64xf32>, vector<64x32xf32>, vector<16x32xf32> -> vector<16x32xf32>
    %c9_162 = arith.constant 9 : index
    %c0_163 = arith.constant 0 : index
    %c0_164 = arith.constant 0 : index
    %271 = vector.load %arg12[%c9_162, %c0_163, %c0_164] : memref<12x1x32xf32, #tpu.memory_space<vmem>>, vector<1x1x32xf32>
    %272 = vector.shape_cast %271 : vector<1x1x32xf32> to vector<1x32xf32>
    %273 = vector.broadcast %272 : vector<1x32xf32> to vector<16x32xf32>
    %274 = arith.addf %270, %273 : vector<16x32xf32>
    %c11 = arith.constant 11 : index
    %c0_165 = arith.constant 0 : index
    %c0_166 = arith.constant 0 : index
    %275 = vector.load %arg11[%c11, %c0_165, %c0_166] : memref<12x64x32xf32, #tpu.memory_space<vmem>>, vector<1x64x32xf32>
    %276 = vector.shape_cast %275 : vector<1x64x32xf32> to vector<64x32xf32>
    %cst_167 = arith.constant dense<0.000000e+00> : vector<16x32xf32>
    %277 = tpu.matmul %216, %276, %cst_167 {dimension_numbers = #tpu.dot_dimension_numbers<[1], [0], [0], [1], [0, 0, 1, 1], [], []>} : vector<16x64xf32>, vector<64x32xf32>, vector<16x32xf32> -> vector<16x32xf32>
    %c11_168 = arith.constant 11 : index
    %c0_169 = arith.constant 0 : index
    %c0_170 = arith.constant 0 : index
    %278 = vector.load %arg12[%c11_168, %c0_169, %c0_170] : memref<12x1x32xf32, #tpu.memory_space<vmem>>, vector<1x1x32xf32>
    %279 = vector.shape_cast %278 : vector<1x1x32xf32> to vector<1x32xf32>
    %280 = vector.broadcast %279 : vector<1x32xf32> to vector<16x32xf32>
    %281 = arith.addf %277, %280 : vector<16x32xf32>
    %cst_171 = arith.constant dense<0.000000e+00> : vector<16x16xf32>
    %282 = tpu.matmul %267, %274, %cst_171 {dimension_numbers = #tpu.dot_dimension_numbers<[1], [1], [0], [0], [0, 0, 1, 0], [], []>} : vector<16x32xf32>, vector<16x32xf32>, vector<16x16xf32> -> vector<16x16xf32>
    %cst_172 = arith.constant 0.176776692 : f32
    %283 = vector.broadcast %cst_172 : f32 to vector<16x16xf32>
    %284 = arith.mulf %282, %283 : vector<16x16xf32>
    %285 = vector.broadcast %46 : vector<1x16xf32> to vector<16x16xf32>
    %286 = arith.addf %284, %285 : vector<16x16xf32>
    %cst_173 = arith.constant dense<0xFF800000> : vector<16xf32>
    %287 = vector.multi_reduction <maximumf>, %286, %cst_173 [1] : vector<16x16xf32> to vector<16xf32>
    %288 = vector.shape_cast %287 : vector<16xf32> to vector<16x1xf32>
    %289 = vector.broadcast %288 : vector<16x1xf32> to vector<16x16xf32>
    %290 = arith.subf %286, %289 : vector<16x16xf32>
    %291 = math.exp %290 : vector<16x16xf32>
    %cst_174 = arith.constant dense<0.000000e+00> : vector<16xf32>
    %292 = vector.multi_reduction <add>, %291, %cst_174 [1] : vector<16x16xf32> to vector<16xf32>
    %293 = vector.shape_cast %292 : vector<16xf32> to vector<16x1xf32>
    %294 = tpu.reciprocal %293 {approx = true} : vector<16x1xf32> -> vector<16x1xf32>
    %295 = vector.broadcast %294 : vector<16x1xf32> to vector<16x16xf32>
    %296 = arith.mulf %291, %295 : vector<16x16xf32>
    %cst_175 = arith.constant dense<0.000000e+00> : vector<16x32xf32>
    %297 = tpu.matmul %296, %281, %cst_175 {dimension_numbers = #tpu.dot_dimension_numbers<[1], [0], [0], [1], [0, 0, 1, 1], [], []>} : vector<16x16xf32>, vector<16x32xf32>, vector<16x32xf32> -> vector<16x32xf32>
    %c3_176 = arith.constant 3 : index
    %c0_177 = arith.constant 0 : index
    %c0_178 = arith.constant 0 : index
    %298 = vector.load %arg13[%c3_176, %c0_177, %c0_178] : memref<4x32x64xf32, #tpu.memory_space<vmem>>, vector<1x32x64xf32>
    %299 = vector.shape_cast %298 : vector<1x32x64xf32> to vector<32x64xf32>
    %cst_179 = arith.constant dense<0.000000e+00> : vector<16x64xf32>
    %300 = tpu.matmul %297, %299, %cst_179 {dimension_numbers = #tpu.dot_dimension_numbers<[1], [0], [0], [1], [0, 0, 1, 1], [], []>} : vector<16x32xf32>, vector<32x64xf32>, vector<16x64xf32> -> vector<16x64xf32>
    %301 = arith.addf %260, %300 : vector<16x64xf32>
    %302 = arith.addf %301, %216 : vector<16x64xf32>
    %c1_180 = arith.constant 1 : index
    %c0_181 = arith.constant 0 : index
    %c0_182 = arith.constant 0 : index
    %303 = vector.load %arg15[%c1_180, %c0_181, %c0_182] : memref<2x1x64xf32, #tpu.memory_space<vmem>>, vector<1x1x64xf32>
    %304 = vector.shape_cast %303 : vector<1x1x64xf32> to vector<1x64xf32>
    %c1_183 = arith.constant 1 : index
    %c0_184 = arith.constant 0 : index
    %c0_185 = arith.constant 0 : index
    %305 = vector.load %arg16[%c1_183, %c0_184, %c0_185] : memref<2x1x64xf32, #tpu.memory_space<vmem>>, vector<1x1x64xf32>
    %306 = vector.shape_cast %305 : vector<1x1x64xf32> to vector<1x64xf32>
    %cst_186 = arith.constant dense<0.000000e+00> : vector<16xf32>
    %307 = vector.multi_reduction <add>, %302, %cst_186 [1] : vector<16x64xf32> to vector<16xf32>
    %308 = vector.shape_cast %307 : vector<16xf32> to vector<16x1xf32>
    %cst_187 = arith.constant 6.400000e+01 : f32
    %309 = vector.broadcast %cst_187 : f32 to vector<16x1xf32>
    %310 = arith.divf %308, %309 : vector<16x1xf32>
    %311 = vector.broadcast %310 : vector<16x1xf32> to vector<16x64xf32>
    %312 = arith.subf %302, %311 : vector<16x64xf32>
    %313 = vector.broadcast %310 : vector<16x1xf32> to vector<16x64xf32>
    %314 = arith.subf %302, %313 : vector<16x64xf32>
    %315 = arith.mulf %312, %314 : vector<16x64xf32>
    %cst_188 = arith.constant dense<0.000000e+00> : vector<16xf32>
    %316 = vector.multi_reduction <add>, %315, %cst_188 [1] : vector<16x64xf32> to vector<16xf32>
    %317 = vector.shape_cast %316 : vector<16xf32> to vector<16x1xf32>
    %cst_189 = arith.constant 6.400000e+01 : f32
    %318 = vector.broadcast %cst_189 : f32 to vector<16x1xf32>
    %319 = arith.divf %317, %318 : vector<16x1xf32>
    %320 = vector.broadcast %310 : vector<16x1xf32> to vector<16x64xf32>
    %321 = arith.subf %302, %320 : vector<16x64xf32>
    %cst_190 = arith.constant 9.99999996E-13 : f32
    %322 = vector.broadcast %cst_190 : f32 to vector<16x1xf32>
    %323 = arith.addf %319, %322 : vector<16x1xf32>
    %324 = math.rsqrt %323 : vector<16x1xf32>
    %325 = vector.broadcast %324 : vector<16x1xf32> to vector<16x64xf32>
    %326 = arith.mulf %321, %325 : vector<16x64xf32>
    %327 = vector.broadcast %304 : vector<1x64xf32> to vector<16x64xf32>
    %328 = arith.mulf %326, %327 : vector<16x64xf32>
    %329 = vector.broadcast %306 : vector<1x64xf32> to vector<16x64xf32>
    %330 = arith.addf %328, %329 : vector<16x64xf32>
    %c1_191 = arith.constant 1 : index
    %c0_192 = arith.constant 0 : index
    %c0_193 = arith.constant 0 : index
    %331 = vector.load %arg17[%c1_191, %c0_192, %c0_193] : memref<2x64x128xf32, #tpu.memory_space<vmem>>, vector<1x64x128xf32>
    %332 = vector.shape_cast %331 : vector<1x64x128xf32> to vector<64x128xf32>
    %c1_194 = arith.constant 1 : index
    %c0_195 = arith.constant 0 : index
    %c0_196 = arith.constant 0 : index
    %333 = vector.load %arg18[%c1_194, %c0_195, %c0_196] : memref<2x1x128xf32, #tpu.memory_space<vmem>>, vector<1x1x128xf32>
    %334 = vector.shape_cast %333 : vector<1x1x128xf32> to vector<1x128xf32>
    %cst_197 = arith.constant dense<0.000000e+00> : vector<16x128xf32>
    %335 = tpu.matmul %330, %332, %cst_197 {dimension_numbers = #tpu.dot_dimension_numbers<[1], [0], [0], [1], [0, 0, 1, 1], [], []>} : vector<16x64xf32>, vector<64x128xf32>, vector<16x128xf32> -> vector<16x128xf32>
    %336 = vector.broadcast %334 : vector<1x128xf32> to vector<16x128xf32>
    %337 = arith.addf %335, %336 : vector<16x128xf32>
    %cst_198 = arith.constant 5.000000e-01 : f32
    %338 = vector.broadcast %cst_198 : f32 to vector<16x128xf32>
    %339 = arith.mulf %338, %337 : vector<16x128xf32>
    %cst_199 = arith.constant 4.471500e-02 : f32
    %340 = vector.broadcast %cst_199 : f32 to vector<16x128xf32>
    %341 = arith.mulf %340, %337 : vector<16x128xf32>
    %342 = arith.mulf %341, %337 : vector<16x128xf32>
    %343 = arith.mulf %342, %337 : vector<16x128xf32>
    %344 = arith.addf %337, %343 : vector<16x128xf32>
    %cst_200 = arith.constant 0.797884583 : f32
    %345 = vector.broadcast %cst_200 : f32 to vector<16x128xf32>
    %346 = arith.mulf %345, %344 : vector<16x128xf32>
    %347 = math.tanh %346 : vector<16x128xf32>
    %cst_201 = arith.constant 1.000000e+00 : f32
    %348 = vector.broadcast %cst_201 : f32 to vector<16x128xf32>
    %349 = arith.addf %348, %347 : vector<16x128xf32>
    %350 = arith.mulf %339, %349 : vector<16x128xf32>
    %c1_202 = arith.constant 1 : index
    %c0_203 = arith.constant 0 : index
    %c0_204 = arith.constant 0 : index
    %351 = vector.load %arg19[%c1_202, %c0_203, %c0_204] : memref<2x128x64xf32, #tpu.memory_space<vmem>>, vector<1x128x64xf32>
    %352 = vector.shape_cast %351 : vector<1x128x64xf32> to vector<128x64xf32>
    %c1_205 = arith.constant 1 : index
    %c0_206 = arith.constant 0 : index
    %c0_207 = arith.constant 0 : index
    %353 = vector.load %arg20[%c1_205, %c0_206, %c0_207] : memref<2x1x64xf32, #tpu.memory_space<vmem>>, vector<1x1x64xf32>
    %354 = vector.shape_cast %353 : vector<1x1x64xf32> to vector<1x64xf32>
    %cst_208 = arith.constant dense<0.000000e+00> : vector<16x64xf32>
    %355 = tpu.matmul %350, %352, %cst_208 {dimension_numbers = #tpu.dot_dimension_numbers<[1], [0], [0], [1], [0, 0, 1, 1], [], []>} : vector<16x128xf32>, vector<128x64xf32>, vector<16x64xf32> -> vector<16x64xf32>
    %356 = vector.broadcast %354 : vector<1x64xf32> to vector<16x64xf32>
    %357 = arith.addf %355, %356 : vector<16x64xf32>
    %358 = arith.addf %357, %330 : vector<16x64xf32>
    %c1_209 = arith.constant 1 : index
    %c0_210 = arith.constant 0 : index
    %c0_211 = arith.constant 0 : index
    %359 = vector.load %arg21[%c1_209, %c0_210, %c0_211] : memref<2x1x64xf32, #tpu.memory_space<vmem>>, vector<1x1x64xf32>
    %360 = vector.shape_cast %359 : vector<1x1x64xf32> to vector<1x64xf32>
    %c1_212 = arith.constant 1 : index
    %c0_213 = arith.constant 0 : index
    %c0_214 = arith.constant 0 : index
    %361 = vector.load %arg22[%c1_212, %c0_213, %c0_214] : memref<2x1x64xf32, #tpu.memory_space<vmem>>, vector<1x1x64xf32>
    %362 = vector.shape_cast %361 : vector<1x1x64xf32> to vector<1x64xf32>
    %cst_215 = arith.constant dense<0.000000e+00> : vector<16xf32>
    %363 = vector.multi_reduction <add>, %358, %cst_215 [1] : vector<16x64xf32> to vector<16xf32>
    %364 = vector.shape_cast %363 : vector<16xf32> to vector<16x1xf32>
    %cst_216 = arith.constant 6.400000e+01 : f32
    %365 = vector.broadcast %cst_216 : f32 to vector<16x1xf32>
    %366 = arith.divf %364, %365 : vector<16x1xf32>
    %367 = vector.broadcast %366 : vector<16x1xf32> to vector<16x64xf32>
    %368 = arith.subf %358, %367 : vector<16x64xf32>
    %369 = vector.broadcast %366 : vector<16x1xf32> to vector<16x64xf32>
    %370 = arith.subf %358, %369 : vector<16x64xf32>
    %371 = arith.mulf %368, %370 : vector<16x64xf32>
    %cst_217 = arith.constant dense<0.000000e+00> : vector<16xf32>
    %372 = vector.multi_reduction <add>, %371, %cst_217 [1] : vector<16x64xf32> to vector<16xf32>
    %373 = vector.shape_cast %372 : vector<16xf32> to vector<16x1xf32>
    %cst_218 = arith.constant 6.400000e+01 : f32
    %374 = vector.broadcast %cst_218 : f32 to vector<16x1xf32>
    %375 = arith.divf %373, %374 : vector<16x1xf32>
    %376 = vector.broadcast %366 : vector<16x1xf32> to vector<16x64xf32>
    %377 = arith.subf %358, %376 : vector<16x64xf32>
    %cst_219 = arith.constant 9.99999996E-13 : f32
    %378 = vector.broadcast %cst_219 : f32 to vector<16x1xf32>
    %379 = arith.addf %375, %378 : vector<16x1xf32>
    %380 = math.rsqrt %379 : vector<16x1xf32>
    %381 = vector.broadcast %380 : vector<16x1xf32> to vector<16x64xf32>
    %382 = arith.mulf %377, %381 : vector<16x64xf32>
    %383 = vector.broadcast %360 : vector<1x64xf32> to vector<16x64xf32>
    %384 = arith.mulf %382, %383 : vector<16x64xf32>
    %385 = vector.broadcast %362 : vector<1x64xf32> to vector<16x64xf32>
    %386 = arith.addf %384, %385 : vector<16x64xf32>
    %c0_220 = arith.constant 0 : index
    %c0_221 = arith.constant 0 : index
    %387 = vector.load %arg23[%c0_220, %c0_221] : memref<64x64xf32, #tpu.memory_space<vmem>>, vector<64x64xf32>
    %c0_222 = arith.constant 0 : index
    %c0_223 = arith.constant 0 : index
    %388 = vector.load %arg24[%c0_222, %c0_223] : memref<1x64xf32, #tpu.memory_space<vmem>>, vector<1x64xf32>
    %cst_224 = arith.constant dense<0.000000e+00> : vector<16x64xf32>
    %389 = tpu.matmul %386, %387, %cst_224 {dimension_numbers = #tpu.dot_dimension_numbers<[1], [0], [0], [1], [0, 0, 1, 1], [], []>} : vector<16x64xf32>, vector<64x64xf32>, vector<16x64xf32> -> vector<16x64xf32>
    %390 = vector.broadcast %388 : vector<1x64xf32> to vector<16x64xf32>
    %391 = arith.addf %389, %390 : vector<16x64xf32>
    %cst_225 = arith.constant 5.000000e-01 : f32
    %392 = vector.broadcast %cst_225 : f32 to vector<16x64xf32>
    %393 = arith.mulf %392, %391 : vector<16x64xf32>
    %cst_226 = arith.constant 4.471500e-02 : f32
    %394 = vector.broadcast %cst_226 : f32 to vector<16x64xf32>
    %395 = arith.mulf %394, %391 : vector<16x64xf32>
    %396 = arith.mulf %395, %391 : vector<16x64xf32>
    %397 = arith.mulf %396, %391 : vector<16x64xf32>
    %398 = arith.addf %391, %397 : vector<16x64xf32>
    %cst_227 = arith.constant 0.797884583 : f32
    %399 = vector.broadcast %cst_227 : f32 to vector<16x64xf32>
    %400 = arith.mulf %399, %398 : vector<16x64xf32>
    %401 = math.tanh %400 : vector<16x64xf32>
    %cst_228 = arith.constant 1.000000e+00 : f32
    %402 = vector.broadcast %cst_228 : f32 to vector<16x64xf32>
    %403 = arith.addf %402, %401 : vector<16x64xf32>
    %404 = arith.mulf %393, %403 : vector<16x64xf32>
    %c0_229 = arith.constant 0 : index
    %c0_230 = arith.constant 0 : index
    %405 = vector.load %arg25[%c0_229, %c0_230] : memref<1x64xf32, #tpu.memory_space<vmem>>, vector<1x64xf32>
    %c0_231 = arith.constant 0 : index
    %c0_232 = arith.constant 0 : index
    %406 = vector.load %arg26[%c0_231, %c0_232] : memref<1x64xf32, #tpu.memory_space<vmem>>, vector<1x64xf32>
    %cst_233 = arith.constant dense<0.000000e+00> : vector<16xf32>
    %407 = vector.multi_reduction <add>, %404, %cst_233 [1] : vector<16x64xf32> to vector<16xf32>
    %408 = vector.shape_cast %407 : vector<16xf32> to vector<16x1xf32>
    %cst_234 = arith.constant 6.400000e+01 : f32
    %409 = vector.broadcast %cst_234 : f32 to vector<16x1xf32>
    %410 = arith.divf %408, %409 : vector<16x1xf32>
    %411 = vector.broadcast %410 : vector<16x1xf32> to vector<16x64xf32>
    %412 = arith.subf %404, %411 : vector<16x64xf32>
    %413 = vector.broadcast %410 : vector<16x1xf32> to vector<16x64xf32>
    %414 = arith.subf %404, %413 : vector<16x64xf32>
    %415 = arith.mulf %412, %414 : vector<16x64xf32>
    %cst_235 = arith.constant dense<0.000000e+00> : vector<16xf32>
    %416 = vector.multi_reduction <add>, %415, %cst_235 [1] : vector<16x64xf32> to vector<16xf32>
    %417 = vector.shape_cast %416 : vector<16xf32> to vector<16x1xf32>
    %cst_236 = arith.constant 6.400000e+01 : f32
    %418 = vector.broadcast %cst_236 : f32 to vector<16x1xf32>
    %419 = arith.divf %417, %418 : vector<16x1xf32>
    %420 = vector.broadcast %410 : vector<16x1xf32> to vector<16x64xf32>
    %421 = arith.subf %404, %420 : vector<16x64xf32>
    %cst_237 = arith.constant 9.99999996E-13 : f32
    %422 = vector.broadcast %cst_237 : f32 to vector<16x1xf32>
    %423 = arith.addf %419, %422 : vector<16x1xf32>
    %424 = math.rsqrt %423 : vector<16x1xf32>
    %425 = vector.broadcast %424 : vector<16x1xf32> to vector<16x64xf32>
    %426 = arith.mulf %421, %425 : vector<16x64xf32>
    %427 = vector.broadcast %405 : vector<1x64xf32> to vector<16x64xf32>
    %428 = arith.mulf %426, %427 : vector<16x64xf32>
    %429 = vector.broadcast %406 : vector<1x64xf32> to vector<16x64xf32>
    %430 = arith.addf %428, %429 : vector<16x64xf32>
    %c0_238 = arith.constant 0 : index
    %c0_239 = arith.constant 0 : index
    %431 = vector.load %arg27[%c0_238, %c0_239] : memref<128x64xf32, #tpu.memory_space<vmem>>, vector<128x64xf32>
    %cst_240 = arith.constant dense<0.000000e+00> : vector<16x128xf32>
    %432 = tpu.matmul %430, %431, %cst_240 {dimension_numbers = #tpu.dot_dimension_numbers<[1], [1], [0], [0], [0, 0, 1, 0], [], []>} : vector<16x64xf32>, vector<128x64xf32>, vector<16x128xf32> -> vector<16x128xf32>
    %c0_241 = arith.constant 0 : index
    %c0_242 = arith.constant 0 : index
    %433 = vector.load %arg28[%c0_241, %c0_242] : memref<1x128xf32, #tpu.memory_space<vmem>>, vector<1x128xf32>
    %434 = vector.broadcast %433 : vector<1x128xf32> to vector<16x128xf32>
    %435 = arith.addf %432, %434 : vector<16x128xf32>
    %c0_243 = arith.constant 0 : index
    %c0_244 = arith.constant 0 : index
    %c0_245 = arith.constant 0 : index
    %436 = vector.load %arg29[%c0_243, %c0_244, %c0_245] : memref<1x16x128xf32, #tpu.memory_space<vmem>>, vector<1x16x128xf32>
    %437 = vector.shape_cast %436 : vector<1x16x128xf32> to vector<16x128xf32>
    %438 = vector.shape_cast %435 : vector<16x128xf32> to vector<1x16x128xf32>
    tpu.vector_store %arg29[%c0_243, %c0_244, %c0_245], %438 {strides = array<i32>} : memref<1x16x128xf32, #tpu.memory_space<vmem>>, vector<1x16x128xf32>,
    %c0_246 = arith.constant 0 : index
    %c0_247 = arith.constant 0 : index
    %c0_248 = arith.constant 0 : index
    %439 = vector.load %arg4[%c0_246, %c0_247, %c0_248] : memref<1x16x1xi32, #tpu.memory_space<vmem>>, vector<1x16x1xi32>
    %440 = vector.shape_cast %439 : vector<1x16x1xi32> to vector<16x1xi32>
    %cst_249 = arith.constant dense<0xFF800000> : vector<16xf32>
    %441 = vector.multi_reduction <maximumf>, %435, %cst_249 [1] : vector<16x128xf32> to vector<16xf32>
    %442 = vector.shape_cast %441 : vector<16xf32> to vector<16x1xf32>
    %443 = vector.broadcast %442 : vector<16x1xf32> to vector<16x128xf32>
    %444 = arith.subf %435, %443 : vector<16x128xf32>
    %445 = math.exp %444 : vector<16x128xf32>
    %cst_250 = arith.constant dense<0.000000e+00> : vector<16xf32>
    %446 = vector.multi_reduction <add>, %445, %cst_250 [1] : vector<16x128xf32> to vector<16xf32>
    %447 = vector.shape_cast %446 : vector<16xf32> to vector<16x1xf32>
    %448 = math.log %447 : vector<16x1xf32>
    %449 = arith.addf %448, %442 : vector<16x1xf32>
    %450 = tpu.iota {dimensions = array<i32: 1>} : vector<16x128xi32>
    %451 = vector.broadcast %440 : vector<16x1xi32> to vector<16x128xi32>
    %452 = arith.cmpi eq, %450, %451 : vector<16x128xi32>
    %cst_251 = arith.constant 0.000000e+00 : f32
    %453 = vector.broadcast %cst_251 : f32 to vector<16x128xf32>
    %454 = arith.select %452, %435, %453 : vector<16x128xi1>, vector<16x128xf32>
    %cst_252 = arith.constant dense<0.000000e+00> : vector<16xf32>
    %455 = vector.multi_reduction <add>, %454, %cst_252 [1] : vector<16x128xf32> to vector<16xf32>
    %456 = vector.shape_cast %455 : vector<16xf32> to vector<16x1xf32>
    %c-100_i32 = arith.constant -100 : i32
    %457 = vector.broadcast %c-100_i32 : i32 to vector<16x1xi32>
    %458 = arith.cmpi ne, %440, %457 : vector<16x1xi32>
    %459 = arith.extui %458 : vector<16x1xi1> to vector<16x1xi32>
    %460 = arith.sitofp %459 : vector<16x1xi32> to vector<16x1xf32>
    %461 = arith.subf %449, %456 : vector<16x1xf32>
    %462 = arith.mulf %461, %460 : vector<16x1xf32>
    %463 = vector.shape_cast %462 : vector<16x1xf32> to vector<1x16x1xf32>
    %cst_253 = arith.constant dense<0.000000e+00> : vector<1xf32>
    %464 = vector.multi_reduction <add>, %463, %cst_253 [1, 2] : vector<1x16x1xf32> to vector<1xf32>
    %465 = vector.shape_cast %464 : vector<1xf32> to vector<1x1x1xf32>
    %466 = vector.extract %465[0, 0, 0] : f32 from vector<1x1x1xf32>
    %467 = vector.broadcast %466 : f32 to vector<1x1xf32>
    %468 = vector.shape_cast %460 : vector<16x1xf32> to vector<1x16x1xf32>
    %cst_254 = arith.constant dense<0.000000e+00> : vector<1xf32>
    %469 = vector.multi_reduction <add>, %468, %cst_254 [1, 2] : vector<1x16x1xf32> to vector<1xf32>
    %470 = vector.shape_cast %469 : vector<1xf32> to vector<1x1x1xf32>
    %471 = vector.extract %470[0, 0, 0] : f32 from vector<1x1x1xf32>
    %472 = vector.broadcast %471 : f32 to vector<1x1xf32>
    %473 = tpu.iota {dimensions = array<i32: 1>} : vector<1x128xi32>
    %c0_i32_255 = arith.constant 0 : i32
    %474 = vector.broadcast %c0_i32_255 : i32 to vector<1x128xi32>
    %475 = arith.cmpi eq, %473, %474 : vector<1x128xi32>
    %c1_i32 = arith.constant 1 : i32
    %476 = vector.broadcast %c1_i32 : i32 to vector<1x128xi32>
    %477 = arith.cmpi eq, %473, %476 : vector<1x128xi32>
    %cst_256 = arith.constant 0.000000e+00 : f32
    %478 = vector.shape_cast %472 : vector<1x1xf32> to vector<1x1xf32>
    %479 = vector.broadcast %478 : vector<1x1xf32> to vector<1x128xf32>
    %480 = vector.broadcast %cst_256 : f32 to vector<1x128xf32>
    %481 = arith.select %477, %479, %480 : vector<1x128xi1>, vector<1x128xf32>
    %482 = vector.shape_cast %467 : vector<1x1xf32> to vector<1x1xf32>
    %483 = vector.broadcast %482 : vector<1x1xf32> to vector<1x128xf32>
    %484 = arith.select %475, %483, %481 : vector<1x128xi1>, vector<1x128xf32>
    %c0_257 = arith.constant 0 : index
    %c0_258 = arith.constant 0 : index
    %c0_259 = arith.constant 0 : index
    %485 = vector.load %arg30[%c0_257, %c0_258, %c0_259] : memref<1x1x128xf32, #tpu.memory_space<vmem>>, vector<1x1x128xf32>
    %486 = vector.shape_cast %485 : vector<1x1x128xf32> to vector<1x128xf32>
    %487 = vector.shape_cast %484 : vector<1x128xf32> to vector<1x1x128xf32>
    tpu.vector_store %arg30[%c0_257, %c0_258, %c0_259], %487 {strides = array<i32>} : memref<1x1x128xf32, #tpu.memory_space<vmem>>, vector<1x1x128xf32>,
    return
  }
  func.func @transform_0(%arg0: i32) -> (i32, i32, i32) {
    %c0_i32 = arith.constant 0 : i32
    %c0_i32_0 = arith.constant 0 : i32
    %c0_i32_1 = arith.constant 0 : i32
    return %arg0, %c0_i32, %c0_i32_0 : i32, i32, i32
  }
  func.func @transform_1(%arg0: i32) -> (i32, i32, i32) {
    %c0_i32 = arith.constant 0 : i32
    %c0_i32_0 = arith.constant 0 : i32
    %c0_i32_1 = arith.constant 0 : i32
    return %arg0, %c0_i32, %c0_i32_0 : i32, i32, i32
  }
  func.func @transform_2(%arg0: i32) -> (i32, i32, i32) {
    %c0_i32 = arith.constant 0 : i32
    %c0_i32_0 = arith.constant 0 : i32
    %c0_i32_1 = arith.constant 0 : i32
    return %arg0, %c0_i32, %c0_i32_0 : i32, i32, i32
  }
  func.func @transform_3(%arg0: i32) -> (i32, i32, i32) {
    %c0_i32 = arith.constant 0 : i32
    %c0_i32_0 = arith.constant 0 : i32
    %c0_i32_1 = arith.constant 0 : i32
    return %arg0, %c0_i32, %c0_i32_0 : i32, i32, i32
  }
  func.func @transform_4(%arg0: i32) -> (i32, i32) {
    %c0_i32 = arith.constant 0 : i32
    %c0_i32_0 = arith.constant 0 : i32
    %c0_i32_1 = arith.constant 0 : i32
    return %c0_i32, %c0_i32_0 : i32, i32
  }
  func.func @transform_5(%arg0: i32) -> (i32, i32) {
    %c0_i32 = arith.constant 0 : i32
    %c0_i32_0 = arith.constant 0 : i32
    %c0_i32_1 = arith.constant 0 : i32
    return %c0_i32, %c0_i32_0 : i32, i32
  }
  func.func @transform_6(%arg0: i32) -> (i32, i32) {
    %c0_i32 = arith.constant 0 : i32
    %c0_i32_0 = arith.constant 0 : i32
    %c0_i32_1 = arith.constant 0 : i32
    return %c0_i32, %c0_i32_0 : i32, i32
  }
  func.func @transform_7(%arg0: i32) -> (i32, i32) {
    %c0_i32 = arith.constant 0 : i32
    %c0_i32_0 = arith.constant 0 : i32
    %c0_i32_1 = arith.constant 0 : i32
    return %c0_i32, %c0_i32_0 : i32, i32
  }
  func.func @transform_8(%arg0: i32) -> (i32, i32) {
    %c0_i32 = arith.constant 0 : i32
    %c0_i32_0 = arith.constant 0 : i32
    %c0_i32_1 = arith.constant 0 : i32
    return %c0_i32, %c0_i32_0 : i32, i32
  }
  func.func @transform_9(%arg0: i32) -> (i32, i32) {
    %c0_i32 = arith.constant 0 : i32
    %c0_i32_0 = arith.constant 0 : i32
    %c0_i32_1 = arith.constant 0 : i32
    return %c0_i32, %c0_i32_0 : i32, i32
  }
  func.func @transform_10(%arg0: i32) -> (i32, i32, i32) {
    %c0_i32 = arith.constant 0 : i32
    %c0_i32_0 = arith.constant 0 : i32
    %c0_i32_1 = arith.constant 0 : i32
    %c0_i32_2 = arith.constant 0 : i32
    return %c0_i32, %c0_i32_0, %c0_i32_1 : i32, i32, i32
  }
  func.func @transform_11(%arg0: i32) -> (i32, i32, i32) {
    %c0_i32 = arith.constant 0 : i32
    %c0_i32_0 = arith.constant 0 : i32
    %c0_i32_1 = arith.constant 0 : i32
    %c0_i32_2 = arith.constant 0 : i32
    return %c0_i32, %c0_i32_0, %c0_i32_1 : i32, i32, i32
  }
  func.func @transform_12(%arg0: i32) -> (i32, i32, i32) {
    %c0_i32 = arith.constant 0 : i32
    %c0_i32_0 = arith.constant 0 : i32
    %c0_i32_1 = arith.constant 0 : i32
    %c0_i32_2 = arith.constant 0 : i32
    return %c0_i32, %c0_i32_0, %c0_i32_1 : i32, i32, i32
  }
  func.func @transform_13(%arg0: i32) -> (i32, i32, i32) {
    %c0_i32 = arith.constant 0 : i32
    %c0_i32_0 = arith.constant 0 : i32
    %c0_i32_1 = arith.constant 0 : i32
    %c0_i32_2 = arith.constant 0 : i32
    return %c0_i32, %c0_i32_0, %c0_i32_1 : i32, i32, i32
  }
  func.func @transform_14(%arg0: i32) -> (i32, i32, i32) {
    %c0_i32 = arith.constant 0 : i32
    %c0_i32_0 = arith.constant 0 : i32
    %c0_i32_1 = arith.constant 0 : i32
    %c0_i32_2 = arith.constant 0 : i32
    return %c0_i32, %c0_i32_0, %c0_i32_1 : i32, i32, i32
  }
  func.func @transform_15(%arg0: i32) -> (i32, i32, i32) {
    %c0_i32 = arith.constant 0 : i32
    %c0_i32_0 = arith.constant 0 : i32
    %c0_i32_1 = arith.constant 0 : i32
    %c0_i32_2 = arith.constant 0 : i32
    return %c0_i32, %c0_i32_0, %c0_i32_1 : i32, i32, i32
  }
  func.func @transform_16(%arg0: i32) -> (i32, i32, i32) {
    %c0_i32 = arith.constant 0 : i32
    %c0_i32_0 = arith.constant 0 : i32
    %c0_i32_1 = arith.constant 0 : i32
    %c0_i32_2 = arith.constant 0 : i32
    return %c0_i32, %c0_i32_0, %c0_i32_1 : i32, i32, i32
  }
  func.func @transform_17(%arg0: i32) -> (i32, i32, i32) {
    %c0_i32 = arith.constant 0 : i32
    %c0_i32_0 = arith.constant 0 : i32
    %c0_i32_1 = arith.constant 0 : i32
    %c0_i32_2 = arith.constant 0 : i32
    return %c0_i32, %c0_i32_0, %c0_i32_1 : i32, i32, i32
  }
  func.func @transform_18(%arg0: i32) -> (i32, i32, i32) {
    %c0_i32 = arith.constant 0 : i32
    %c0_i32_0 = arith.constant 0 : i32
    %c0_i32_1 = arith.constant 0 : i32
    %c0_i32_2 = arith.constant 0 : i32
    return %c0_i32, %c0_i32_0, %c0_i32_1 : i32, i32, i32
  }
  func.func @transform_19(%arg0: i32) -> (i32, i32, i32) {
    %c0_i32 = arith.constant 0 : i32
    %c0_i32_0 = arith.constant 0 : i32
    %c0_i32_1 = arith.constant 0 : i32
    %c0_i32_2 = arith.constant 0 : i32
    return %c0_i32, %c0_i32_0, %c0_i32_1 : i32, i32, i32
  }
  func.func @transform_20(%arg0: i32) -> (i32, i32, i32) {
    %c0_i32 = arith.constant 0 : i32
    %c0_i32_0 = arith.constant 0 : i32
    %c0_i32_1 = arith.constant 0 : i32
    %c0_i32_2 = arith.constant 0 : i32
    return %c0_i32, %c0_i32_0, %c0_i32_1 : i32, i32, i32
  }
  func.func @transform_21(%arg0: i32) -> (i32, i32, i32) {
    %c0_i32 = arith.constant 0 : i32
    %c0_i32_0 = arith.constant 0 : i32
    %c0_i32_1 = arith.constant 0 : i32
    %c0_i32_2 = arith.constant 0 : i32
    return %c0_i32, %c0_i32_0, %c0_i32_1 : i32, i32, i32
  }
  func.func @transform_22(%arg0: i32) -> (i32, i32) {
    %c0_i32 = arith.constant 0 : i32
    %c0_i32_0 = arith.constant 0 : i32
    %c0_i32_1 = arith.constant 0 : i32
    return %c0_i32, %c0_i32_0 : i32, i32
  }
  func.func @transform_23(%arg0: i32) -> (i32, i32) {
    %c0_i32 = arith.constant 0 : i32
    %c0_i32_0 = arith.constant 0 : i32
    %c0_i32_1 = arith.constant 0 : i32
    return %c0_i32, %c0_i32_0 : i32, i32
  }
  func.func @transform_24(%arg0: i32) -> (i32, i32) {
    %c0_i32 = arith.constant 0 : i32
    %c0_i32_0 = arith.constant 0 : i32
    %c0_i32_1 = arith.constant 0 : i32
    return %c0_i32, %c0_i32_0 : i32, i32
  }
  func.func @transform_25(%arg0: i32) -> (i32, i32) {
    %c0_i32 = arith.constant 0 : i32
    %c0_i32_0 = arith.constant 0 : i32
    %c0_i32_1 = arith.constant 0 : i32
    return %c0_i32, %c0_i32_0 : i32, i32
  }
  func.func @transform_26(%arg0: i32) -> (i32, i32) {
    %c0_i32 = arith.constant 0 : i32
    %c0_i32_0 = arith.constant 0 : i32
    %c0_i32_1 = arith.constant 0 : i32
    return %c0_i32, %c0_i32_0 : i32, i32
  }
  func.func @transform_27(%arg0: i32) -> (i32, i32) {
    %c0_i32 = arith.constant 0 : i32
    %c0_i32_0 = arith.constant 0 : i32
    %c0_i32_1 = arith.constant 0 : i32
    return %c0_i32, %c0_i32_0 : i32, i32
  }
  func.func @transform_28(%arg0: i32) -> (i32, i32, i32) {
    %c0_i32 = arith.constant 0 : i32
    %c0_i32_0 = arith.constant 0 : i32
    %c0_i32_1 = arith.constant 0 : i32
    return %arg0, %c0_i32, %c0_i32_0 : i32, i32, i32
  }
  func.func @transform_29(%arg0: i32) -> (i32, i32, i32) {
    %c0_i32 = arith.constant 0 : i32
    %c0_i32_0 = arith.constant 0 : i32
    %c0_i32_1 = arith.constant 0 : i32
    return %arg0, %c0_i32, %c0_i32_0 : i32, i32, i32
  }
}

</mosaic_0001>

<llo_original>
// kernel: forward.1
$region0: #{forward.1}
  #allocation0 [shape = 'u32[]', space=smem, size = 0x4, offset = 0x4, fixed_abs, tag = 'smem constant byte address 0x4 - core index']
  #allocation1 [shape = 'u32[144,128]{1,0:T(1,128)}', space=vmem, size = 0x12000, scoped, tag = 'internal scratch']
  %s0 = inlined_call_operand.smem [shape: u32[30], index: -1, kind: input, shape index: {}]
  %s1 = sld [smem:[%s0]]
  %s2 = scalar_lea.smem %s0, 1
  %s3 = sld [smem:[%s2]]
  %s4 = scalar_lea.smem %s0, 2
  %s5 = sld [smem:[%s4]]
  %s6 = scalar_lea.smem %s0, 3
  %s7 = sld [smem:[%s6]]
  %s8 = scalar_lea.smem %s0, 4
  %s9 = sld [smem:[%s8]]
  %s10 = scalar_lea.smem %s0, 5
  %s11 = sld [smem:[%s10]]
  %s12 = scalar_lea.smem %s0, 6
  %s13 = sld [smem:[%s12]]
  %s14 = scalar_lea.smem %s0, 7
  %s15 = sld [smem:[%s14]]
  %s16 = scalar_lea.smem %s0, 8
  %s17 = sld [smem:[%s16]]
  %s18 = scalar_lea.smem %s0, 9
  %s19 = sld [smem:[%s18]]
  %s20 = scalar_lea.smem %s0, 10
  %s21 = sld [smem:[%s20]]
  %s22 = scalar_lea.smem %s0, 11
  %s23 = sld [smem:[%s22]]
  %s24 = scalar_lea.smem %s0, 12
  %s25 = sld [smem:[%s24]]
  %s26 = scalar_lea.smem %s0, 13
  %s27 = sld [smem:[%s26]]
  %s28 = scalar_lea.smem %s0, 14
  %s29 = sld [smem:[%s28]]
  %s30 = scalar_lea.smem %s0, 15
  %s31 = sld [smem:[%s30]]
  %s32 = scalar_lea.smem %s0, 16
  %s33 = sld [smem:[%s32]]
  %s34 = scalar_lea.smem %s0, 17
  %s35 = sld [smem:[%s34]]
  %s36 = scalar_lea.smem %s0, 18
  %s37 = sld [smem:[%s36]]
  %s38 = scalar_lea.smem %s0, 19
  %s39 = sld [smem:[%s38]]
  %s40 = scalar_lea.smem %s0, 20
  %s41 = sld [smem:[%s40]]
  %s42 = scalar_lea.smem %s0, 21
  %s43 = sld [smem:[%s42]]
  %s44 = scalar_lea.smem %s0, 22
  %s45 = sld [smem:[%s44]]
  %s46 = scalar_lea.smem %s0, 23
  %s47 = sld [smem:[%s46]]
  %s48 = scalar_lea.smem %s0, 24
  %s49 = sld [smem:[%s48]]
  %s50 = scalar_lea.smem %s0, 25
  %s51 = sld [smem:[%s50]]
  %s52 = scalar_lea.smem %s0, 26
  %s53 = sld [smem:[%s52]]
  %s54 = scalar_lea.smem %s0, 27
  %s55 = sld [smem:[%s54]]
  %s56 = scalar_lea.smem %s0, 28
  %s57 = sld [smem:[%s56]]
  %s58 = scalar_lea.smem %s0, 29
  %s59 = sld [smem:[%s58]]
  %60 = xla_tuple %s57, %s59
  %s61 = sld [smem:[#allocation0]]
  $region153: #{forward.1} parent=0
    _
  %s63 = ssub.s32 1, %s61
  %s64 = scalar_select 0, %s63, %s61
  loop: start=0, step=1, limit=4
  $region2: #{forward.1} parent=0 // loop_pre_header
    _
  $region3: #{forward.1} parent=0 // loop_header
    %s66 = sphi 0, %s70
    %p67 = scmp.ge.s32.totalorder %s66, 4
    %s76 = sphi 0, %s78
    %s79 = sphi 0, %s76
    %s80 = sphi 0, %s79
    %s96 = sphi 0, %s80
    %s102 = sphi 0, %s104
    %s105 = sphi 0, %s102
    %s106 = sphi 0, %s105
    %s122 = sphi 0, %s106
    %s128 = sphi 0, %s130
    %s131 = sphi 0, %s128
    %s132 = sphi 0, %s131
    %s148 = sphi 0, %s132
    %s154 = sphi 0, %s156
    %s157 = sphi 0, %s154
    %s158 = sphi 0, %s157
    %s174 = sphi 0, %s158
    %s178 = sphi 0, %s178
    %s180 = sphi 0, %s178
    %s181 = sphi 0, %s180
    %s195 = sphi 0, %s181
    %s199 = sphi 0, %s199
    %s201 = sphi 0, %s199
    %s202 = sphi 0, %s201
    %s216 = sphi 0, %s202
    %s220 = sphi 0, %s220
    %s222 = sphi 0, %s220
    %s223 = sphi 0, %s222
    %s237 = sphi 0, %s223
    %s241 = sphi 0, %s241
    %s243 = sphi 0, %s241
    %s244 = sphi 0, %s243
    %s258 = sphi 0, %s244
    %s262 = sphi 0, %s262
    %s264 = sphi 0, %s262
    %s265 = sphi 0, %s264
    %s279 = sphi 0, %s265
    %s283 = sphi 0, %s283
    %s285 = sphi 0, %s283
    %s286 = sphi 0, %s285
    %s300 = sphi 0, %s286
    %s304 = sphi 0, %s304
    %s306 = sphi 0, %s304
    %s307 = sphi 0, %s306
    %s321 = sphi 0, %s307
    %s325 = sphi 0, %s325
    %s327 = sphi 0, %s325
    %s328 = sphi 0, %s327
    %s342 = sphi 0, %s328
    %s346 = sphi 0, %s346
    %s348 = sphi 0, %s346
    %s349 = sphi 0, %s348
    %s363 = sphi 0, %s349
    %s367 = sphi 0, %s367
    %s369 = sphi 0, %s367
    %s370 = sphi 0, %s369
    %s384 = sphi 0, %s370
    %s388 = sphi 0, %s388
    %s390 = sphi 0, %s388
    %s391 = sphi 0, %s390
    %s405 = sphi 0, %s391
    %s409 = sphi 0, %s409
    %s411 = sphi 0, %s409
    %s412 = sphi 0, %s411
    %s426 = sphi 0, %s412
    %s430 = sphi 0, %s430
    %s432 = sphi 0, %s430
    %s433 = sphi 0, %s432
    %s447 = sphi 0, %s433
    %s451 = sphi 0, %s451
    %s453 = sphi 0, %s451
    %s454 = sphi 0, %s453
    %s468 = sphi 0, %s454
    %s472 = sphi 0, %s472
    %s474 = sphi 0, %s472
    %s475 = sphi 0, %s474
    %s489 = sphi 0, %s475
    %s493 = sphi 0, %s493
    %s495 = sphi 0, %s493
    %s496 = sphi 0, %s495
    %s510 = sphi 0, %s496
    %s514 = sphi 0, %s514
    %s516 = sphi 0, %s514
    %s517 = sphi 0, %s516
    %s531 = sphi 0, %s517
    %s535 = sphi 0, %s535
    %s537 = sphi 0, %s535
    %s538 = sphi 0, %s537
    %s552 = sphi 0, %s538
    %s556 = sphi 0, %s556
    %s558 = sphi 0, %s556
    %s559 = sphi 0, %s558
    %s573 = sphi 0, %s559
    %s577 = sphi 0, %s577
    %s579 = sphi 0, %s577
    %s580 = sphi 0, %s579
    %s594 = sphi 0, %s580
    %s598 = sphi 0, %s598
    %s600 = sphi 0, %s598
    %s601 = sphi 0, %s600
    %s615 = sphi 0, %s601
    %s619 = sphi 0, %s619
    %s621 = sphi 0, %s619
    %s622 = sphi 0, %s621
    %s636 = sphi 0, %s622
    %s640 = sphi 0, %s640
    %s642 = sphi 0, %s640
    %s643 = sphi 0, %s642
    %s657 = sphi 0, %s643
    %s661 = sphi 0, %s661
    %s663 = sphi 0, %s661
    %s664 = sphi 0, %s663
    %s678 = sphi 0, %s664
    %s684 = sphi 0, %s686
    %s687 = sphi 0, %s684
    %s688 = sphi 0, %s687
    %s704 = sphi 0, %s688
    %s710 = sphi 0, %s712
    %s713 = sphi 0, %s710
    %s714 = sphi 0, %s713
    %s730 = sphi 0, %s714
  $region4: #{forward.1} parent=0 // loop_header_branch
    %69 = sbr.rel (%p67) target = $region8
  $region5: #{forward.1} parent=0 // loop_body
    %s71 = ssub.s32 %s66, 1
    %s72 = ssub.s32 %s66, 2
    %s73 = sadd.s32 %s66, 1
    %s74 = ssub.s32 %s66, %s73
    %p75 = scmp.eq.s32.totalorder %s74, 0
    %s77 = sadd.s32 %s76, 1
    %s78 = scalar_select %p75, %s76, %s77
    %p81 = pneg %p75
    %p82 = scmp.eq.s32.totalorder %s66, 1
    %p83 = por %p81, %p82
    %p84 = scmp.ne.s32.totalorder %s76, %s79
    %p85 = scmp.eq.s32.totalorder %s66, 0
    %p86 = por %p84, %p85
    %p87 = scmp.ne.s32.totalorder %s76, %s79
    %p88 = scmp.eq.s32.totalorder %s71, 1
    %p89 = por %p87, %p88
    %p90 = scmp.ne.s32.totalorder %s79, %s80
    %p91 = scmp.eq.s32.totalorder %s71, 0
    %p92 = por %p90, %p91
    %p93 = scmp.ne.s32.totalorder %s79, %s80
    %p94 = scmp.eq.s32.totalorder %s72, 1
    %p95 = por %p93, %p94
    %p97 = scmp.ne.s32.totalorder %s80, %s96
    %p98 = scmp.eq.s32.totalorder %s72, 0
    %p99 = por %p97, %p98
    %s100 = ssub.s32 %s66, %s73
    %p101 = scmp.eq.s32.totalorder %s100, 0
    %s103 = sadd.s32 %s102, 1
    %s104 = scalar_select %p101, %s102, %s103
    %p107 = pneg %p101
    %p108 = scmp.eq.s32.totalorder %s66, 1
    %p109 = por %p107, %p108
    %p110 = scmp.ne.s32.totalorder %s102, %s105
    %p111 = scmp.eq.s32.totalorder %s66, 0
    %p112 = por %p110, %p111
    %p113 = scmp.ne.s32.totalorder %s102, %s105
    %p114 = scmp.eq.s32.totalorder %s71, 1
    %p115 = por %p113, %p114
    %p116 = scmp.ne.s32.totalorder %s105, %s106
    %p117 = scmp.eq.s32.totalorder %s71, 0
    %p118 = por %p116, %p117
    %p119 = scmp.ne.s32.totalorder %s105, %s106
    %p120 = scmp.eq.s32.totalorder %s72, 1
    %p121 = por %p119, %p120
    %p123 = scmp.ne.s32.totalorder %s106, %s122
    %p124 = scmp.eq.s32.totalorder %s72, 0
    %p125 = por %p123, %p124
    %s126 = ssub.s32 %s66, %s73
    %p127 = scmp.eq.s32.totalorder %s126, 0
    %s129 = sadd.s32 %s128, 1
    %s130 = scalar_select %p127, %s128, %s129
    %p133 = pneg %p127
    %p134 = scmp.eq.s32.totalorder %s66, 1
    %p135 = por %p133, %p134
    %p136 = scmp.ne.s32.totalorder %s128, %s131
    %p137 = scmp.eq.s32.totalorder %s66, 0
    %p138 = por %p136, %p137
    %p139 = scmp.ne.s32.totalorder %s128, %s131
    %p140 = scmp.eq.s32.totalorder %s71, 1
    %p141 = por %p139, %p140
    %p142 = scmp.ne.s32.totalorder %s131, %s132
    %p143 = scmp.eq.s32.totalorder %s71, 0
    %p144 = por %p142, %p143
    %p145 = scmp.ne.s32.totalorder %s131, %s132
    %p146 = scmp.eq.s32.totalorder %s72, 1
    %p147 = por %p145, %p146
    %p149 = scmp.ne.s32.totalorder %s132, %s148
    %p150 = scmp.eq.s32.totalorder %s72, 0
    %p151 = por %p149, %p150
    %s152 = ssub.s32 %s66, %s73
    %p153 = scmp.eq.s32.totalorder %s152, 0
    %s155 = sadd.s32 %s154, 1
    %s156 = scalar_select %p153, %s154, %s155
    %p159 = pneg %p153
    %p160 = scmp.eq.s32.totalorder %s66, 1
    %p161 = por %p159, %p160
    %p162 = scmp.ne.s32.totalorder %s154, %s157
    %p163 = scmp.eq.s32.totalorder %s66, 0
    %p164 = por %p162, %p163
    %p165 = scmp.ne.s32.totalorder %s154, %s157
    %p166 = scmp.eq.s32.totalorder %s71, 1
    %p167 = por %p165, %p166
    %p168 = scmp.ne.s32.totalorder %s157, %s158
    %p169 = scmp.eq.s32.totalorder %s71, 0
    %p170 = por %p168, %p169
    %p171 = scmp.ne.s32.totalorder %s157, %s158
    %p172 = scmp.eq.s32.totalorder %s72, 1
    %p173 = por %p171, %p172
    %p175 = scmp.ne.s32.totalorder %s158, %s174
    %p176 = scmp.eq.s32.totalorder %s72, 0
    %p177 = por %p175, %p176
    %s179 = sadd.s32 %s178, 1
    %p182 = scmp.eq.s32.totalorder %s66, 1
    %p183 = scmp.ne.s32.totalorder %s178, %s180
    %p184 = scmp.eq.s32.totalorder %s66, 0
    %p185 = por %p183, %p184
    %p186 = scmp.ne.s32.totalorder %s178, %s180
    %p187 = scmp.eq.s32.totalorder %s71, 1
    %p188 = por %p186, %p187
    %p189 = scmp.ne.s32.totalorder %s180, %s181
    %p190 = scmp.eq.s32.totalorder %s71, 0
    %p191 = por %p189, %p190
    %p192 = scmp.ne.s32.totalorder %s180, %s181
    %p193 = scmp.eq.s32.totalorder %s72, 1
    %p194 = por %p192, %p193
    %p196 = scmp.ne.s32.totalorder %s181, %s195
    %p197 = scmp.eq.s32.totalorder %s72, 0
    %p198 = por %p196, %p197
    %s200 = sadd.s32 %s199, 1
    %p203 = scmp.eq.s32.totalorder %s66, 1
    %p204 = scmp.ne.s32.totalorder %s199, %s201
    %p205 = scmp.eq.s32.totalorder %s66, 0
    %p206 = por %p204, %p205
    %p207 = scmp.ne.s32.totalorder %s199, %s201
    %p208 = scmp.eq.s32.totalorder %s71, 1
    %p209 = por %p207, %p208
    %p210 = scmp.ne.s32.totalorder %s201, %s202
    %p211 = scmp.eq.s32.totalorder %s71, 0
    %p212 = por %p210, %p211
    %p213 = scmp.ne.s32.totalorder %s201, %s202
    %p214 = scmp.eq.s32.totalorder %s72, 1
    %p215 = por %p213, %p214
    %p217 = scmp.ne.s32.totalorder %s202, %s216
    %p218 = scmp.eq.s32.totalorder %s72, 0
    %p219 = por %p217, %p218
    %s221 = sadd.s32 %s220, 1
    %p224 = scmp.eq.s32.totalorder %s66, 1
    %p225 = scmp.ne.s32.totalorder %s220, %s222
    %p226 = scmp.eq.s32.totalorder %s66, 0
    %p227 = por %p225, %p226
    %p228 = scmp.ne.s32.totalorder %s220, %s222
    %p229 = scmp.eq.s32.totalorder %s71, 1
    %p230 = por %p228, %p229
    %p231 = scmp.ne.s32.totalorder %s222, %s223
    %p232 = scmp.eq.s32.totalorder %s71, 0
    %p233 = por %p231, %p232
    %p234 = scmp.ne.s32.totalorder %s222, %s223
    %p235 = scmp.eq.s32.totalorder %s72, 1
    %p236 = por %p234, %p235
    %p238 = scmp.ne.s32.totalorder %s223, %s237
    %p239 = scmp.eq.s32.totalorder %s72, 0
    %p240 = por %p238, %p239
    %s242 = sadd.s32 %s241, 1
    %p245 = scmp.eq.s32.totalorder %s66, 1
    %p246 = scmp.ne.s32.totalorder %s241, %s243
    %p247 = scmp.eq.s32.totalorder %s66, 0
    %p248 = por %p246, %p247
    %p249 = scmp.ne.s32.totalorder %s241, %s243
    %p250 = scmp.eq.s32.totalorder %s71, 1
    %p251 = por %p249, %p250
    %p252 = scmp.ne.s32.totalorder %s243, %s244
    %p253 = scmp.eq.s32.totalorder %s71, 0
    %p254 = por %p252, %p253
    %p255 = scmp.ne.s32.totalorder %s243, %s244
    %p256 = scmp.eq.s32.totalorder %s72, 1
    %p257 = por %p255, %p256
    %p259 = scmp.ne.s32.totalorder %s244, %s258
    %p260 = scmp.eq.s32.totalorder %s72, 0
    %p261 = por %p259, %p260
    %s263 = sadd.s32 %s262, 1
    %p266 = scmp.eq.s32.totalorder %s66, 1
    %p267 = scmp.ne.s32.totalorder %s262, %s264
    %p268 = scmp.eq.s32.totalorder %s66, 0
    %p269 = por %p267, %p268
    %p270 = scmp.ne.s32.totalorder %s262, %s264
    %p271 = scmp.eq.s32.totalorder %s71, 1
    %p272 = por %p270, %p271
    %p273 = scmp.ne.s32.totalorder %s264, %s265
    %p274 = scmp.eq.s32.totalorder %s71, 0
    %p275 = por %p273, %p274
    %p276 = scmp.ne.s32.totalorder %s264, %s265
    %p277 = scmp.eq.s32.totalorder %s72, 1
    %p278 = por %p276, %p277
    %p280 = scmp.ne.s32.totalorder %s265, %s279
    %p281 = scmp.eq.s32.totalorder %s72, 0
    %p282 = por %p280, %p281
    %s284 = sadd.s32 %s283, 1
    %p287 = scmp.eq.s32.totalorder %s66, 1
    %p288 = scmp.ne.s32.totalorder %s283, %s285
    %p289 = scmp.eq.s32.totalorder %s66, 0
    %p290 = por %p288, %p289
    %p291 = scmp.ne.s32.totalorder %s283, %s285
    %p292 = scmp.eq.s32.totalorder %s71, 1
    %p293 = por %p291, %p292
    %p294 = scmp.ne.s32.totalorder %s285, %s286
    %p295 = scmp.eq.s32.totalorder %s71, 0
    %p296 = por %p294, %p295
    %p297 = scmp.ne.s32.totalorder %s285, %s286
    %p298 = scmp.eq.s32.totalorder %s72, 1
    %p299 = por %p297, %p298
    %p301 = scmp.ne.s32.totalorder %s286, %s300
    %p302 = scmp.eq.s32.totalorder %s72, 0
    %p303 = por %p301, %p302
    %s305 = sadd.s32 %s304, 1
    %p308 = scmp.eq.s32.totalorder %s66, 1
    %p309 = scmp.ne.s32.totalorder %s304, %s306
    %p310 = scmp.eq.s32.totalorder %s66, 0
    %p311 = por %p309, %p310
    %p312 = scmp.ne.s32.totalorder %s304, %s306
    %p313 = scmp.eq.s32.totalorder %s71, 1
    %p314 = por %p312, %p313
    %p315 = scmp.ne.s32.totalorder %s306, %s307
    %p316 = scmp.eq.s32.totalorder %s71, 0
    %p317 = por %p315, %p316
    %p318 = scmp.ne.s32.totalorder %s306, %s307
    %p319 = scmp.eq.s32.totalorder %s72, 1
    %p320 = por %p318, %p319
    %p322 = scmp.ne.s32.totalorder %s307, %s321
    %p323 = scmp.eq.s32.totalorder %s72, 0
    %p324 = por %p322, %p323
    %s326 = sadd.s32 %s325, 1
    %p329 = scmp.eq.s32.totalorder %s66, 1
    %p330 = scmp.ne.s32.totalorder %s325, %s327
    %p331 = scmp.eq.s32.totalorder %s66, 0
    %p332 = por %p330, %p331
    %p333 = scmp.ne.s32.totalorder %s325, %s327
    %p334 = scmp.eq.s32.totalorder %s71, 1
    %p335 = por %p333, %p334
    %p336 = scmp.ne.s32.totalorder %s327, %s328
    %p337 = scmp.eq.s32.totalorder %s71, 0
    %p338 = por %p336, %p337
    %p339 = scmp.ne.s32.totalorder %s327, %s328
    %p340 = scmp.eq.s32.totalorder %s72, 1
    %p341 = por %p339, %p340
    %p343 = scmp.ne.s32.totalorder %s328, %s342
    %p344 = scmp.eq.s32.totalorder %s72, 0
    %p345 = por %p343, %p344
    %s347 = sadd.s32 %s346, 1
    %p350 = scmp.eq.s32.totalorder %s66, 1
    %p351 = scmp.ne.s32.totalorder %s346, %s348
    %p352 = scmp.eq.s32.totalorder %s66, 0
    %p353 = por %p351, %p352
    %p354 = scmp.ne.s32.totalorder %s346, %s348
    %p355 = scmp.eq.s32.totalorder %s71, 1
    %p356 = por %p354, %p355
    %p357 = scmp.ne.s32.totalorder %s348, %s349
    %p358 = scmp.eq.s32.totalorder %s71, 0
    %p359 = por %p357, %p358
    %p360 = scmp.ne.s32.totalorder %s348, %s349
    %p361 = scmp.eq.s32.totalorder %s72, 1
    %p362 = por %p360, %p361
    %p364 = scmp.ne.s32.totalorder %s349, %s363
    %p365 = scmp.eq.s32.totalorder %s72, 0
    %p366 = por %p364, %p365
    %s368 = sadd.s32 %s367, 1
    %p371 = scmp.eq.s32.totalorder %s66, 1
    %p372 = scmp.ne.s32.totalorder %s367, %s369
    %p373 = scmp.eq.s32.totalorder %s66, 0
    %p374 = por %p372, %p373
    %p375 = scmp.ne.s32.totalorder %s367, %s369
    %p376 = scmp.eq.s32.totalorder %s71, 1
    %p377 = por %p375, %p376
    %p378 = scmp.ne.s32.totalorder %s369, %s370
    %p379 = scmp.eq.s32.totalorder %s71, 0
    %p380 = por %p378, %p379
    %p381 = scmp.ne.s32.totalorder %s369, %s370
    %p382 = scmp.eq.s32.totalorder %s72, 1
    %p383 = por %p381, %p382
    %p385 = scmp.ne.s32.totalorder %s370, %s384
    %p386 = scmp.eq.s32.totalorder %s72, 0
    %p387 = por %p385, %p386
    %s389 = sadd.s32 %s388, 1
    %p392 = scmp.eq.s32.totalorder %s66, 1
    %p393 = scmp.ne.s32.totalorder %s388, %s390
    %p394 = scmp.eq.s32.totalorder %s66, 0
    %p395 = por %p393, %p394
    %p396 = scmp.ne.s32.totalorder %s388, %s390
    %p397 = scmp.eq.s32.totalorder %s71, 1
    %p398 = por %p396, %p397
    %p399 = scmp.ne.s32.totalorder %s390, %s391
    %p400 = scmp.eq.s32.totalorder %s71, 0
    %p401 = por %p399, %p400
    %p402 = scmp.ne.s32.totalorder %s390, %s391
    %p403 = scmp.eq.s32.totalorder %s72, 1
    %p404 = por %p402, %p403
    %p406 = scmp.ne.s32.totalorder %s391, %s405
    %p407 = scmp.eq.s32.totalorder %s72, 0
    %p408 = por %p406, %p407
    %s410 = sadd.s32 %s409, 1
    %p413 = scmp.eq.s32.totalorder %s66, 1
    %p414 = scmp.ne.s32.totalorder %s409, %s411
    %p415 = scmp.eq.s32.totalorder %s66, 0
    %p416 = por %p414, %p415
    %p417 = scmp.ne.s32.totalorder %s409, %s411
    %p418 = scmp.eq.s32.totalorder %s71, 1
    %p419 = por %p417, %p418
    %p420 = scmp.ne.s32.totalorder %s411, %s412
    %p421 = scmp.eq.s32.totalorder %s71, 0
    %p422 = por %p420, %p421
    %p423 = scmp.ne.s32.totalorder %s411, %s412
    %p424 = scmp.eq.s32.totalorder %s72, 1
    %p425 = por %p423, %p424
    %p427 = scmp.ne.s32.totalorder %s412, %s426
    %p428 = scmp.eq.s32.totalorder %s72, 0
    %p429 = por %p427, %p428
    %s431 = sadd.s32 %s430, 1
    %p434 = scmp.eq.s32.totalorder %s66, 1
    %p435 = scmp.ne.s32.totalorder %s430, %s432
    %p436 = scmp.eq.s32.totalorder %s66, 0
    %p437 = por %p435, %p436
    %p438 = scmp.ne.s32.totalorder %s430, %s432
    %p439 = scmp.eq.s32.totalorder %s71, 1
    %p440 = por %p438, %p439
    %p441 = scmp.ne.s32.totalorder %s432, %s433
    %p442 = scmp.eq.s32.totalorder %s71, 0
    %p443 = por %p441, %p442
    %p444 = scmp.ne.s32.totalorder %s432, %s433
    %p445 = scmp.eq.s32.totalorder %s72, 1
    %p446 = por %p444, %p445
    %p448 = scmp.ne.s32.totalorder %s433, %s447
    %p449 = scmp.eq.s32.totalorder %s72, 0
    %p450 = por %p448, %p449
    %s452 = sadd.s32 %s451, 1
    %p455 = scmp.eq.s32.totalorder %s66, 1
    %p456 = scmp.ne.s32.totalorder %s451, %s453
    %p457 = scmp.eq.s32.totalorder %s66, 0
    %p458 = por %p456, %p457
    %p459 = scmp.ne.s32.totalorder %s451, %s453
    %p460 = scmp.eq.s32.totalorder %s71, 1
    %p461 = por %p459, %p460
    %p462 = scmp.ne.s32.totalorder %s453, %s454
    %p463 = scmp.eq.s32.totalorder %s71, 0
    %p464 = por %p462, %p463
    %p465 = scmp.ne.s32.totalorder %s453, %s454
    %p466 = scmp.eq.s32.totalorder %s72, 1
    %p467 = por %p465, %p466
    %p469 = scmp.ne.s32.totalorder %s454, %s468
    %p470 = scmp.eq.s32.totalorder %s72, 0
    %p471 = por %p469, %p470
    %s473 = sadd.s32 %s472, 1
    %p476 = scmp.eq.s32.totalorder %s66, 1
    %p477 = scmp.ne.s32.totalorder %s472, %s474
    %p478 = scmp.eq.s32.totalorder %s66, 0
    %p479 = por %p477, %p478
    %p480 = scmp.ne.s32.totalorder %s472, %s474
    %p481 = scmp.eq.s32.totalorder %s71, 1
    %p482 = por %p480, %p481
    %p483 = scmp.ne.s32.totalorder %s474, %s475
    %p484 = scmp.eq.s32.totalorder %s71, 0
    %p485 = por %p483, %p484
    %p486 = scmp.ne.s32.totalorder %s474, %s475
    %p487 = scmp.eq.s32.totalorder %s72, 1
    %p488 = por %p486, %p487
    %p490 = scmp.ne.s32.totalorder %s475, %s489
    %p491 = scmp.eq.s32.totalorder %s72, 0
    %p492 = por %p490, %p491
    %s494 = sadd.s32 %s493, 1
    %p497 = scmp.eq.s32.totalorder %s66, 1
    %p498 = scmp.ne.s32.totalorder %s493, %s495
    %p499 = scmp.eq.s32.totalorder %s66, 0
    %p500 = por %p498, %p499
    %p501 = scmp.ne.s32.totalorder %s493, %s495
    %p502 = scmp.eq.s32.totalorder %s71, 1
    %p503 = por %p501, %p502
    %p504 = scmp.ne.s32.totalorder %s495, %s496
    %p505 = scmp.eq.s32.totalorder %s71, 0
    %p506 = por %p504, %p505
    %p507 = scmp.ne.s32.totalorder %s495, %s496
    %p508 = scmp.eq.s32.totalorder %s72, 1
    %p509 = por %p507, %p508
    %p511 = scmp.ne.s32.totalorder %s496, %s510
    %p512 = scmp.eq.s32.totalorder %s72, 0
    %p513 = por %p511, %p512
    %s515 = sadd.s32 %s514, 1
    %p518 = scmp.eq.s32.totalorder %s66, 1
    %p519 = scmp.ne.s32.totalorder %s514, %s516
    %p520 = scmp.eq.s32.totalorder %s66, 0
    %p521 = por %p519, %p520
    %p522 = scmp.ne.s32.totalorder %s514, %s516
    %p523 = scmp.eq.s32.totalorder %s71, 1
    %p524 = por %p522, %p523
    %p525 = scmp.ne.s32.totalorder %s516, %s517
    %p526 = scmp.eq.s32.totalorder %s71, 0
    %p527 = por %p525, %p526
    %p528 = scmp.ne.s32.totalorder %s516, %s517
    %p529 = scmp.eq.s32.totalorder %s72, 1
    %p530 = por %p528, %p529
    %p532 = scmp.ne.s32.totalorder %s517, %s531
    %p533 = scmp.eq.s32.totalorder %s72, 0
    %p534 = por %p532, %p533
    %s536 = sadd.s32 %s535, 1
    %p539 = scmp.eq.s32.totalorder %s66, 1
    %p540 = scmp.ne.s32.totalorder %s535, %s537
    %p541 = scmp.eq.s32.totalorder %s66, 0
    %p542 = por %p540, %p541
    %p543 = scmp.ne.s32.totalorder %s535, %s537
    %p544 = scmp.eq.s32.totalorder %s71, 1
    %p545 = por %p543, %p544
    %p546 = scmp.ne.s32.totalorder %s537, %s538
    %p547 = scmp.eq.s32.totalorder %s71, 0
    %p548 = por %p546, %p547
    %p549 = scmp.ne.s32.totalorder %s537, %s538
    %p550 = scmp.eq.s32.totalorder %s72, 1
    %p551 = por %p549, %p550
    %p553 = scmp.ne.s32.totalorder %s538, %s552
    %p554 = scmp.eq.s32.totalorder %s72, 0
    %p555 = por %p553, %p554
    %s557 = sadd.s32 %s556, 1
    %p560 = scmp.eq.s32.totalorder %s66, 1
    %p561 = scmp.ne.s32.totalorder %s556, %s558
    %p562 = scmp.eq.s32.totalorder %s66, 0
    %p563 = por %p561, %p562
    %p564 = scmp.ne.s32.totalorder %s556, %s558
    %p565 = scmp.eq.s32.totalorder %s71, 1
    %p566 = por %p564, %p565
    %p567 = scmp.ne.s32.totalorder %s558, %s559
    %p568 = scmp.eq.s32.totalorder %s71, 0
    %p569 = por %p567, %p568
    %p570 = scmp.ne.s32.totalorder %s558, %s559
    %p571 = scmp.eq.s32.totalorder %s72, 1
    %p572 = por %p570, %p571
    %p574 = scmp.ne.s32.totalorder %s559, %s573
    %p575 = scmp.eq.s32.totalorder %s72, 0
    %p576 = por %p574, %p575
    %s578 = sadd.s32 %s577, 1
    %p581 = scmp.eq.s32.totalorder %s66, 1
    %p582 = scmp.ne.s32.totalorder %s577, %s579
    %p583 = scmp.eq.s32.totalorder %s66, 0
    %p584 = por %p582, %p583
    %p585 = scmp.ne.s32.totalorder %s577, %s579
    %p586 = scmp.eq.s32.totalorder %s71, 1
    %p587 = por %p585, %p586
    %p588 = scmp.ne.s32.totalorder %s579, %s580
    %p589 = scmp.eq.s32.totalorder %s71, 0
    %p590 = por %p588, %p589
    %p591 = scmp.ne.s32.totalorder %s579, %s580
    %p592 = scmp.eq.s32.totalorder %s72, 1
    %p593 = por %p591, %p592
    %p595 = scmp.ne.s32.totalorder %s580, %s594
    %p596 = scmp.eq.s32.totalorder %s72, 0
    %p597 = por %p595, %p596
    %s599 = sadd.s32 %s598, 1
    %p602 = scmp.eq.s32.totalorder %s66, 1
    %p603 = scmp.ne.s32.totalorder %s598, %s600
    %p604 = scmp.eq.s32.totalorder %s66, 0
    %p605 = por %p603, %p604
    %p606 = scmp.ne.s32.totalorder %s598, %s600
    %p607 = scmp.eq.s32.totalorder %s71, 1
    %p608 = por %p606, %p607
    %p609 = scmp.ne.s32.totalorder %s600, %s601
    %p610 = scmp.eq.s32.totalorder %s71, 0
    %p611 = por %p609, %p610
    %p612 = scmp.ne.s32.totalorder %s600, %s601
    %p613 = scmp.eq.s32.totalorder %s72, 1
    %p614 = por %p612, %p613
    %p616 = scmp.ne.s32.totalorder %s601, %s615
    %p617 = scmp.eq.s32.totalorder %s72, 0
    %p618 = por %p616, %p617
    %s620 = sadd.s32 %s619, 1
    %p623 = scmp.eq.s32.totalorder %s66, 1
    %p624 = scmp.ne.s32.totalorder %s619, %s621
    %p625 = scmp.eq.s32.totalorder %s66, 0
    %p626 = por %p624, %p625
    %p627 = scmp.ne.s32.totalorder %s619, %s621
    %p628 = scmp.eq.s32.totalorder %s71, 1
    %p629 = por %p627, %p628
    %p630 = scmp.ne.s32.totalorder %s621, %s622
    %p631 = scmp.eq.s32.totalorder %s71, 0
    %p632 = por %p630, %p631
    %p633 = scmp.ne.s32.totalorder %s621, %s622
    %p634 = scmp.eq.s32.totalorder %s72, 1
    %p635 = por %p633, %p634
    %p637 = scmp.ne.s32.totalorder %s622, %s636
    %p638 = scmp.eq.s32.totalorder %s72, 0
    %p639 = por %p637, %p638
    %s641 = sadd.s32 %s640, 1
    %p644 = scmp.eq.s32.totalorder %s66, 1
    %p645 = scmp.ne.s32.totalorder %s640, %s642
    %p646 = scmp.eq.s32.totalorder %s66, 0
    %p647 = por %p645, %p646
    %p648 = scmp.ne.s32.totalorder %s640, %s642
    %p649 = scmp.eq.s32.totalorder %s71, 1
    %p650 = por %p648, %p649
    %p651 = scmp.ne.s32.totalorder %s642, %s643
    %p652 = scmp.eq.s32.totalorder %s71, 0
    %p653 = por %p651, %p652
    %p654 = scmp.ne.s32.totalorder %s642, %s643
    %p655 = scmp.eq.s32.totalorder %s72, 1
    %p656 = por %p654, %p655
    %p658 = scmp.ne.s32.totalorder %s643, %s657
    %p659 = scmp.eq.s32.totalorder %s72, 0
    %p660 = por %p658, %p659
    %s662 = sadd.s32 %s661, 1
    %p665 = scmp.eq.s32.totalorder %s66, 1
    %p666 = scmp.ne.s32.totalorder %s661, %s663
    %p667 = scmp.eq.s32.totalorder %s66, 0
    %p668 = por %p666, %p667
    %p669 = scmp.ne.s32.totalorder %s661, %s663
    %p670 = scmp.eq.s32.totalorder %s71, 1
    %p671 = por %p669, %p670
    %p672 = scmp.ne.s32.totalorder %s663, %s664
    %p673 = scmp.eq.s32.totalorder %s71, 0
    %p674 = por %p672, %p673
    %p675 = scmp.ne.s32.totalorder %s663, %s664
    %p676 = scmp.eq.s32.totalorder %s72, 1
    %p677 = por %p675, %p676
    %p679 = scmp.ne.s32.totalorder %s664, %s678
    %p680 = scmp.eq.s32.totalorder %s72, 0
    %p681 = por %p679, %p680
    %s682 = ssub.s32 %s66, %s73
    %p683 = scmp.eq.s32.totalorder %s682, 0
    %s685 = sadd.s32 %s684, 1
    %s686 = scalar_select %p683, %s684, %s685
    %p689 = pneg %p683
    %p690 = scmp.eq.s32.totalorder %s66, 1
    %p691 = por %p689, %p690
    %p692 = scmp.ne.s32.totalorder %s684, %s687
    %p693 = scmp.eq.s32.totalorder %s66, 0
    %p694 = por %p692, %p693
    %p695 = scmp.ne.s32.totalorder %s684, %s687
    %p696 = scmp.eq.s32.totalorder %s71, 1
    %p697 = por %p695, %p696
    %p698 = scmp.ne.s32.totalorder %s687, %s688
    %p699 = scmp.eq.s32.totalorder %s71, 0
    %p700 = por %p698, %p699
    %p701 = scmp.ne.s32.totalorder %s687, %s688
    %p702 = scmp.eq.s32.totalorder %s72, 1
    %p703 = por %p701, %p702
    %p705 = scmp.ne.s32.totalorder %s688, %s704
    %p706 = scmp.eq.s32.totalorder %s72, 0
    %p707 = por %p705, %p706
    %s708 = ssub.s32 %s66, %s73
    %p709 = scmp.eq.s32.totalorder %s708, 0
    %s711 = sadd.s32 %s710, 1
    %s712 = scalar_select %p709, %s710, %s711
    %p715 = pneg %p709
    %p716 = scmp.eq.s32.totalorder %s66, 1
    %p717 = por %p715, %p716
    %p718 = scmp.ne.s32.totalorder %s710, %s713
    %p719 = scmp.eq.s32.totalorder %s66, 0
    %p720 = por %p718, %p719
    %p721 = scmp.ne.s32.totalorder %s710, %s713
    %p722 = scmp.eq.s32.totalorder %s71, 1
    %p723 = por %p721, %p722
    %p724 = scmp.ne.s32.totalorder %s713, %s714
    %p725 = scmp.eq.s32.totalorder %s71, 0
    %p726 = por %p724, %p725
    %p727 = scmp.ne.s32.totalorder %s713, %s714
    %p728 = scmp.eq.s32.totalorder %s72, 1
    %p729 = por %p727, %p728
    %p731 = scmp.ne.s32.totalorder %s714, %s730
    %p732 = scmp.eq.s32.totalorder %s72, 0
    %p733 = por %p731, %p732
    %p734 = scmp.le.s32.totalorder 1, %s66
    %p735 = scmp.lt.s32.totalorder %s66, 3
    %p736 = pnand %p734, %p735
    %p737 = pneg %p736
    // Predicated region
    $region9: #{forward.1} parent=5 // pred_check
      _
    $region10: #{forward.1} parent=5 // pred_check_branch
      %739 = sbr.rel (%p736) target = $region12
    $region11: #{forward.1} parent=5 // pred_region
      %s740 = ssub.s32 %s66, 1
      // Predicated region
      $region13: #{forward.1} parent=11 // pred_check
        %p741 = pneg %p191
      $region14: #{forward.1} parent=11 // pred_check_branch
        %743 = sbr.rel (%p741) target = $region16
      $region15: #{forward.1} parent=11 // pred_region
        _
      $region16: #{forward.1} parent=11 // pred_fallthru
        _
      // Predicated region
      $region17: #{forward.1} parent=11 // pred_check
        %p744 = pneg %p212
      $region18: #{forward.1} parent=11 // pred_check_branch
        %746 = sbr.rel (%p744) target = $region20
      $region19: #{forward.1} parent=11 // pred_region
        _
      $region20: #{forward.1} parent=11 // pred_fallthru
        _
      // Predicated region
      $region21: #{forward.1} parent=11 // pred_check
        %p747 = pneg %p233
      $region22: #{forward.1} parent=11 // pred_check_branch
        %749 = sbr.rel (%p747) target = $region24
      $region23: #{forward.1} parent=11 // pred_region
        _
      $region24: #{forward.1} parent=11 // pred_fallthru
        _
      // Predicated region
      $region25: #{forward.1} parent=11 // pred_check
        %p750 = pneg %p254
      $region26: #{forward.1} parent=11 // pred_check_branch
        %752 = sbr.rel (%p750) target = $region28
      $region27: #{forward.1} parent=11 // pred_region
        _
      $region28: #{forward.1} parent=11 // pred_fallthru
        _
      // Predicated region
      $region29: #{forward.1} parent=11 // pred_check
        %p753 = pneg %p275
      $region30: #{forward.1} parent=11 // pred_check_branch
        %755 = sbr.rel (%p753) target = $region32
      $region31: #{forward.1} parent=11 // pred_region
        _
      $region32: #{forward.1} parent=11 // pred_fallthru
        _
      // Predicated region
      $region33: #{forward.1} parent=11 // pred_check
        %p756 = pneg %p296
      $region34: #{forward.1} parent=11 // pred_check_branch
        %758 = sbr.rel (%p756) target = $region36
      $region35: #{forward.1} parent=11 // pred_region
        _
      $region36: #{forward.1} parent=11 // pred_fallthru
        _
      // Predicated region
      $region37: #{forward.1} parent=11 // pred_check
        %p759 = pneg %p317
      $region38: #{forward.1} parent=11 // pred_check_branch
        %761 = sbr.rel (%p759) target = $region40
      $region39: #{forward.1} parent=11 // pred_region
        _
      $region40: #{forward.1} parent=11 // pred_fallthru
        _
      // Predicated region
      $region41: #{forward.1} parent=11 // pred_check
        %p762 = pneg %p338
      $region42: #{forward.1} parent=11 // pred_check_branch
        %764 = sbr.rel (%p762) target = $region44
      $region43: #{forward.1} parent=11 // pred_region
        _
      $region44: #{forward.1} parent=11 // pred_fallthru
        _
      // Predicated region
      $region45: #{forward.1} parent=11 // pred_check
        %p765 = pneg %p359
      $region46: #{forward.1} parent=11 // pred_check_branch
        %767 = sbr.rel (%p765) target = $region48
      $region47: #{forward.1} parent=11 // pred_region
        _
      $region48: #{forward.1} parent=11 // pred_fallthru
        _
      // Predicated region
      $region49: #{forward.1} parent=11 // pred_check
        %p768 = pneg %p380
      $region50: #{forward.1} parent=11 // pred_check_branch
        %770 = sbr.rel (%p768) target = $region52
      $region51: #{forward.1} parent=11 // pred_region
        _
      $region52: #{forward.1} parent=11 // pred_fallthru
        _
      // Predicated region
      $region53: #{forward.1} parent=11 // pred_check
        %p771 = pneg %p401
      $region54: #{forward.1} parent=11 // pred_check_branch
        %773 = sbr.rel (%p771) target = $region56
      $region55: #{forward.1} parent=11 // pred_region
        _
      $region56: #{forward.1} parent=11 // pred_fallthru
        _
      // Predicated region
      $region57: #{forward.1} parent=11 // pred_check
        %p774 = pneg %p422
      $region58: #{forward.1} parent=11 // pred_check_branch
        %776 = sbr.rel (%p774) target = $region60
      $region59: #{forward.1} parent=11 // pred_region
        _
      $region60: #{forward.1} parent=11 // pred_fallthru
        _
      // Predicated region
      $region61: #{forward.1} parent=11 // pred_check
        %p777 = pneg %p443
      $region62: #{forward.1} parent=11 // pred_check_branch
        %779 = sbr.rel (%p777) target = $region64
      $region63: #{forward.1} parent=11 // pred_region
        _
      $region64: #{forward.1} parent=11 // pred_fallthru
        _
      // Predicated region
      $region65: #{forward.1} parent=11 // pred_check
        %p780 = pneg %p464
      $region66: #{forward.1} parent=11 // pred_check_branch
        %782 = sbr.rel (%p780) target = $region68
      $region67: #{forward.1} parent=11 // pred_region
        _
      $region68: #{forward.1} parent=11 // pred_fallthru
        _
      // Predicated region
      $region69: #{forward.1} parent=11 // pred_check
        %p783 = pneg %p485
      $region70: #{forward.1} parent=11 // pred_check_branch
        %785 = sbr.rel (%p783) target = $region72
      $region71: #{forward.1} parent=11 // pred_region
        _
      $region72: #{forward.1} parent=11 // pred_fallthru
        _
      // Predicated region
      $region73: #{forward.1} parent=11 // pred_check
        %p786 = pneg %p506
      $region74: #{forward.1} parent=11 // pred_check_branch
        %788 = sbr.rel (%p786) target = $region76
      $region75: #{forward.1} parent=11 // pred_region
        _
      $region76: #{forward.1} parent=11 // pred_fallthru
        _
      // Predicated region
      $region77: #{forward.1} parent=11 // pred_check
        %p789 = pneg %p527
      $region78: #{forward.1} parent=11 // pred_check_branch
        %791 = sbr.rel (%p789) target = $region80
      $region79: #{forward.1} parent=11 // pred_region
        _
      $region80: #{forward.1} parent=11 // pred_fallthru
        _
      // Predicated region
      $region81: #{forward.1} parent=11 // pred_check
        %p792 = pneg %p548
      $region82: #{forward.1} parent=11 // pred_check_branch
        %794 = sbr.rel (%p792) target = $region84
      $region83: #{forward.1} parent=11 // pred_region
        _
      $region84: #{forward.1} parent=11 // pred_fallthru
        _
      // Predicated region
      $region85: #{forward.1} parent=11 // pred_check
        %p795 = pneg %p569
      $region86: #{forward.1} parent=11 // pred_check_branch
        %797 = sbr.rel (%p795) target = $region88
      $region87: #{forward.1} parent=11 // pred_region
        _
      $region88: #{forward.1} parent=11 // pred_fallthru
        _
      // Predicated region
      $region89: #{forward.1} parent=11 // pred_check
        %p798 = pneg %p590
      $region90: #{forward.1} parent=11 // pred_check_branch
        %800 = sbr.rel (%p798) target = $region92
      $region91: #{forward.1} parent=11 // pred_region
        _
      $region92: #{forward.1} parent=11 // pred_fallthru
        _
      // Predicated region
      $region93: #{forward.1} parent=11 // pred_check
        %p801 = pneg %p611
      $region94: #{forward.1} parent=11 // pred_check_branch
        %803 = sbr.rel (%p801) target = $region96
      $region95: #{forward.1} parent=11 // pred_region
        _
      $region96: #{forward.1} parent=11 // pred_fallthru
        _
      // Predicated region
      $region97: #{forward.1} parent=11 // pred_check
        %p804 = pneg %p632
      $region98: #{forward.1} parent=11 // pred_check_branch
        %806 = sbr.rel (%p804) target = $region100
      $region99: #{forward.1} parent=11 // pred_region
        _
      $region100: #{forward.1} parent=11 // pred_fallthru
        _
      // Predicated region
      $region101: #{forward.1} parent=11 // pred_check
        %p807 = pneg %p653
      $region102: #{forward.1} parent=11 // pred_check_branch
        %809 = sbr.rel (%p807) target = $region104
      $region103: #{forward.1} parent=11 // pred_region
        _
      $region104: #{forward.1} parent=11 // pred_fallthru
        _
      // Predicated region
      $region105: #{forward.1} parent=11 // pred_check
        %p810 = pneg %p674
      $region106: #{forward.1} parent=11 // pred_check_branch
        %812 = sbr.rel (%p810) target = $region108
      $region107: #{forward.1} parent=11 // pred_region
        _
      $region108: #{forward.1} parent=11 // pred_fallthru
        _
    $region12: #{forward.1} parent=5 // pred_fallthru
      _
    %p813 = scmp.lt.s32.totalorder %s66, 2
    // Predicated region
    $region109: #{forward.1} parent=5 // pred_check
      %p814 = pneg %p813
    $region110: #{forward.1} parent=5 // pred_check_branch
      %816 = sbr.rel (%p814) target = $region112
    $region111: #{forward.1} parent=5 // pred_region
      // Predicated region
      $region113: #{forward.1} parent=111 // pred_check
        %p817 = pneg %p86
      $region114: #{forward.1} parent=111 // pred_check_branch
        %819 = sbr.rel (%p817) target = $region116
      $region115: #{forward.1} parent=111 // pred_region
        %p820 = scmp.lt.s32.totalorder %s66, 1
        %s821 = scalar_select %p820, %s66, 1
        %s822 = scalar_lea.vmem %s1, %s821
      $region116: #{forward.1} parent=111 // pred_fallthru
        _
      // Predicated region
      $region117: #{forward.1} parent=111 // pred_check
        %p823 = pneg %p112
      $region118: #{forward.1} parent=111 // pred_check_branch
        %825 = sbr.rel (%p823) target = $region120
      $region119: #{forward.1} parent=111 // pred_region
        %p826 = scmp.lt.s32.totalorder %s66, 1
        %s827 = scalar_select %p826, %s66, 1
        %s828 = smul.addr %s827, 2
        %s829 = smul.addr %s828, 8
        %s830 = scalar_lea.vmem %s3, %s829
      $region120: #{forward.1} parent=111 // pred_fallthru
        _
      // Predicated region
      $region121: #{forward.1} parent=111 // pred_check
        %p831 = pneg %p138
      $region122: #{forward.1} parent=111 // pred_check_branch
        %833 = sbr.rel (%p831) target = $region124
      $region123: #{forward.1} parent=111 // pred_region
        %p834 = scmp.lt.s32.totalorder %s66, 1
        %s835 = scalar_select %p834, %s66, 1
        %s836 = scalar_lea.vmem %s5, %s835
      $region124: #{forward.1} parent=111 // pred_fallthru
        _
      // Predicated region
      $region125: #{forward.1} parent=111 // pred_check
        %p837 = pneg %p164
      $region126: #{forward.1} parent=111 // pred_check_branch
        %839 = sbr.rel (%p837) target = $region128
      $region127: #{forward.1} parent=111 // pred_region
        %p840 = scmp.lt.s32.totalorder %s66, 1
        %s841 = scalar_select %p840, %s66, 1
        %s842 = smul.addr %s841, 2
        %s843 = smul.addr %s842, 8
        %s844 = scalar_lea.vmem %s7, %s843
      $region128: #{forward.1} parent=111 // pred_fallthru
        _
    $region112: #{forward.1} parent=5 // pred_fallthru
      _
    %p845 = scmp.le.s32.totalorder 1, %s66
    %p846 = scmp.lt.s32.totalorder %s66, 3
    %p847 = pnand %p845, %p846
    %p848 = pneg %p847
    // Predicated region
    $region129: #{forward.1} parent=5 // pred_check
      _
    $region130: #{forward.1} parent=5 // pred_check_branch
      %850 = sbr.rel (%p847) target = $region132
    $region131: #{forward.1} parent=5 // pred_region
      %s851 = ssub.s32 %s66, 1
      %p852 = scmp.lt.s32.totalorder %s71, 1
      %s853 = scalar_select %p852, %s71, 1
      %s854 = scalar_lea.vmem %s1, %s853
      %p855 = pneg %p92
      %p856 = pneg %p89
      %p857 = scmp.lt.s32.totalorder %s71, 1
      %s858 = scalar_select %p857, %s71, 1
      %s859 = smul.addr %s858, 2
      %s860 = smul.addr %s859, 8
      %s861 = scalar_lea.vmem %s3, %s860
      %p862 = pneg %p118
      %p863 = pneg %p115
      %p864 = scmp.lt.s32.totalorder %s71, 1
      %s865 = scalar_select %p864, %s71, 1
      %s866 = scalar_lea.vmem %s5, %s865
      %p867 = pneg %p144
      %p868 = pneg %p141
      %p869 = scmp.lt.s32.totalorder %s71, 1
      %s870 = scalar_select %p869, %s71, 1
      %s871 = smul.addr %s870, 2
      %s872 = smul.addr %s871, 8
      %s873 = scalar_lea.vmem %s7, %s872
      %p874 = pneg %p170
      %p875 = pneg %p167
      %p876 = pneg %p191
      %p877 = pneg %p188
      %p878 = pneg %p212
      %p879 = pneg %p209
      %p880 = pneg %p233
      %p881 = pneg %p230
      %p882 = pneg %p254
      %p883 = pneg %p251
      %p884 = pneg %p275
      %p885 = pneg %p272
      %p886 = pneg %p296
      %p887 = pneg %p293
      %p888 = pneg %p317
      %p889 = pneg %p314
      %p890 = pneg %p338
      %p891 = pneg %p335
      %p892 = pneg %p359
      %p893 = pneg %p356
      %p894 = pneg %p380
      %p895 = pneg %p377
      %p896 = pneg %p401
      %p897 = pneg %p398
      %p898 = pneg %p422
      %p899 = pneg %p419
      %p900 = pneg %p443
      %p901 = pneg %p440
      %p902 = pneg %p464
      %p903 = pneg %p461
      %p904 = pneg %p485
      %p905 = pneg %p482
      %p906 = pneg %p506
      %p907 = pneg %p503
      %p908 = pneg %p527
      %p909 = pneg %p524
      %p910 = pneg %p548
      %p911 = pneg %p545
      %p912 = pneg %p569
      %p913 = pneg %p566
      %p914 = pneg %p590
      %p915 = pneg %p587
      %p916 = pneg %p611
      %p917 = pneg %p608
      %p918 = pneg %p632
      %p919 = pneg %p629
      %p920 = pneg %p653
      %p921 = pneg %p650
      %p922 = pneg %p674
      %p923 = pneg %p671
      %p924 = pneg %p700
      %p925 = pneg %p697
      %p926 = scmp.lt.s32.totalorder %s71, 1
      %s927 = scalar_select %p926, %s71, 1
      %s928 = smul.addr %s927, 2
      %s929 = smul.addr %s928, 8
      %s930 = scalar_lea.vmem %s57, %s929
      %p931 = pneg %p726
      %p932 = pneg %p723
      %p933 = scmp.lt.s32.totalorder %s71, 1
      %s934 = scalar_select %p933, %s71, 1
      %s935 = scalar_lea.vmem %s59, %s934
      %p936 = scmp.lt.s32.totalorder %s71, 1
      %s937 = scalar_select %p936, %s71, 1
      %s938 = scalar_lea.vmem %s1, %s937
      %p939 = scmp.lt.s32.totalorder %s71, 1
      %s940 = scalar_select %p939, %s71, 1
      %s941 = smul.addr %s940, 2
      %s942 = smul.addr %s941, 8
      %s943 = scalar_lea.vmem %s3, %s942
      %p944 = scmp.lt.s32.totalorder %s71, 1
      %s945 = scalar_select %p944, %s71, 1
      %s946 = scalar_lea.vmem %s5, %s945
      %p947 = scmp.lt.s32.totalorder %s71, 1
      %s948 = scalar_select %p947, %s71, 1
      %s949 = smul.addr %s948, 2
      %s950 = smul.addr %s949, 8
      %s951 = scalar_lea.vmem %s7, %s950
      %p952 = scmp.lt.s32.totalorder %s71, 1
      %s953 = scalar_select %p952, %s71, 1
      %s954 = smul.addr %s953, 2
      %s955 = smul.addr %s954, 8
      %s956 = scalar_lea.vmem %s57, %s955
      %p957 = scmp.lt.s32.totalorder %s71, 1
      %s958 = scalar_select %p957, %s71, 1
      %s959 = scalar_lea.vmem %s59, %s958
      %v960 = vld [vmem:[%s938] sm:$0x1]
      %v961 = vld [vmem:[%s9] sm:$0xff]
      %v962 = vld [vmem:[%s9 + $0x8] sm:$0xff]
      %v963 = vld [vmem:[%s9 + $0x10] sm:$0xff]
      %v964 = vld [vmem:[%s9 + $0x18] sm:$0xff]
      %v965 = vld [vmem:[%s9 + $0x20] sm:$0xff]
      %v966 = vld [vmem:[%s9 + $0x28] sm:$0xff]
      %v967 = vld [vmem:[%s9 + $0x30] sm:$0xff]
      %v968 = vld [vmem:[%s9 + $0x38] sm:$0xff]
      %v969 = vld [vmem:[%s11] sm:$0x1]
      %vm970 = vcmask 523264
      %v972 = vsel %vm970, %v960, 0
      %974 = vmatprep.subr.mxu0 0.0
      %975 = vmatpush1.msra.mxu0 %v961
      %976 = vmatprep.subr.mxu0 0.0
      %977 = vmatpush1.msra.mxu0 %v962
      %978 = vmatprep.subr.mxu0 0.0
      %979 = vmatpush1.msra.mxu0 %v963
      %980 = vmatprep.subr.mxu0 0.0
      %981 = vmatpush1.msra.mxu0 %v964
      %982 = vmatprep.subr.mxu0 0.0
      %983 = vmatpush1.msra.mxu0 %v965
      %984 = vmatprep.subr.mxu0 0.0
      %985 = vmatpush1.msra.mxu0 %v966
      %986 = vmatprep.subr.mxu0 0.0
      %987 = vmatpush1.msra.mxu0 %v967
      %988 = vmatprep.subr.mxu0 0.0
      %989 = vmatpush1.msra.mxu0 %v968
      %990 = vmatprep.subr.mxu0 0.0
      %991 = vmatpush1.msra.mxu0 0.0
      %992 = vmatprep.subr.mxu0 0.0
      %993 = vmatpush1.msra.mxu0 0.0
      %994 = vmatprep.subr.mxu0 0.0
      %995 = vmatpush1.msra.mxu0 0.0
      %996 = vmatprep.subr.mxu0 0.0
      %997 = vmatpush1.msra.mxu0 0.0
      %998 = vmatprep.subr.mxu0 0.0
      %999 = vmatpush1.msra.mxu0 0.0
      %1000 = vmatprep.subr.mxu0 0.0
      %1001 = vmatpush1.msra.mxu0 0.0
      %1002 = vmatprep.subr.mxu0 0.0
      %1003 = vmatpush1.msra.mxu0 0.0
      %1004 = vmatprep.subr.mxu0 0.0
      %1005 = vmatpush1.msra.mxu0 0.0
      %1006 = vmatprep.subr.mxu0 0.0
      %1007 = vmatpush1.msra.mxu0 0.0
      %1008 = vmatprep.subr.mxu0 0.0
      %1009 = vmatpush1.msra.mxu0 0.0
      %1010 = vmatprep.subr.mxu0 0.0
      %1011 = vmatpush1.msra.mxu0 0.0
      %1012 = vmatprep.subr.mxu0 0.0
      %1013 = vmatpush1.msra.mxu0 0.0
      %1014 = vmatprep.subr.mxu0 0.0
      %1015 = vmatpush1.msra.mxu0 0.0
      %1016 = vmatprep.subr.mxu0 0.0
      %1017 = vmatpush1.msra.mxu0 0.0
      %1018 = vmatprep.subr.mxu0 0.0
      %1019 = vmatpush1.msra.mxu0 0.0
      %1020 = vmatprep.subr.mxu0 0.0
      %1021 = vmatpush1.msra.mxu0 0.0
      %1022 = vmatprep.subr.mxu0 0.0
      %1023 = vmatpush1.msra.mxu0 0.0
      %1024 = vmatprep.subr.mxu0 0.0
      %1025 = vmatpush1.msra.mxu0 0.0
      %1026 = vmatprep.subr.mxu0 0.0
      %1027 = vmatpush1.msra.mxu0 0.0
      %1028 = vmatprep.subr.mxu0 0.0
      %1029 = vmatpush1.msra.mxu0 0.0
      %1030 = vmatprep.subr.mxu0 0.0
      %1031 = vmatpush1.msra.mxu0 0.0
      %1032 = vmatprep.subr.mxu0 0.0
      %1033 = vmatpush1.msra.mxu0 0.0
      %1034 = vmatprep.subr.mxu0 0.0
      %1035 = vmatpush1.msra.mxu0 0.0
      %1036 = vmatprep.subr.mxu0 0.0
      %1037 = vmatpush1.msra.mxu0 0.0
      %1038 = vmatprep.mubr.f32.mxu0 0.0
      %1039 = vmatmul.mubr.f32.gmra.mrb[0].mxu0 %v972
      %v1040 = vpop.f32.mrb[0].mxu0
      %v1041 = vadd.f32 %v969, %v1040
      %v1042 = vpop.f32.mrb[0].mxu0
      %1043 = vdwg.mxu0
      %v1044 = vld [vmem:[%s943] sm:$0xff]
      %v1045 = vld [vmem:[%s943 + $0x8] sm:$0xff]
      %v1046 = vlaneseq
      %v1047 = vshrl.u32 %v1046, 7
      %v1048 = vadd.s32 %v1047, 8
      %vm1049 = vcmp.eq.s32.totalorder %v1047, 0
      %vm1050 = vcmp.eq.s32.totalorder %v1048, 0
      %v1051 = vlaneseq
      %v1052 = vshrl.u32 %v1051, 7
      %v1053 = vsub.s32 0, %v1052
      %v1054 = vrot.slane %v1041, %v1053
      %v1055 = vsel %vm1049, %v1054, %v1044
      %v1056 = vsel %vm1050, %v1054, %v1045
      %v1057 = vld [vmem:[%s13] sm:$0xff]
      %v1058 = vld [vmem:[%s13 + $0x8] sm:$0xff]
      %v1059 = vadd.f32 %v1055, %v1057
      %v1060 = vadd.f32 %v1056, %v1058
      %v1061 = vld [vmem:[%s15] sm:$0x1]
      %v1063 = vlaneseq
      %v1064 = vshrl.u32 %v1063, 7
      %v1065 = vsub.s32 0, %v1064
      %v1066 = vrot.slane %v1061, %v1065
      %v1068 = vadd.f32 %v1059, %v1066
      %v1069 = vadd.f32 %v1060, %v1066
      %v1070 = vld [vmem:[%s17] sm:$0x1]
      %v1071 = vld [vmem:[%s19] sm:$0x1]
      %v1072 = vsel %vm970, %v1068, 0.0
      %1073 = vadd.xlane.f32.xlu0 %v1072
      %v1074 = vpop.xlane.xlu0 %1073
      %v1075 = vsel %vm970, %v1069, 0.0
      %1076 = vadd.xlane.f32.xlu0 %v1075
      %v1077 = vpop.xlane.xlu0 %1076
      %v1078 = vrcp.pop 64.0
      %v1079 = vmul.f32 %v1074, %v1078
      %v1080 = vmul.f32 %v1077, %v1078
      %v1081 = vsub.f32 %v1068, %v1079
      %v1082 = vsub.f32 %v1069, %v1080
      %v1083 = vmul.f32 %v1081, %v1081
      %v1084 = vmul.f32 %v1082, %v1082
      %v1085 = vsel %vm970, %v1083, 0.0
      %1086 = vadd.xlane.f32.xlu0 %v1085
      %v1087 = vpop.xlane.xlu0 %1086
      %v1088 = vsel %vm970, %v1084, 0.0
      %1089 = vadd.xlane.f32.xlu0 %v1088
      %v1090 = vpop.xlane.xlu0 %1089
      %v1091 = vmul.f32 %v1087, %v1078
      %v1092 = vmul.f32 %v1090, %v1078
      %v1093 = vadd.f32 %v1091, 1e-12
      %v1094 = vadd.f32 %v1092, 1e-12
      %v1095 = vrsqrt.pop %v1093
      %v1096 = vrsqrt.pop %v1094
      %v1097 = vmul.f32 %v1081, %v1095
      %v1098 = vmul.f32 %v1082, %v1096
      %v1100 = vlaneseq
      %v1101 = vshrl.u32 %v1100, 7
      %v1102 = vsub.s32 0, %v1101
      %v1103 = vrot.slane %v1070, %v1102
      %v1105 = vmul.f32 %v1097, %v1103
      %v1106 = vmul.f32 %v1098, %v1103
      %v1108 = vlaneseq
      %v1109 = vshrl.u32 %v1108, 7
      %v1110 = vsub.s32 0, %v1109
      %v1111 = vrot.slane %v1071, %v1110
      %v1113 = vadd.f32 %v1105, %v1111
      %v1114 = vadd.f32 %v1106, %v1111
      %v1115 = vld [vmem:[%s946] sm:$0x1]
      %v1116 = vld [vmem:[%s27] sm:$0x1]
      %v1117 = vld [vmem:[%s21] sm:$0xff]
      %v1118 = vld [vmem:[%s21 + $0x8] sm:$0xff]
      %v1119 = vld [vmem:[%s21 + $0x10] sm:$0xff]
      %v1120 = vld [vmem:[%s21 + $0x18] sm:$0xff]
      %v1121 = vld [vmem:[%s21 + $0x20] sm:$0xff]
      %v1122 = vld [vmem:[%s21 + $0x28] sm:$0xff]
      %v1123 = vld [vmem:[%s21 + $0x30] sm:$0xff]
      %v1124 = vld [vmem:[%s21 + $0x38] sm:$0xff]
      %v1125 = vld [vmem:[%s23] sm:$0x1]
      %v1127 = vlaneseq
      %v1128 = vshrl.u32 %v1127, 7
      %v1129 = vsub.s32 0, %v1128
      %v1130 = vrot.slane %v1125, %v1129
      %v1133 = vsel %vm970, %v1113, 0
      %v1136 = vsel %vm970, %v1114, 0
      %1138 = vmatprep.subr.mxu0 0.0
      %1139 = vmatpush1.msra.mxu0 %v1117
      %1140 = vmatprep.subr.mxu0 0.0
      %1141 = vmatpush1.msra.mxu0 %v1118
      %1142 = vmatprep.subr.mxu0 0.0
      %1143 = vmatpush1.msra.mxu0 %v1119
      %1144 = vmatprep.subr.mxu0 0.0
      %1145 = vmatpush1.msra.mxu0 %v1120
      %1146 = vmatprep.subr.mxu0 0.0
      %1147 = vmatpush1.msra.mxu0 %v1121
      %1148 = vmatprep.subr.mxu0 0.0
      %1149 = vmatpush1.msra.mxu0 %v1122
      %1150 = vmatprep.subr.mxu0 0.0
      %1151 = vmatpush1.msra.mxu0 %v1123
      %1152 = vmatprep.subr.mxu0 0.0
      %1153 = vmatpush1.msra.mxu0 %v1124
      %1154 = vmatprep.subr.mxu0 0.0
      %1155 = vmatpush1.msra.mxu0 0.0
      %1156 = vmatprep.subr.mxu0 0.0
      %1157 = vmatpush1.msra.mxu0 0.0
      %1158 = vmatprep.subr.mxu0 0.0
      %1159 = vmatpush1.msra.mxu0 0.0
      %1160 = vmatprep.subr.mxu0 0.0
      %1161 = vmatpush1.msra.mxu0 0.0
      %1162 = vmatprep.subr.mxu0 0.0
      %1163 = vmatpush1.msra.mxu0 0.0
      %1164 = vmatprep.subr.mxu0 0.0
      %1165 = vmatpush1.msra.mxu0 0.0
      %1166 = vmatprep.subr.mxu0 0.0
      %1167 = vmatpush1.msra.mxu0 0.0
      %1168 = vmatprep.subr.mxu0 0.0
      %1169 = vmatpush1.msra.mxu0 0.0
      %1170 = vmatprep.subr.mxu0 0.0
      %1171 = vmatpush1.msra.mxu0 0.0
      %1172 = vmatprep.subr.mxu0 0.0
      %1173 = vmatpush1.msra.mxu0 0.0
      %1174 = vmatprep.subr.mxu0 0.0
      %1175 = vmatpush1.msra.mxu0 0.0
      %1176 = vmatprep.subr.mxu0 0.0
      %1177 = vmatpush1.msra.mxu0 0.0
      %1178 = vmatprep.subr.mxu0 0.0
      %1179 = vmatpush1.msra.mxu0 0.0
      %1180 = vmatprep.subr.mxu0 0.0
      %1181 = vmatpush1.msra.mxu0 0.0
      %1182 = vmatprep.subr.mxu0 0.0
      %1183 = vmatpush1.msra.mxu0 0.0
      %1184 = vmatprep.subr.mxu0 0.0
      %1185 = vmatpush1.msra.mxu0 0.0
      %1186 = vmatprep.subr.mxu0 0.0
      %1187 = vmatpush1.msra.mxu0 0.0
      %1188 = vmatprep.subr.mxu0 0.0
      %1189 = vmatpush1.msra.mxu0 0.0
      %1190 = vmatprep.subr.mxu0 0.0
      %1191 = vmatpush1.msra.mxu0 0.0
      %1192 = vmatprep.subr.mxu0 0.0
      %1193 = vmatpush1.msra.mxu0 0.0
      %1194 = vmatprep.subr.mxu0 0.0
      %1195 = vmatpush1.msra.mxu0 0.0
      %1196 = vmatprep.subr.mxu0 0.0
      %1197 = vmatpush1.msra.mxu0 0.0
      %1198 = vmatprep.subr.mxu0 0.0
      %1199 = vmatpush1.msra.mxu0 0.0
      %1200 = vmatprep.subr.mxu0 0.0
      %1201 = vmatpush1.msra.mxu0 0.0
      %1202 = vmatprep.mubr.f32.mxu0 0.0
      %1203 = vmatmul.mubr.f32.gmra.mrb[0].mxu0 %v1133
      %v1204 = vpop.f32.mrb[0].mxu0
      %v1205 = vadd.f32 %v1130, %v1204
      %v1206 = vpop.f32.mrb[0].mxu0
      %1207 = vmatprep.mubr.f32.mxu0 0.0
      %1208 = vmatmul.mubr.f32.gmra.mrb[0].mxu0 %v1136
      %v1209 = vpop.f32.mrb[0].mxu0
      %v1210 = vadd.f32 %v1130, %v1209
      %v1211 = vpop.f32.mrb[0].mxu0
      %1212 = vdwg.mxu0
      %s1213 = scalar_lea.vmem %s21, 128
      %v1214 = vld [vmem:[%s1213] sm:$0xff]
      %v1215 = vld [vmem:[%s1213 + $0x8] sm:$0xff]
      %v1216 = vld [vmem:[%s1213 + $0x10] sm:$0xff]
      %v1217 = vld [vmem:[%s1213 + $0x18] sm:$0xff]
      %v1218 = vld [vmem:[%s1213 + $0x20] sm:$0xff]
      %v1219 = vld [vmem:[%s1213 + $0x28] sm:$0xff]
      %v1220 = vld [vmem:[%s1213 + $0x30] sm:$0xff]
      %v1221 = vld [vmem:[%s1213 + $0x38] sm:$0xff]
      %s1222 = scalar_lea.vmem %s23, 2
      %v1223 = vld [vmem:[%s1222] sm:$0x1]
      %v1225 = vlaneseq
      %v1226 = vshrl.u32 %v1225, 7
      %v1227 = vsub.s32 0, %v1226
      %v1228 = vrot.slane %v1223, %v1227
      %1230 = vmatprep.subr.mxu0 0.0
      %1231 = vmatpush1.msra.mxu0 %v1214
      %1232 = vmatprep.subr.mxu0 0.0
      %1233 = vmatpush1.msra.mxu0 %v1215
      %1234 = vmatprep.subr.mxu0 0.0
      %1235 = vmatpush1.msra.mxu0 %v1216
      %1236 = vmatprep.subr.mxu0 0.0
      %1237 = vmatpush1.msra.mxu0 %v1217
      %1238 = vmatprep.subr.mxu0 0.0
      %1239 = vmatpush1.msra.mxu0 %v1218
      %1240 = vmatprep.subr.mxu0 0.0
      %1241 = vmatpush1.msra.mxu0 %v1219
      %1242 = vmatprep.subr.mxu0 0.0
      %1243 = vmatpush1.msra.mxu0 %v1220
      %1244 = vmatprep.subr.mxu0 0.0
      %1245 = vmatpush1.msra.mxu0 %v1221
      %1246 = vmatprep.subr.mxu0 0.0
      %1247 = vmatpush1.msra.mxu0 0.0
      %1248 = vmatprep.subr.mxu0 0.0
      %1249 = vmatpush1.msra.mxu0 0.0
      %1250 = vmatprep.subr.mxu0 0.0
      %1251 = vmatpush1.msra.mxu0 0.0
      %1252 = vmatprep.subr.mxu0 0.0
      %1253 = vmatpush1.msra.mxu0 0.0
      %1254 = vmatprep.subr.mxu0 0.0
      %1255 = vmatpush1.msra.mxu0 0.0
      %1256 = vmatprep.subr.mxu0 0.0
      %1257 = vmatpush1.msra.mxu0 0.0
      %1258 = vmatprep.subr.mxu0 0.0
      %1259 = vmatpush1.msra.mxu0 0.0
      %1260 = vmatprep.subr.mxu0 0.0
      %1261 = vmatpush1.msra.mxu0 0.0
      %1262 = vmatprep.subr.mxu0 0.0
      %1263 = vmatpush1.msra.mxu0 0.0
      %1264 = vmatprep.subr.mxu0 0.0
      %1265 = vmatpush1.msra.mxu0 0.0
      %1266 = vmatprep.subr.mxu0 0.0
      %1267 = vmatpush1.msra.mxu0 0.0
      %1268 = vmatprep.subr.mxu0 0.0
      %1269 = vmatpush1.msra.mxu0 0.0
      %1270 = vmatprep.subr.mxu0 0.0
      %1271 = vmatpush1.msra.mxu0 0.0
      %1272 = vmatprep.subr.mxu0 0.0
      %1273 = vmatpush1.msra.mxu0 0.0
      %1274 = vmatprep.subr.mxu0 0.0
      %1275 = vmatpush1.msra.mxu0 0.0
      %1276 = vmatprep.subr.mxu0 0.0
      %1277 = vmatpush1.msra.mxu0 0.0
      %1278 = vmatprep.subr.mxu0 0.0
      %1279 = vmatpush1.msra.mxu0 0.0
      %1280 = vmatprep.subr.mxu0 0.0
      %1281 = vmatpush1.msra.mxu0 0.0
      %1282 = vmatprep.subr.mxu0 0.0
      %1283 = vmatpush1.msra.mxu0 0.0
      %1284 = vmatprep.subr.mxu0 0.0
      %1285 = vmatpush1.msra.mxu0 0.0
      %1286 = vmatprep.subr.mxu0 0.0
      %1287 = vmatpush1.msra.mxu0 0.0
      %1288 = vmatprep.subr.mxu0 0.0
      %1289 = vmatpush1.msra.mxu0 0.0
      %1290 = vmatprep.subr.mxu0 0.0
      %1291 = vmatpush1.msra.mxu0 0.0
      %1292 = vmatprep.subr.mxu0 0.0
      %1293 = vmatpush1.msra.mxu0 0.0
      %1294 = vmatprep.mubr.f32.mxu0 0.0
      %1295 = vmatmul.mubr.f32.gmra.mrb[0].mxu0 %v1133
      %v1296 = vpop.f32.mrb[0].mxu0
      %v1297 = vadd.f32 %v1228, %v1296
      %v1298 = vpop.f32.mrb[0].mxu0
      %1299 = vmatprep.mubr.f32.mxu0 0.0
      %1300 = vmatmul.mubr.f32.gmra.mrb[0].mxu0 %v1136
      %v1301 = vpop.f32.mrb[0].mxu0
      %v1302 = vadd.f32 %v1228, %v1301
      %v1303 = vpop.f32.mrb[0].mxu0
      %1304 = vdwg.mxu0
      %s1305 = scalar_lea.vmem %s21, 256
      %v1306 = vld [vmem:[%s1305] sm:$0xff]
      %v1307 = vld [vmem:[%s1305 + $0x8] sm:$0xff]
      %v1308 = vld [vmem:[%s1305 + $0x10] sm:$0xff]
      %v1309 = vld [vmem:[%s1305 + $0x18] sm:$0xff]
      %v1310 = vld [vmem:[%s1305 + $0x20] sm:$0xff]
      %v1311 = vld [vmem:[%s1305 + $0x28] sm:$0xff]
      %v1312 = vld [vmem:[%s1305 + $0x30] sm:$0xff]
      %v1313 = vld [vmem:[%s1305 + $0x38] sm:$0xff]
      %s1314 = scalar_lea.vmem %s23, 4
      %v1315 = vld [vmem:[%s1314] sm:$0x1]
      %v1317 = vlaneseq
      %v1318 = vshrl.u32 %v1317, 7
      %v1319 = vsub.s32 0, %v1318
      %v1320 = vrot.slane %v1315, %v1319
      %1322 = vmatprep.subr.mxu0 0.0
      %1323 = vmatpush1.msra.mxu0 %v1306
      %1324 = vmatprep.subr.mxu0 0.0
      %1325 = vmatpush1.msra.mxu0 %v1307
      %1326 = vmatprep.subr.mxu0 0.0
      %1327 = vmatpush1.msra.mxu0 %v1308
      %1328 = vmatprep.subr.mxu0 0.0
      %1329 = vmatpush1.msra.mxu0 %v1309
      %1330 = vmatprep.subr.mxu0 0.0
      %1331 = vmatpush1.msra.mxu0 %v1310
      %1332 = vmatprep.subr.mxu0 0.0
      %1333 = vmatpush1.msra.mxu0 %v1311
      %1334 = vmatprep.subr.mxu0 0.0
      %1335 = vmatpush1.msra.mxu0 %v1312
      %1336 = vmatprep.subr.mxu0 0.0
      %1337 = vmatpush1.msra.mxu0 %v1313
      %1338 = vmatprep.subr.mxu0 0.0
      %1339 = vmatpush1.msra.mxu0 0.0
      %1340 = vmatprep.subr.mxu0 0.0
      %1341 = vmatpush1.msra.mxu0 0.0
      %1342 = vmatprep.subr.mxu0 0.0
      %1343 = vmatpush1.msra.mxu0 0.0
      %1344 = vmatprep.subr.mxu0 0.0
      %1345 = vmatpush1.msra.mxu0 0.0
      %1346 = vmatprep.subr.mxu0 0.0
      %1347 = vmatpush1.msra.mxu0 0.0
      %1348 = vmatprep.subr.mxu0 0.0
      %1349 = vmatpush1.msra.mxu0 0.0
      %1350 = vmatprep.subr.mxu0 0.0
      %1351 = vmatpush1.msra.mxu0 0.0
      %1352 = vmatprep.subr.mxu0 0.0
      %1353 = vmatpush1.msra.mxu0 0.0
      %1354 = vmatprep.subr.mxu0 0.0
      %1355 = vmatpush1.msra.mxu0 0.0
      %1356 = vmatprep.subr.mxu0 0.0
      %1357 = vmatpush1.msra.mxu0 0.0
      %1358 = vmatprep.subr.mxu0 0.0
      %1359 = vmatpush1.msra.mxu0 0.0
      %1360 = vmatprep.subr.mxu0 0.0
      %1361 = vmatpush1.msra.mxu0 0.0
      %1362 = vmatprep.subr.mxu0 0.0
      %1363 = vmatpush1.msra.mxu0 0.0
      %1364 = vmatprep.subr.mxu0 0.0
      %1365 = vmatpush1.msra.mxu0 0.0
      %1366 = vmatprep.subr.mxu0 0.0
      %1367 = vmatpush1.msra.mxu0 0.0
      %1368 = vmatprep.subr.mxu0 0.0
      %1369 = vmatpush1.msra.mxu0 0.0
      %1370 = vmatprep.subr.mxu0 0.0
      %1371 = vmatpush1.msra.mxu0 0.0
      %1372 = vmatprep.subr.mxu0 0.0
      %1373 = vmatpush1.msra.mxu0 0.0
      %1374 = vmatprep.subr.mxu0 0.0
      %1375 = vmatpush1.msra.mxu0 0.0
      %1376 = vmatprep.subr.mxu0 0.0
      %1377 = vmatpush1.msra.mxu0 0.0
      %1378 = vmatprep.subr.mxu0 0.0
      %1379 = vmatpush1.msra.mxu0 0.0
      %1380 = vmatprep.subr.mxu0 0.0
      %1381 = vmatpush1.msra.mxu0 0.0
      %1382 = vmatprep.subr.mxu0 0.0
      %1383 = vmatpush1.msra.mxu0 0.0
      %1384 = vmatprep.subr.mxu0 0.0
      %1385 = vmatpush1.msra.mxu0 0.0
      %1386 = vmatprep.mubr.f32.mxu0 0.0
      %1387 = vmatmul.mubr.f32.gmra.mrb[0].mxu0 %v1133
      %v1388 = vpop.f32.mrb[0].mxu0
      %v1389 = vadd.f32 %v1320, %v1388
      %v1390 = vpop.f32.mrb[0].mxu0
      %1391 = vmatprep.mubr.f32.mxu0 0.0
      %1392 = vmatmul.mubr.f32.gmra.mrb[0].mxu0 %v1136
      %v1393 = vpop.f32.mrb[0].mxu0
      %v1394 = vadd.f32 %v1320, %v1393
      %v1395 = vpop.f32.mrb[0].mxu0
      %1396 = vdwg.mxu0
      %vm1397 = vcmask 261120
      %v1399 = vsel %vm1397, %v1205, 0
      %v1402 = vsel %vm1397, %v1210, 0
      %v1405 = vsel %vm1397, %v1297, 0
      %v1408 = vsel %vm1397, %v1302, 0
      %1410 = vmatprep.subr.mxu0 0.0
      %1411 = vmatpush1.xpose.msra.mxu0 %v1405
      %1412 = vmatprep.subr.mxu0 0.0
      %1413 = vmatpush1.xpose.msra.mxu0 %v1408
      %1414 = vmatprep.subr.mxu0 0.0
      %1415 = vmatpush1.xpose.msra.mxu0 0.0
      %1416 = vmatprep.subr.mxu0 0.0
      %1417 = vmatpush1.xpose.msra.mxu0 0.0
      %1418 = vmatprep.subr.mxu0 0.0
      %1419 = vmatpush1.xpose.msra.mxu0 0.0
      %1420 = vmatprep.subr.mxu0 0.0
      %1421 = vmatpush1.xpose.msra.mxu0 0.0
      %1422 = vmatprep.subr.mxu0 0.0
      %1423 = vmatpush1.xpose.msra.mxu0 0.0
      %1424 = vmatprep.subr.mxu0 0.0
      %1425 = vmatpush1.xpose.msra.mxu0 0.0
      %1426 = vmatprep.subr.mxu0 0.0
      %1427 = vmatpush1.xpose.msra.mxu0 0.0
      %1428 = vmatprep.subr.mxu0 0.0
      %1429 = vmatpush1.xpose.msra.mxu0 0.0
      %1430 = vmatprep.subr.mxu0 0.0
      %1431 = vmatpush1.xpose.msra.mxu0 0.0
      %1432 = vmatprep.subr.mxu0 0.0
      %1433 = vmatpush1.xpose.msra.mxu0 0.0
      %1434 = vmatprep.subr.mxu0 0.0
      %1435 = vmatpush1.xpose.msra.mxu0 0.0
      %1436 = vmatprep.subr.mxu0 0.0
      %1437 = vmatpush1.xpose.msra.mxu0 0.0
      %1438 = vmatprep.subr.mxu0 0.0
      %1439 = vmatpush1.xpose.msra.mxu0 0.0
      %1440 = vmatprep.subr.mxu0 0.0
      %1441 = vmatpush1.xpose.msra.mxu0 0.0
      %1442 = vmatprep.subr.mxu0 0.0
      %1443 = vmatpush1.xpose.msra.mxu0 0.0
      %1444 = vmatprep.subr.mxu0 0.0
      %1445 = vmatpush1.xpose.msra.mxu0 0.0
      %1446 = vmatprep.subr.mxu0 0.0
      %1447 = vmatpush1.xpose.msra.mxu0 0.0
      %1448 = vmatprep.subr.mxu0 0.0
      %1449 = vmatpush1.xpose.msra.mxu0 0.0
      %1450 = vmatprep.subr.mxu0 0.0
      %1451 = vmatpush1.xpose.msra.mxu0 0.0
      %1452 = vmatprep.subr.mxu0 0.0
      %1453 = vmatpush1.xpose.msra.mxu0 0.0
      %1454 = vmatprep.subr.mxu0 0.0
      %1455 = vmatpush1.xpose.msra.mxu0 0.0
      %1456 = vmatprep.subr.mxu0 0.0
      %1457 = vmatpush1.xpose.msra.mxu0 0.0
      %1458 = vmatprep.subr.mxu0 0.0
      %1459 = vmatpush1.xpose.msra.mxu0 0.0
      %1460 = vmatprep.subr.mxu0 0.0
      %1461 = vmatpush1.xpose.msra.mxu0 0.0
      %1462 = vmatprep.subr.mxu0 0.0
      %1463 = vmatpush1.xpose.msra.mxu0 0.0
      %1464 = vmatprep.subr.mxu0 0.0
      %1465 = vmatpush1.xpose.msra.mxu0 0.0
      %1466 = vmatprep.subr.mxu0 0.0
      %1467 = vmatpush1.xpose.msra.mxu0 0.0
      %1468 = vmatprep.subr.mxu0 0.0
      %1469 = vmatpush1.xpose.msra.mxu0 0.0
      %1470 = vmatprep.subr.mxu0 0.0
      %1471 = vmatpush1.xpose.msra.mxu0 0.0
      %1472 = vmatprep.subr.mxu0 0.0
      %1473 = vmatpush1.xpose.msra.mxu0 0.0
      %1474 = vmatprep.mubr.f32.mxu0 0.0
      %1475 = vmatmul.mubr.f32.gmra.mrb[0].mxu0 %v1399
      %v1476 = vpop.f32.mrb[0].mxu0
      %v1477 = vadd.f32 0.0, %v1476
      %v1478 = vpop.f32.mrb[0].mxu0
      %1479 = vmatprep.mubr.f32.mxu0 0.0
      %1480 = vmatmul.mubr.f32.gmra.mrb[0].mxu0 %v1402
      %v1481 = vpop.f32.mrb[0].mxu0
      %v1482 = vadd.f32 0.0, %v1481
      %v1483 = vpop.f32.mrb[0].mxu0
      %1484 = vdwg.mxu0
      %v1485 = vmul.f32 %v1477, 0.17677669
      %v1486 = vmul.f32 %v1482, 0.17677669
      %v1488 = vlaneseq
      %v1489 = vshrl.u32 %v1488, 7
      %v1490 = vsub.s32 0, %v1489
      %v1491 = vrot.slane %v1115, %v1490
      %v1493 = vadd.f32 %v1485, %v1491
      %v1494 = vadd.f32 %v1486, %v1491
      %vm1495 = vcmask 130048
      %v1496 = vsel %vm1495, %v1493, -inf
      %1497 = vmax.xlane.f32.xlu0 %v1496
      %v1498 = vpop.xlane.xlu0 %1497
      %v1499 = vsel %vm1495, %v1494, -inf
      %1500 = vmax.xlane.f32.xlu0 %v1499
      %v1501 = vpop.xlane.xlu0 %1500
      %v1502 = vsub.f32 %v1493, %v1498
      %v1503 = vsub.f32 %v1494, %v1501
      %v1504 = vmul.f32 %v1502, 1.442695
      %v1505 = vpow.pop %v1504
      %v1506 = vmul.f32 %v1503, 1.442695
      %v1507 = vpow.pop %v1506
      %v1508 = vsel %vm1495, %v1505, 0.0
      %1509 = vadd.xlane.f32.xlu0 %v1508
      %v1510 = vpop.xlane.xlu0 %1509
      %v1511 = vsel %vm1495, %v1507, 0.0
      %1512 = vadd.xlane.f32.xlu0 %v1511
      %v1513 = vpop.xlane.xlu0 %1512
      %v1514 = vrcp.pop %v1510
      %v1515 = vrcp.pop %v1513
      %v1516 = vmul.f32 %v1505, %v1514
      %v1517 = vmul.f32 %v1507, %v1515
      %v1519 = vsel %vm1495, %v1516, 0
      %v1522 = vsel %vm1495, %v1517, 0
      %1524 = vmatprep.subr.mxu0 0.0
      %1525 = vmatpush1.msra.mxu0 %v1389
      %1526 = vmatprep.subr.mxu0 0.0
      %1527 = vmatpush1.msra.mxu0 %v1394
      %1528 = vmatprep.subr.mxu0 0.0
      %1529 = vmatpush1.msra.mxu0 0.0
      %1530 = vmatprep.subr.mxu0 0.0
      %1531 = vmatpush1.msra.mxu0 0.0
      %1532 = vmatprep.subr.mxu0 0.0
      %1533 = vmatpush1.msra.mxu0 0.0
      %1534 = vmatprep.subr.mxu0 0.0
      %1535 = vmatpush1.msra.mxu0 0.0
      %1536 = vmatprep.subr.mxu0 0.0
      %1537 = vmatpush1.msra.mxu0 0.0
      %1538 = vmatprep.subr.mxu0 0.0
      %1539 = vmatpush1.msra.mxu0 0.0
      %1540 = vmatprep.subr.mxu0 0.0
      %1541 = vmatpush1.msra.mxu0 0.0
      %1542 = vmatprep.subr.mxu0 0.0
      %1543 = vmatpush1.msra.mxu0 0.0
      %1544 = vmatprep.subr.mxu0 0.0
      %1545 = vmatpush1.msra.mxu0 0.0
      %1546 = vmatprep.subr.mxu0 0.0
      %1547 = vmatpush1.msra.mxu0 0.0
      %1548 = vmatprep.subr.mxu0 0.0
      %1549 = vmatpush1.msra.mxu0 0.0
      %1550 = vmatprep.subr.mxu0 0.0
      %1551 = vmatpush1.msra.mxu0 0.0
      %1552 = vmatprep.subr.mxu0 0.0
      %1553 = vmatpush1.msra.mxu0 0.0
      %1554 = vmatprep.subr.mxu0 0.0
      %1555 = vmatpush1.msra.mxu0 0.0
      %1556 = vmatprep.subr.mxu0 0.0
      %1557 = vmatpush1.msra.mxu0 0.0
      %1558 = vmatprep.subr.mxu0 0.0
      %1559 = vmatpush1.msra.mxu0 0.0
      %1560 = vmatprep.subr.mxu0 0.0
      %1561 = vmatpush1.msra.mxu0 0.0
      %1562 = vmatprep.subr.mxu0 0.0
      %1563 = vmatpush1.msra.mxu0 0.0
      %1564 = vmatprep.subr.mxu0 0.0
      %1565 = vmatpush1.msra.mxu0 0.0
      %1566 = vmatprep.subr.mxu0 0.0
      %1567 = vmatpush1.msra.mxu0 0.0
      %1568 = vmatprep.subr.mxu0 0.0
      %1569 = vmatpush1.msra.mxu0 0.0
      %1570 = vmatprep.subr.mxu0 0.0
      %1571 = vmatpush1.msra.mxu0 0.0
      %1572 = vmatprep.subr.mxu0 0.0
      %1573 = vmatpush1.msra.mxu0 0.0
      %1574 = vmatprep.subr.mxu0 0.0
      %1575 = vmatpush1.msra.mxu0 0.0
      %1576 = vmatprep.subr.mxu0 0.0
      %1577 = vmatpush1.msra.mxu0 0.0
      %1578 = vmatprep.subr.mxu0 0.0
      %1579 = vmatpush1.msra.mxu0 0.0
      %1580 = vmatprep.subr.mxu0 0.0
      %1581 = vmatpush1.msra.mxu0 0.0
      %1582 = vmatprep.subr.mxu0 0.0
      %1583 = vmatpush1.msra.mxu0 0.0
      %1584 = vmatprep.subr.mxu0 0.0
      %1585 = vmatpush1.msra.mxu0 0.0
      %1586 = vmatprep.subr.mxu0 0.0
      %1587 = vmatpush1.msra.mxu0 0.0
      %1588 = vmatprep.mubr.f32.mxu0 0.0
      %1589 = vmatmul.mubr.f32.gmra.mrb[0].mxu0 %v1519
      %v1590 = vpop.f32.mrb[0].mxu0
      %v1591 = vadd.f32 0.0, %v1590
      %v1592 = vpop.f32.mrb[0].mxu0
      %1593 = vmatprep.mubr.f32.mxu0 0.0
      %1594 = vmatmul.mubr.f32.gmra.mrb[0].mxu0 %v1522
      %v1595 = vpop.f32.mrb[0].mxu0
      %v1596 = vadd.f32 0.0, %v1595
      %v1597 = vpop.f32.mrb[0].mxu0
      %1598 = vdwg.mxu0
      %v1599 = vld [vmem:[%s25] sm:$0xff]
      %v1600 = vld [vmem:[%s25 + $0x8] sm:$0xff]
      %v1601 = vld [vmem:[%s25 + $0x10] sm:$0xff]
      %v1602 = vld [vmem:[%s25 + $0x18] sm:$0xff]
      %v1604 = vsel %vm1397, %v1591, 0
      %v1607 = vsel %vm1397, %v1596, 0
      %1609 = vmatprep.subr.mxu0 0.0
      %1610 = vmatpush1.msra.mxu0 %v1599
      %1611 = vmatprep.subr.mxu0 0.0
      %1612 = vmatpush1.msra.mxu0 %v1600
      %1613 = vmatprep.subr.mxu0 0.0
      %1614 = vmatpush1.msra.mxu0 %v1601
      %1615 = vmatprep.subr.mxu0 0.0
      %1616 = vmatpush1.msra.mxu0 %v1602
      %1617 = vmatprep.subr.mxu0 0.0
      %1618 = vmatpush1.msra.mxu0 0.0
      %1619 = vmatprep.subr.mxu0 0.0
      %1620 = vmatpush1.msra.mxu0 0.0
      %1621 = vmatprep.subr.mxu0 0.0
      %1622 = vmatpush1.msra.mxu0 0.0
      %1623 = vmatprep.subr.mxu0 0.0
      %1624 = vmatpush1.msra.mxu0 0.0
      %1625 = vmatprep.subr.mxu0 0.0
      %1626 = vmatpush1.msra.mxu0 0.0
      %1627 = vmatprep.subr.mxu0 0.0
      %1628 = vmatpush1.msra.mxu0 0.0
      %1629 = vmatprep.subr.mxu0 0.0
      %1630 = vmatpush1.msra.mxu0 0.0
      %1631 = vmatprep.subr.mxu0 0.0
      %1632 = vmatpush1.msra.mxu0 0.0
      %1633 = vmatprep.subr.mxu0 0.0
      %1634 = vmatpush1.msra.mxu0 0.0
      %1635 = vmatprep.subr.mxu0 0.0
      %1636 = vmatpush1.msra.mxu0 0.0
      %1637 = vmatprep.subr.mxu0 0.0
      %1638 = vmatpush1.msra.mxu0 0.0
      %1639 = vmatprep.subr.mxu0 0.0
      %1640 = vmatpush1.msra.mxu0 0.0
      %1641 = vmatprep.subr.mxu0 0.0
      %1642 = vmatpush1.msra.mxu0 0.0
      %1643 = vmatprep.subr.mxu0 0.0
      %1644 = vmatpush1.msra.mxu0 0.0
      %1645 = vmatprep.subr.mxu0 0.0
      %1646 = vmatpush1.msra.mxu0 0.0
      %1647 = vmatprep.subr.mxu0 0.0
      %1648 = vmatpush1.msra.mxu0 0.0
      %1649 = vmatprep.subr.mxu0 0.0
      %1650 = vmatpush1.msra.mxu0 0.0
      %1651 = vmatprep.subr.mxu0 0.0
      %1652 = vmatpush1.msra.mxu0 0.0
      %1653 = vmatprep.subr.mxu0 0.0
      %1654 = vmatpush1.msra.mxu0 0.0
      %1655 = vmatprep.subr.mxu0 0.0
      %1656 = vmatpush1.msra.mxu0 0.0
      %1657 = vmatprep.subr.mxu0 0.0
      %1658 = vmatpush1.msra.mxu0 0.0
      %1659 = vmatprep.subr.mxu0 0.0
      %1660 = vmatpush1.msra.mxu0 0.0
      %1661 = vmatprep.subr.mxu0 0.0
      %1662 = vmatpush1.msra.mxu0 0.0
      %1663 = vmatprep.subr.mxu0 0.0
      %1664 = vmatpush1.msra.mxu0 0.0
      %1665 = vmatprep.subr.mxu0 0.0
      %1666 = vmatpush1.msra.mxu0 0.0
      %1667 = vmatprep.subr.mxu0 0.0
      %1668 = vmatpush1.msra.mxu0 0.0
      %1669 = vmatprep.subr.mxu0 0.0
      %1670 = vmatpush1.msra.mxu0 0.0
      %1671 = vmatprep.subr.mxu0 0.0
      %1672 = vmatpush1.msra.mxu0 0.0
      %1673 = vmatprep.mubr.f32.mxu0 0.0
      %1674 = vmatmul.mubr.f32.gmra.mrb[0].mxu0 %v1604
      %v1675 = vpop.f32.mrb[0].mxu0
      %v1676 = vadd.f32 0.0, %v1675
      %v1677 = vpop.f32.mrb[0].mxu0
      %1678 = vmatprep.mubr.f32.mxu0 0.0
      %1679 = vmatmul.mubr.f32.gmra.mrb[0].mxu0 %v1607
      %v1680 = vpop.f32.mrb[0].mxu0
      %v1681 = vadd.f32 0.0, %v1680
      %v1682 = vpop.f32.mrb[0].mxu0
      %1683 = vdwg.mxu0
      %v1685 = vlaneseq
      %v1686 = vshrl.u32 %v1685, 7
      %v1687 = vsub.s32 0, %v1686
      %v1688 = vrot.slane %v1116, %v1687
      %v1690 = vadd.f32 %v1688, %v1676
      %v1691 = vadd.f32 %v1688, %v1681
      %s1692 = scalar_lea.vmem %s21, 64
      %v1693 = vld [vmem:[%s1692] sm:$0xff]
      %v1694 = vld [vmem:[%s1692 + $0x8] sm:$0xff]
      %v1695 = vld [vmem:[%s1692 + $0x10] sm:$0xff]
      %v1696 = vld [vmem:[%s1692 + $0x18] sm:$0xff]
      %v1697 = vld [vmem:[%s1692 + $0x20] sm:$0xff]
      %v1698 = vld [vmem:[%s1692 + $0x28] sm:$0xff]
      %v1699 = vld [vmem:[%s1692 + $0x30] sm:$0xff]
      %v1700 = vld [vmem:[%s1692 + $0x38] sm:$0xff]
      %s1701 = scalar_lea.vmem %s23, 1
      %v1702 = vld [vmem:[%s1701] sm:$0x1]
      %v1704 = vlaneseq
      %v1705 = vshrl.u32 %v1704, 7
      %v1706 = vsub.s32 0, %v1705
      %v1707 = vrot.slane %v1702, %v1706
      %1709 = vmatprep.subr.mxu0 0.0
      %1710 = vmatpush1.msra.mxu0 %v1693
      %1711 = vmatprep.subr.mxu0 0.0
      %1712 = vmatpush1.msra.mxu0 %v1694
      %1713 = vmatprep.subr.mxu0 0.0
      %1714 = vmatpush1.msra.mxu0 %v1695
      %1715 = vmatprep.subr.mxu0 0.0
      %1716 = vmatpush1.msra.mxu0 %v1696
      %1717 = vmatprep.subr.mxu0 0.0
      %1718 = vmatpush1.msra.mxu0 %v1697
      %1719 = vmatprep.subr.mxu0 0.0
      %1720 = vmatpush1.msra.mxu0 %v1698
      %1721 = vmatprep.subr.mxu0 0.0
      %1722 = vmatpush1.msra.mxu0 %v1699
      %1723 = vmatprep.subr.mxu0 0.0
      %1724 = vmatpush1.msra.mxu0 %v1700
      %1725 = vmatprep.subr.mxu0 0.0
      %1726 = vmatpush1.msra.mxu0 0.0
      %1727 = vmatprep.subr.mxu0 0.0
      %1728 = vmatpush1.msra.mxu0 0.0
      %1729 = vmatprep.subr.mxu0 0.0
      %1730 = vmatpush1.msra.mxu0 0.0
      %1731 = vmatprep.subr.mxu0 0.0
      %1732 = vmatpush1.msra.mxu0 0.0
      %1733 = vmatprep.subr.mxu0 0.0
      %1734 = vmatpush1.msra.mxu0 0.0
      %1735 = vmatprep.subr.mxu0 0.0
      %1736 = vmatpush1.msra.mxu0 0.0
      %1737 = vmatprep.subr.mxu0 0.0
      %1738 = vmatpush1.msra.mxu0 0.0
      %1739 = vmatprep.subr.mxu0 0.0
      %1740 = vmatpush1.msra.mxu0 0.0
      %1741 = vmatprep.subr.mxu0 0.0
      %1742 = vmatpush1.msra.mxu0 0.0
      %1743 = vmatprep.subr.mxu0 0.0
      %1744 = vmatpush1.msra.mxu0 0.0
      %1745 = vmatprep.subr.mxu0 0.0
      %1746 = vmatpush1.msra.mxu0 0.0
      %1747 = vmatprep.subr.mxu0 0.0
      %1748 = vmatpush1.msra.mxu0 0.0
      %1749 = vmatprep.subr.mxu0 0.0
      %1750 = vmatpush1.msra.mxu0 0.0
      %1751 = vmatprep.subr.mxu0 0.0
      %1752 = vmatpush1.msra.mxu0 0.0
      %1753 = vmatprep.subr.mxu0 0.0
      %1754 = vmatpush1.msra.mxu0 0.0
      %1755 = vmatprep.subr.mxu0 0.0
      %1756 = vmatpush1.msra.mxu0 0.0
      %1757 = vmatprep.subr.mxu0 0.0
      %1758 = vmatpush1.msra.mxu0 0.0
      %1759 = vmatprep.subr.mxu0 0.0
      %1760 = vmatpush1.msra.mxu0 0.0
      %1761 = vmatprep.subr.mxu0 0.0
      %1762 = vmatpush1.msra.mxu0 0.0
      %1763 = vmatprep.subr.mxu0 0.0
      %1764 = vmatpush1.msra.mxu0 0.0
      %1765 = vmatprep.subr.mxu0 0.0
      %1766 = vmatpush1.msra.mxu0 0.0
      %1767 = vmatprep.subr.mxu0 0.0
      %1768 = vmatpush1.msra.mxu0 0.0
      %1769 = vmatprep.subr.mxu0 0.0
      %1770 = vmatpush1.msra.mxu0 0.0
      %1771 = vmatprep.subr.mxu0 0.0
      %1772 = vmatpush1.msra.mxu0 0.0
      %1773 = vmatprep.mubr.f32.mxu0 0.0
      %1774 = vmatmul.mubr.f32.gmra.mrb[0].mxu0 %v1133
      %v1775 = vpop.f32.mrb[0].mxu0
      %v1776 = vadd.f32 %v1707, %v1775
      %v1777 = vpop.f32.mrb[0].mxu0
      %1778 = vmatprep.mubr.f32.mxu0 0.0
      %1779 = vmatmul.mubr.f32.gmra.mrb[0].mxu0 %v1136
      %v1780 = vpop.f32.mrb[0].mxu0
      %v1781 = vadd.f32 %v1707, %v1780
      %v1782 = vpop.f32.mrb[0].mxu0
      %1783 = vdwg.mxu0
      %s1784 = scalar_lea.vmem %s21, 192
      %v1785 = vld [vmem:[%s1784] sm:$0xff]
      %v1786 = vld [vmem:[%s1784 + $0x8] sm:$0xff]
      %v1787 = vld [vmem:[%s1784 + $0x10] sm:$0xff]
      %v1788 = vld [vmem:[%s1784 + $0x18] sm:$0xff]
      %v1789 = vld [vmem:[%s1784 + $0x20] sm:$0xff]
      %v1790 = vld [vmem:[%s1784 + $0x28] sm:$0xff]
      %v1791 = vld [vmem:[%s1784 + $0x30] sm:$0xff]
      %v1792 = vld [vmem:[%s1784 + $0x38] sm:$0xff]
      %s1793 = scalar_lea.vmem %s23, 3
      %v1794 = vld [vmem:[%s1793] sm:$0x1]
      %v1796 = vlaneseq
      %v1797 = vshrl.u32 %v1796, 7
      %v1798 = vsub.s32 0, %v1797
      %v1799 = vrot.slane %v1794, %v1798
      %1801 = vmatprep.subr.mxu0 0.0
      %1802 = vmatpush1.msra.mxu0 %v1785
      %1803 = vmatprep.subr.mxu0 0.0
      %1804 = vmatpush1.msra.mxu0 %v1786
      %1805 = vmatprep.subr.mxu0 0.0
      %1806 = vmatpush1.msra.mxu0 %v1787
      %1807 = vmatprep.subr.mxu0 0.0
      %1808 = vmatpush1.msra.mxu0 %v1788
      %1809 = vmatprep.subr.mxu0 0.0
      %1810 = vmatpush1.msra.mxu0 %v1789
      %1811 = vmatprep.subr.mxu0 0.0
      %1812 = vmatpush1.msra.mxu0 %v1790
      %1813 = vmatprep.subr.mxu0 0.0
      %1814 = vmatpush1.msra.mxu0 %v1791
      %1815 = vmatprep.subr.mxu0 0.0
      %1816 = vmatpush1.msra.mxu0 %v1792
      %1817 = vmatprep.subr.mxu0 0.0
      %1818 = vmatpush1.msra.mxu0 0.0
      %1819 = vmatprep.subr.mxu0 0.0
      %1820 = vmatpush1.msra.mxu0 0.0
      %1821 = vmatprep.subr.mxu0 0.0
      %1822 = vmatpush1.msra.mxu0 0.0
      %1823 = vmatprep.subr.mxu0 0.0
      %1824 = vmatpush1.msra.mxu0 0.0
      %1825 = vmatprep.subr.mxu0 0.0
      %1826 = vmatpush1.msra.mxu0 0.0
      %1827 = vmatprep.subr.mxu0 0.0
      %1828 = vmatpush1.msra.mxu0 0.0
      %1829 = vmatprep.subr.mxu0 0.0
      %1830 = vmatpush1.msra.mxu0 0.0
      %1831 = vmatprep.subr.mxu0 0.0
      %1832 = vmatpush1.msra.mxu0 0.0
      %1833 = vmatprep.subr.mxu0 0.0
      %1834 = vmatpush1.msra.mxu0 0.0
      %1835 = vmatprep.subr.mxu0 0.0
      %1836 = vmatpush1.msra.mxu0 0.0
      %1837 = vmatprep.subr.mxu0 0.0
      %1838 = vmatpush1.msra.mxu0 0.0
      %1839 = vmatprep.subr.mxu0 0.0
      %1840 = vmatpush1.msra.mxu0 0.0
      %1841 = vmatprep.subr.mxu0 0.0
      %1842 = vmatpush1.msra.mxu0 0.0
      %1843 = vmatprep.subr.mxu0 0.0
      %1844 = vmatpush1.msra.mxu0 0.0
      %1845 = vmatprep.subr.mxu0 0.0
      %1846 = vmatpush1.msra.mxu0 0.0
      %1847 = vmatprep.subr.mxu0 0.0
      %1848 = vmatpush1.msra.mxu0 0.0
      %1849 = vmatprep.subr.mxu0 0.0
      %1850 = vmatpush1.msra.mxu0 0.0
      %1851 = vmatprep.subr.mxu0 0.0
      %1852 = vmatpush1.msra.mxu0 0.0
      %1853 = vmatprep.subr.mxu0 0.0
      %1854 = vmatpush1.msra.mxu0 0.0
      %1855 = vmatprep.subr.mxu0 0.0
      %1856 = vmatpush1.msra.mxu0 0.0
      %1857 = vmatprep.subr.mxu0 0.0
      %1858 = vmatpush1.msra.mxu0 0.0
      %1859 = vmatprep.subr.mxu0 0.0
      %1860 = vmatpush1.msra.mxu0 0.0
      %1861 = vmatprep.subr.mxu0 0.0
      %1862 = vmatpush1.msra.mxu0 0.0
      %1863 = vmatprep.subr.mxu0 0.0
      %1864 = vmatpush1.msra.mxu0 0.0
      %1865 = vmatprep.mubr.f32.mxu0 0.0
      %1866 = vmatmul.mubr.f32.gmra.mrb[0].mxu0 %v1133
      %v1867 = vpop.f32.mrb[0].mxu0
      %v1868 = vadd.f32 %v1799, %v1867
      %v1869 = vpop.f32.mrb[0].mxu0
      %1870 = vmatprep.mubr.f32.mxu0 0.0
      %1871 = vmatmul.mubr.f32.gmra.mrb[0].mxu0 %v1136
      %v1872 = vpop.f32.mrb[0].mxu0
      %v1873 = vadd.f32 %v1799, %v1872
      %v1874 = vpop.f32.mrb[0].mxu0
      %1875 = vdwg.mxu0
      %s1876 = scalar_lea.vmem %s21, 320
      %v1877 = vld [vmem:[%s1876] sm:$0xff]
      %v1878 = vld [vmem:[%s1876 + $0x8] sm:$0xff]
      %v1879 = vld [vmem:[%s1876 + $0x10] sm:$0xff]
      %v1880 = vld [vmem:[%s1876 + $0x18] sm:$0xff]
      %v1881 = vld [vmem:[%s1876 + $0x20] sm:$0xff]
      %v1882 = vld [vmem:[%s1876 + $0x28] sm:$0xff]
      %v1883 = vld [vmem:[%s1876 + $0x30] sm:$0xff]
      %v1884 = vld [vmem:[%s1876 + $0x38] sm:$0xff]
      %s1885 = scalar_lea.vmem %s23, 5
      %v1886 = vld [vmem:[%s1885] sm:$0x1]
      %v1888 = vlaneseq
      %v1889 = vshrl.u32 %v1888, 7
      %v1890 = vsub.s32 0, %v1889
      %v1891 = vrot.slane %v1886, %v1890
      %1893 = vmatprep.subr.mxu0 0.0
      %1894 = vmatpush1.msra.mxu0 %v1877
      %1895 = vmatprep.subr.mxu0 0.0
      %1896 = vmatpush1.msra.mxu0 %v1878
      %1897 = vmatprep.subr.mxu0 0.0
      %1898 = vmatpush1.msra.mxu0 %v1879
      %1899 = vmatprep.subr.mxu0 0.0
      %1900 = vmatpush1.msra.mxu0 %v1880
      %1901 = vmatprep.subr.mxu0 0.0
      %1902 = vmatpush1.msra.mxu0 %v1881
      %1903 = vmatprep.subr.mxu0 0.0
      %1904 = vmatpush1.msra.mxu0 %v1882
      %1905 = vmatprep.subr.mxu0 0.0
      %1906 = vmatpush1.msra.mxu0 %v1883
      %1907 = vmatprep.subr.mxu0 0.0
      %1908 = vmatpush1.msra.mxu0 %v1884
      %1909 = vmatprep.subr.mxu0 0.0
      %1910 = vmatpush1.msra.mxu0 0.0
      %1911 = vmatprep.subr.mxu0 0.0
      %1912 = vmatpush1.msra.mxu0 0.0
      %1913 = vmatprep.subr.mxu0 0.0
      %1914 = vmatpush1.msra.mxu0 0.0
      %1915 = vmatprep.subr.mxu0 0.0
      %1916 = vmatpush1.msra.mxu0 0.0
      %1917 = vmatprep.subr.mxu0 0.0
      %1918 = vmatpush1.msra.mxu0 0.0
      %1919 = vmatprep.subr.mxu0 0.0
      %1920 = vmatpush1.msra.mxu0 0.0
      %1921 = vmatprep.subr.mxu0 0.0
      %1922 = vmatpush1.msra.mxu0 0.0
      %1923 = vmatprep.subr.mxu0 0.0
      %1924 = vmatpush1.msra.mxu0 0.0
      %1925 = vmatprep.subr.mxu0 0.0
      %1926 = vmatpush1.msra.mxu0 0.0
      %1927 = vmatprep.subr.mxu0 0.0
      %1928 = vmatpush1.msra.mxu0 0.0
      %1929 = vmatprep.subr.mxu0 0.0
      %1930 = vmatpush1.msra.mxu0 0.0
      %1931 = vmatprep.subr.mxu0 0.0
      %1932 = vmatpush1.msra.mxu0 0.0
      %1933 = vmatprep.subr.mxu0 0.0
      %1934 = vmatpush1.msra.mxu0 0.0
      %1935 = vmatprep.subr.mxu0 0.0
      %1936 = vmatpush1.msra.mxu0 0.0
      %1937 = vmatprep.subr.mxu0 0.0
      %1938 = vmatpush1.msra.mxu0 0.0
      %1939 = vmatprep.subr.mxu0 0.0
      %1940 = vmatpush1.msra.mxu0 0.0
      %1941 = vmatprep.subr.mxu0 0.0
      %1942 = vmatpush1.msra.mxu0 0.0
      %1943 = vmatprep.subr.mxu0 0.0
      %1944 = vmatpush1.msra.mxu0 0.0
      %1945 = vmatprep.subr.mxu0 0.0
      %1946 = vmatpush1.msra.mxu0 0.0
      %1947 = vmatprep.subr.mxu0 0.0
      %1948 = vmatpush1.msra.mxu0 0.0
      %1949 = vmatprep.subr.mxu0 0.0
      %1950 = vmatpush1.msra.mxu0 0.0
      %1951 = vmatprep.subr.mxu0 0.0
      %1952 = vmatpush1.msra.mxu0 0.0
      %1953 = vmatprep.subr.mxu0 0.0
      %1954 = vmatpush1.msra.mxu0 0.0
      %1955 = vmatprep.subr.mxu0 0.0
      %1956 = vmatpush1.msra.mxu0 0.0
      %1957 = vmatprep.mubr.f32.mxu0 0.0
      %1958 = vmatmul.mubr.f32.gmra.mrb[0].mxu0 %v1133
      %v1959 = vpop.f32.mrb[0].mxu0
      %v1960 = vadd.f32 %v1891, %v1959
      %v1961 = vpop.f32.mrb[0].mxu0
      %1962 = vmatprep.mubr.f32.mxu0 0.0
      %1963 = vmatmul.mubr.f32.gmra.mrb[0].mxu0 %v1136
      %v1964 = vpop.f32.mrb[0].mxu0
      %v1965 = vadd.f32 %v1891, %v1964
      %v1966 = vpop.f32.mrb[0].mxu0
      %1967 = vdwg.mxu0
      %v1969 = vsel %vm1397, %v1776, 0
      %v1972 = vsel %vm1397, %v1781, 0
      %v1975 = vsel %vm1397, %v1868, 0
      %v1978 = vsel %vm1397, %v1873, 0
      %1980 = vmatprep.subr.mxu0 0.0
      %1981 = vmatpush1.xpose.msra.mxu0 %v1975
      %1982 = vmatprep.subr.mxu0 0.0
      %1983 = vmatpush1.xpose.msra.mxu0 %v1978
      %1984 = vmatprep.subr.mxu0 0.0
      %1985 = vmatpush1.xpose.msra.mxu0 0.0
      %1986 = vmatprep.subr.mxu0 0.0
      %1987 = vmatpush1.xpose.msra.mxu0 0.0
      %1988 = vmatprep.subr.mxu0 0.0
      %1989 = vmatpush1.xpose.msra.mxu0 0.0
      %1990 = vmatprep.subr.mxu0 0.0
      %1991 = vmatpush1.xpose.msra.mxu0 0.0
      %1992 = vmatprep.subr.mxu0 0.0
      %1993 = vmatpush1.xpose.msra.mxu0 0.0
      %1994 = vmatprep.subr.mxu0 0.0
      %1995 = vmatpush1.xpose.msra.mxu0 0.0
      %1996 = vmatprep.subr.mxu0 0.0
      %1997 = vmatpush1.xpose.msra.mxu0 0.0
      %1998 = vmatprep.subr.mxu0 0.0
      %1999 = vmatpush1.xpose.msra.mxu0 0.0
      %2000 = vmatprep.subr.mxu0 0.0
      %2001 = vmatpush1.xpose.msra.mxu0 0.0
      %2002 = vmatprep.subr.mxu0 0.0
      %2003 = vmatpush1.xpose.msra.mxu0 0.0
      %2004 = vmatprep.subr.mxu0 0.0
      %2005 = vmatpush1.xpose.msra.mxu0 0.0
      %2006 = vmatprep.subr.mxu0 0.0
      %2007 = vmatpush1.xpose.msra.mxu0 0.0
      %2008 = vmatprep.subr.mxu0 0.0
      %2009 = vmatpush1.xpose.msra.mxu0 0.0
      %2010 = vmatprep.subr.mxu0 0.0
      %2011 = vmatpush1.xpose.msra.mxu0 0.0
      %2012 = vmatprep.subr.mxu0 0.0
      %2013 = vmatpush1.xpose.msra.mxu0 0.0
      %2014 = vmatprep.subr.mxu0 0.0
      %2015 = vmatpush1.xpose.msra.mxu0 0.0
      %2016 = vmatprep.subr.mxu0 0.0
      %2017 = vmatpush1.xpose.msra.mxu0 0.0
      %2018 = vmatprep.subr.mxu0 0.0
      %2019 = vmatpush1.xpose.msra.mxu0 0.0
      %2020 = vmatprep.subr.mxu0 0.0
      %2021 = vmatpush1.xpose.msra.mxu0 0.0
      %2022 = vmatprep.subr.mxu0 0.0
      %2023 = vmatpush1.xpose.msra.mxu0 0.0
      %2024 = vmatprep.subr.mxu0 0.0
      %2025 = vmatpush1.xpose.msra.mxu0 0.0
      %2026 = vmatprep.subr.mxu0 0.0
      %2027 = vmatpush1.xpose.msra.mxu0 0.0
      %2028 = vmatprep.subr.mxu0 0.0
      %2029 = vmatpush1.xpose.msra.mxu0 0.0
      %2030 = vmatprep.subr.mxu0 0.0
      %2031 = vmatpush1.xpose.msra.mxu0 0.0
      %2032 = vmatprep.subr.mxu0 0.0
      %2033 = vmatpush1.xpose.msra.mxu0 0.0
      %2034 = vmatprep.subr.mxu0 0.0
      %2035 = vmatpush1.xpose.msra.mxu0 0.0
      %2036 = vmatprep.subr.mxu0 0.0
      %2037 = vmatpush1.xpose.msra.mxu0 0.0
      %2038 = vmatprep.subr.mxu0 0.0
      %2039 = vmatpush1.xpose.msra.mxu0 0.0
      %2040 = vmatprep.subr.mxu0 0.0
      %2041 = vmatpush1.xpose.msra.mxu0 0.0
      %2042 = vmatprep.subr.mxu0 0.0
      %2043 = vmatpush1.xpose.msra.mxu0 0.0
      %2044 = vmatprep.mubr.f32.mxu0 0.0
      %2045 = vmatmul.mubr.f32.gmra.mrb[0].mxu0 %v1969
      %v2046 = vpop.f32.mrb[0].mxu0
      %v2047 = vadd.f32 0.0, %v2046
      %v2048 = vpop.f32.mrb[0].mxu0
      %2049 = vmatprep.mubr.f32.mxu0 0.0
      %2050 = vmatmul.mubr.f32.gmra.mrb[0].mxu0 %v1972
      %v2051 = vpop.f32.mrb[0].mxu0
      %v2052 = vadd.f32 0.0, %v2051
      %v2053 = vpop.f32.mrb[0].mxu0
      %2054 = vdwg.mxu0
      %v2055 = vmul.f32 %v2047, 0.17677669
      %v2056 = vmul.f32 %v2052, 0.17677669
      %v2057 = vadd.f32 %v2055, %v1491
      %v2058 = vadd.f32 %v2056, %v1491
      %v2059 = vsel %vm1495, %v2057, -inf
      %2060 = vmax.xlane.f32.xlu0 %v2059
      %v2061 = vpop.xlane.xlu0 %2060
      %v2062 = vsel %vm1495, %v2058, -inf
      %2063 = vmax.xlane.f32.xlu0 %v2062
      %v2064 = vpop.xlane.xlu0 %2063
      %v2065 = vsub.f32 %v2057, %v2061
      %v2066 = vsub.f32 %v2058, %v2064
      %v2067 = vmul.f32 %v2065, 1.442695
      %v2068 = vpow.pop %v2067
      %v2069 = vmul.f32 %v2066, 1.442695
      %v2070 = vpow.pop %v2069
      %v2071 = vsel %vm1495, %v2068, 0.0
      %2072 = vadd.xlane.f32.xlu0 %v2071
      %v2073 = vpop.xlane.xlu0 %2072
      %v2074 = vsel %vm1495, %v2070, 0.0
      %2075 = vadd.xlane.f32.xlu0 %v2074
      %v2076 = vpop.xlane.xlu0 %2075
      %v2077 = vrcp.pop %v2073
      %v2078 = vrcp.pop %v2076
      %v2079 = vmul.f32 %v2068, %v2077
      %v2080 = vmul.f32 %v2070, %v2078
      %v2082 = vsel %vm1495, %v2079, 0
      %v2085 = vsel %vm1495, %v2080, 0
      %2087 = vmatprep.subr.mxu0 0.0
      %2088 = vmatpush1.msra.mxu0 %v1960
      %2089 = vmatprep.subr.mxu0 0.0
      %2090 = vmatpush1.msra.mxu0 %v1965
      %2091 = vmatprep.subr.mxu0 0.0
      %2092 = vmatpush1.msra.mxu0 0.0
      %2093 = vmatprep.subr.mxu0 0.0
      %2094 = vmatpush1.msra.mxu0 0.0
      %2095 = vmatprep.subr.mxu0 0.0
      %2096 = vmatpush1.msra.mxu0 0.0
      %2097 = vmatprep.subr.mxu0 0.0
      %2098 = vmatpush1.msra.mxu0 0.0
      %2099 = vmatprep.subr.mxu0 0.0
      %2100 = vmatpush1.msra.mxu0 0.0
      %2101 = vmatprep.subr.mxu0 0.0
      %2102 = vmatpush1.msra.mxu0 0.0
      %2103 = vmatprep.subr.mxu0 0.0
      %2104 = vmatpush1.msra.mxu0 0.0
      %2105 = vmatprep.subr.mxu0 0.0
      %2106 = vmatpush1.msra.mxu0 0.0
      %2107 = vmatprep.subr.mxu0 0.0
      %2108 = vmatpush1.msra.mxu0 0.0
      %2109 = vmatprep.subr.mxu0 0.0
      %2110 = vmatpush1.msra.mxu0 0.0
      %2111 = vmatprep.subr.mxu0 0.0
      %2112 = vmatpush1.msra.mxu0 0.0
      %2113 = vmatprep.subr.mxu0 0.0
      %2114 = vmatpush1.msra.mxu0 0.0
      %2115 = vmatprep.subr.mxu0 0.0
      %2116 = vmatpush1.msra.mxu0 0.0
      %2117 = vmatprep.subr.mxu0 0.0
      %2118 = vmatpush1.msra.mxu0 0.0
      %2119 = vmatprep.subr.mxu0 0.0
      %2120 = vmatpush1.msra.mxu0 0.0
      %2121 = vmatprep.subr.mxu0 0.0
      %2122 = vmatpush1.msra.mxu0 0.0
      %2123 = vmatprep.subr.mxu0 0.0
      %2124 = vmatpush1.msra.mxu0 0.0
      %2125 = vmatprep.subr.mxu0 0.0
      %2126 = vmatpush1.msra.mxu0 0.0
      %2127 = vmatprep.subr.mxu0 0.0
      %2128 = vmatpush1.msra.mxu0 0.0
      %2129 = vmatprep.subr.mxu0 0.0
      %2130 = vmatpush1.msra.mxu0 0.0
      %2131 = vmatprep.subr.mxu0 0.0
      %2132 = vmatpush1.msra.mxu0 0.0
      %2133 = vmatprep.subr.mxu0 0.0
      %2134 = vmatpush1.msra.mxu0 0.0
      %2135 = vmatprep.subr.mxu0 0.0
      %2136 = vmatpush1.msra.mxu0 0.0
      %2137 = vmatprep.subr.mxu0 0.0
      %2138 = vmatpush1.msra.mxu0 0.0
      %2139 = vmatprep.subr.mxu0 0.0
      %2140 = vmatpush1.msra.mxu0 0.0
      %2141 = vmatprep.subr.mxu0 0.0
      %2142 = vmatpush1.msra.mxu0 0.0
      %2143 = vmatprep.subr.mxu0 0.0
      %2144 = vmatpush1.msra.mxu0 0.0
      %2145 = vmatprep.subr.mxu0 0.0
      %2146 = vmatpush1.msra.mxu0 0.0
      %2147 = vmatprep.subr.mxu0 0.0
      %2148 = vmatpush1.msra.mxu0 0.0
      %2149 = vmatprep.subr.mxu0 0.0
      %2150 = vmatpush1.msra.mxu0 0.0
      %2151 = vmatprep.mubr.f32.mxu0 0.0
      %2152 = vmatmul.mubr.f32.gmra.mrb[0].mxu0 %v2082
      %v2153 = vpop.f32.mrb[0].mxu0
      %v2154 = vadd.f32 0.0, %v2153
      %v2155 = vpop.f32.mrb[0].mxu0
      %2156 = vmatprep.mubr.f32.mxu0 0.0
      %2157 = vmatmul.mubr.f32.gmra.mrb[0].mxu0 %v2085
      %v2158 = vpop.f32.mrb[0].mxu0
      %v2159 = vadd.f32 0.0, %v2158
      %v2160 = vpop.f32.mrb[0].mxu0
      %2161 = vdwg.mxu0
      %s2162 = scalar_lea.vmem %s25, 32
      %v2163 = vld [vmem:[%s2162] sm:$0xff]
      %v2164 = vld [vmem:[%s2162 + $0x8] sm:$0xff]
      %v2165 = vld [vmem:[%s2162 + $0x10] sm:$0xff]
      %v2166 = vld [vmem:[%s2162 + $0x18] sm:$0xff]
      %v2168 = vsel %vm1397, %v2154, 0
      %v2171 = vsel %vm1397, %v2159, 0
      %2173 = vmatprep.subr.mxu0 0.0
      %2174 = vmatpush1.msra.mxu0 %v2163
      %2175 = vmatprep.subr.mxu0 0.0
      %2176 = vmatpush1.msra.mxu0 %v2164
      %2177 = vmatprep.subr.mxu0 0.0
      %2178 = vmatpush1.msra.mxu0 %v2165
      %2179 = vmatprep.subr.mxu0 0.0
      %2180 = vmatpush1.msra.mxu0 %v2166
      %2181 = vmatprep.subr.mxu0 0.0
      %2182 = vmatpush1.msra.mxu0 0.0
      %2183 = vmatprep.subr.mxu0 0.0
      %2184 = vmatpush1.msra.mxu0 0.0
      %2185 = vmatprep.subr.mxu0 0.0
      %2186 = vmatpush1.msra.mxu0 0.0
      %2187 = vmatprep.subr.mxu0 0.0
      %2188 = vmatpush1.msra.mxu0 0.0
      %2189 = vmatprep.subr.mxu0 0.0
      %2190 = vmatpush1.msra.mxu0 0.0
      %2191 = vmatprep.subr.mxu0 0.0
      %2192 = vmatpush1.msra.mxu0 0.0
      %2193 = vmatprep.subr.mxu0 0.0
      %2194 = vmatpush1.msra.mxu0 0.0
      %2195 = vmatprep.subr.mxu0 0.0
      %2196 = vmatpush1.msra.mxu0 0.0
      %2197 = vmatprep.subr.mxu0 0.0
      %2198 = vmatpush1.msra.mxu0 0.0
      %2199 = vmatprep.subr.mxu0 0.0
      %2200 = vmatpush1.msra.mxu0 0.0
      %2201 = vmatprep.subr.mxu0 0.0
      %2202 = vmatpush1.msra.mxu0 0.0
      %2203 = vmatprep.subr.mxu0 0.0
      %2204 = vmatpush1.msra.mxu0 0.0
      %2205 = vmatprep.subr.mxu0 0.0
      %2206 = vmatpush1.msra.mxu0 0.0
      %2207 = vmatprep.subr.mxu0 0.0
      %2208 = vmatpush1.msra.mxu0 0.0
      %2209 = vmatprep.subr.mxu0 0.0
      %2210 = vmatpush1.msra.mxu0 0.0
      %2211 = vmatprep.subr.mxu0 0.0
      %2212 = vmatpush1.msra.mxu0 0.0
      %2213 = vmatprep.subr.mxu0 0.0
      %2214 = vmatpush1.msra.mxu0 0.0
      %2215 = vmatprep.subr.mxu0 0.0
      %2216 = vmatpush1.msra.mxu0 0.0
      %2217 = vmatprep.subr.mxu0 0.0
      %2218 = vmatpush1.msra.mxu0 0.0
      %2219 = vmatprep.subr.mxu0 0.0
      %2220 = vmatpush1.msra.mxu0 0.0
      %2221 = vmatprep.subr.mxu0 0.0
      %2222 = vmatpush1.msra.mxu0 0.0
      %2223 = vmatprep.subr.mxu0 0.0
      %2224 = vmatpush1.msra.mxu0 0.0
      %2225 = vmatprep.subr.mxu0 0.0
      %2226 = vmatpush1.msra.mxu0 0.0
      %2227 = vmatprep.subr.mxu0 0.0
      %2228 = vmatpush1.msra.mxu0 0.0
      %2229 = vmatprep.subr.mxu0 0.0
      %2230 = vmatpush1.msra.mxu0 0.0
      %2231 = vmatprep.subr.mxu0 0.0
      %2232 = vmatpush1.msra.mxu0 0.0
      %2233 = vmatprep.subr.mxu0 0.0
      %2234 = vmatpush1.msra.mxu0 0.0
      %2235 = vmatprep.subr.mxu0 0.0
      %2236 = vmatpush1.msra.mxu0 0.0
      %2237 = vmatprep.mubr.f32.mxu0 0.0
      %2238 = vmatmul.mubr.f32.gmra.mrb[0].mxu0 %v2168
      %v2239 = vpop.f32.mrb[0].mxu0
      %v2240 = vadd.f32 0.0, %v2239
      %v2241 = vpop.f32.mrb[0].mxu0
      %2242 = vmatprep.mubr.f32.mxu0 0.0
      %2243 = vmatmul.mubr.f32.gmra.mrb[0].mxu0 %v2171
      %v2244 = vpop.f32.mrb[0].mxu0
      %v2245 = vadd.f32 0.0, %v2244
      %v2246 = vpop.f32.mrb[0].mxu0
      %2247 = vdwg.mxu0
      %v2248 = vadd.f32 %v1690, %v2240
      %v2249 = vadd.f32 %v1691, %v2245
      %v2250 = vadd.f32 %v2248, %v1113
      %v2251 = vadd.f32 %v2249, %v1114
      %v2252 = vld [vmem:[%s29] sm:$0x1]
      %v2253 = vld [vmem:[%s31] sm:$0x1]
      %v2254 = vsel %vm970, %v2250, 0.0
      %2255 = vadd.xlane.f32.xlu0 %v2254
      %v2256 = vpop.xlane.xlu0 %2255
      %v2257 = vsel %vm970, %v2251, 0.0
      %2258 = vadd.xlane.f32.xlu0 %v2257
      %v2259 = vpop.xlane.xlu0 %2258
      %v2260 = vmul.f32 %v2256, %v1078
      %v2261 = vmul.f32 %v2259, %v1078
      %v2262 = vsub.f32 %v2250, %v2260
      %v2263 = vsub.f32 %v2251, %v2261
      %v2264 = vmul.f32 %v2262, %v2262
      %v2265 = vmul.f32 %v2263, %v2263
      %v2266 = vsel %vm970, %v2264, 0.0
      %2267 = vadd.xlane.f32.xlu0 %v2266
      %v2268 = vpop.xlane.xlu0 %2267
      %v2269 = vsel %vm970, %v2265, 0.0
      %2270 = vadd.xlane.f32.xlu0 %v2269
      %v2271 = vpop.xlane.xlu0 %2270
      %v2272 = vmul.f32 %v2268, %v1078
      %v2273 = vmul.f32 %v2271, %v1078
      %v2274 = vadd.f32 %v2272, 1e-12
      %v2275 = vadd.f32 %v2273, 1e-12
      %v2276 = vrsqrt.pop %v2274
      %v2277 = vrsqrt.pop %v2275
      %v2278 = vmul.f32 %v2262, %v2276
      %v2279 = vmul.f32 %v2263, %v2277
      %v2281 = vlaneseq
      %v2282 = vshrl.u32 %v2281, 7
      %v2283 = vsub.s32 0, %v2282
      %v2284 = vrot.slane %v2252, %v2283
      %v2286 = vmul.f32 %v2278, %v2284
      %v2287 = vmul.f32 %v2279, %v2284
      %v2289 = vlaneseq
      %v2290 = vshrl.u32 %v2289, 7
      %v2291 = vsub.s32 0, %v2290
      %v2292 = vrot.slane %v2253, %v2291
      %v2294 = vadd.f32 %v2286, %v2292
      %v2295 = vadd.f32 %v2287, %v2292
      %v2296 = vld [vmem:[%s33] sm:$0xff]
      %v2297 = vld [vmem:[%s33 + $0x8] sm:$0xff]
      %v2298 = vld [vmem:[%s33 + $0x10] sm:$0xff]
      %v2299 = vld [vmem:[%s33 + $0x18] sm:$0xff]
      %v2300 = vld [vmem:[%s33 + $0x20] sm:$0xff]
      %v2301 = vld [vmem:[%s33 + $0x28] sm:$0xff]
      %v2302 = vld [vmem:[%s33 + $0x30] sm:$0xff]
      %v2303 = vld [vmem:[%s33 + $0x38] sm:$0xff]
      %v2304 = vld [vmem:[%s35] sm:$0x1]
      %v2306 = vlaneseq
      %v2307 = vshrl.u32 %v2306, 7
      %v2308 = vsub.s32 0, %v2307
      %v2309 = vrot.slane %v2304, %v2308
      %v2312 = vsel %vm970, %v2294, 0
      %v2315 = vsel %vm970, %v2295, 0
      %2317 = vmatprep.subr.mxu0 0.0
      %2318 = vmatpush1.msra.mxu0 %v2296
      %2319 = vmatprep.subr.mxu0 0.0
      %2320 = vmatpush1.msra.mxu0 %v2297
      %2321 = vmatprep.subr.mxu0 0.0
      %2322 = vmatpush1.msra.mxu0 %v2298
      %2323 = vmatprep.subr.mxu0 0.0
      %2324 = vmatpush1.msra.mxu0 %v2299
      %2325 = vmatprep.subr.mxu0 0.0
      %2326 = vmatpush1.msra.mxu0 %v2300
      %2327 = vmatprep.subr.mxu0 0.0
      %2328 = vmatpush1.msra.mxu0 %v2301
      %2329 = vmatprep.subr.mxu0 0.0
      %2330 = vmatpush1.msra.mxu0 %v2302
      %2331 = vmatprep.subr.mxu0 0.0
      %2332 = vmatpush1.msra.mxu0 %v2303
      %2333 = vmatprep.subr.mxu0 0.0
      %2334 = vmatpush1.msra.mxu0 0.0
      %2335 = vmatprep.subr.mxu0 0.0
      %2336 = vmatpush1.msra.mxu0 0.0
      %2337 = vmatprep.subr.mxu0 0.0
      %2338 = vmatpush1.msra.mxu0 0.0
      %2339 = vmatprep.subr.mxu0 0.0
      %2340 = vmatpush1.msra.mxu0 0.0
      %2341 = vmatprep.subr.mxu0 0.0
      %2342 = vmatpush1.msra.mxu0 0.0
      %2343 = vmatprep.subr.mxu0 0.0
      %2344 = vmatpush1.msra.mxu0 0.0
      %2345 = vmatprep.subr.mxu0 0.0
      %2346 = vmatpush1.msra.mxu0 0.0
      %2347 = vmatprep.subr.mxu0 0.0
      %2348 = vmatpush1.msra.mxu0 0.0
      %2349 = vmatprep.subr.mxu0 0.0
      %2350 = vmatpush1.msra.mxu0 0.0
      %2351 = vmatprep.subr.mxu0 0.0
      %2352 = vmatpush1.msra.mxu0 0.0
      %2353 = vmatprep.subr.mxu0 0.0
      %2354 = vmatpush1.msra.mxu0 0.0
      %2355 = vmatprep.subr.mxu0 0.0
      %2356 = vmatpush1.msra.mxu0 0.0
      %2357 = vmatprep.subr.mxu0 0.0
      %2358 = vmatpush1.msra.mxu0 0.0
      %2359 = vmatprep.subr.mxu0 0.0
      %2360 = vmatpush1.msra.mxu0 0.0
      %2361 = vmatprep.subr.mxu0 0.0
      %2362 = vmatpush1.msra.mxu0 0.0
      %2363 = vmatprep.subr.mxu0 0.0
      %2364 = vmatpush1.msra.mxu0 0.0
      %2365 = vmatprep.subr.mxu0 0.0
      %2366 = vmatpush1.msra.mxu0 0.0
      %2367 = vmatprep.subr.mxu0 0.0
      %2368 = vmatpush1.msra.mxu0 0.0
      %2369 = vmatprep.subr.mxu0 0.0
      %2370 = vmatpush1.msra.mxu0 0.0
      %2371 = vmatprep.subr.mxu0 0.0
      %2372 = vmatpush1.msra.mxu0 0.0
      %2373 = vmatprep.subr.mxu0 0.0
      %2374 = vmatpush1.msra.mxu0 0.0
      %2375 = vmatprep.subr.mxu0 0.0
      %2376 = vmatpush1.msra.mxu0 0.0
      %2377 = vmatprep.subr.mxu0 0.0
      %2378 = vmatpush1.msra.mxu0 0.0
      %2379 = vmatprep.subr.mxu0 0.0
      %2380 = vmatpush1.msra.mxu0 0.0
      %2381 = vmatprep.mubr.f32.mxu0 0.0
      %2382 = vmatmul.mubr.f32.gmra.mrb[0].mxu0 %v2312
      %v2383 = vpop.f32.mrb[0].mxu0
      %v2384 = vadd.f32 %v2309, %v2383
      %v2385 = vpop.f32.mrb[0].mxu0
      %2386 = vmatprep.mubr.f32.mxu0 0.0
      %2387 = vmatmul.mubr.f32.gmra.mrb[0].mxu0 %v2315
      %v2388 = vpop.f32.mrb[0].mxu0
      %v2389 = vadd.f32 %v2309, %v2388
      %v2390 = vpop.f32.mrb[0].mxu0
      %2391 = vdwg.mxu0
      %v2392 = vmul.f32 %v2384, 0.5
      %v2393 = vmul.f32 %v2389, 0.5
      %v2394 = vmul.f32 %v2384, 0.044715
      %v2395 = vmul.f32 %v2389, 0.044715
      %v2396 = vmul.f32 %v2394, %v2384
      %v2397 = vmul.f32 %v2395, %v2389
      %v2398 = vmul.f32 %v2396, %v2384
      %v2399 = vmul.f32 %v2397, %v2389
      %v2400 = vadd.f32 %v2384, %v2398
      %v2401 = vadd.f32 %v2389, %v2399
      %v2402 = vmul.f32 %v2400, 0.7978846
      %v2403 = vmul.f32 %v2401, 0.7978846
      %v2404 = vtanh.pop %v2402
      %v2405 = vtanh.pop %v2403
      %v2406 = vadd.f32 %v2404, 1.0
      %v2407 = vadd.f32 %v2405, 1.0
      %v2408 = vmul.f32 %v2392, %v2406
      %v2409 = vmul.f32 %v2393, %v2407
      %v2410 = vld [vmem:[%s37] sm:$0xff]
      %v2411 = vld [vmem:[%s37 + $0x8] sm:$0xff]
      %v2412 = vld [vmem:[%s37 + $0x10] sm:$0xff]
      %v2413 = vld [vmem:[%s37 + $0x18] sm:$0xff]
      %v2414 = vld [vmem:[%s37 + $0x20] sm:$0xff]
      %v2415 = vld [vmem:[%s37 + $0x28] sm:$0xff]
      %v2416 = vld [vmem:[%s37 + $0x30] sm:$0xff]
      %v2417 = vld [vmem:[%s37 + $0x38] sm:$0xff]
      %v2418 = vld [vmem:[%s37 + $0x40] sm:$0xff]
      %v2419 = vld [vmem:[%s37 + $0x48] sm:$0xff]
      %v2420 = vld [vmem:[%s37 + $0x50] sm:$0xff]
      %v2421 = vld [vmem:[%s37 + $0x58] sm:$0xff]
      %v2422 = vld [vmem:[%s37 + $0x60] sm:$0xff]
      %v2423 = vld [vmem:[%s37 + $0x68] sm:$0xff]
      %v2424 = vld [vmem:[%s37 + $0x70] sm:$0xff]
      %v2425 = vld [vmem:[%s37 + $0x78] sm:$0xff]
      %v2426 = vld [vmem:[%s39] sm:$0x1]
      %v2428 = vlaneseq
      %v2429 = vshrl.u32 %v2428, 7
      %v2430 = vsub.s32 0, %v2429
      %v2431 = vrot.slane %v2426, %v2430
      %2433 = vmatprep.subr.mxu0 0.0
      %2434 = vmatpush1.msra.mxu0 %v2410
      %2435 = vmatprep.subr.mxu0 0.0
      %2436 = vmatpush1.msra.mxu0 %v2411
      %2437 = vmatprep.subr.mxu0 0.0
      %2438 = vmatpush1.msra.mxu0 %v2412
      %2439 = vmatprep.subr.mxu0 0.0
      %2440 = vmatpush1.msra.mxu0 %v2413
      %2441 = vmatprep.subr.mxu0 0.0
      %2442 = vmatpush1.msra.mxu0 %v2414
      %2443 = vmatprep.subr.mxu0 0.0
      %2444 = vmatpush1.msra.mxu0 %v2415
      %2445 = vmatprep.subr.mxu0 0.0
      %2446 = vmatpush1.msra.mxu0 %v2416
      %2447 = vmatprep.subr.mxu0 0.0
      %2448 = vmatpush1.msra.mxu0 %v2417
      %2449 = vmatprep.subr.mxu0 0.0
      %2450 = vmatpush1.msra.mxu0 %v2418
      %2451 = vmatprep.subr.mxu0 0.0
      %2452 = vmatpush1.msra.mxu0 %v2419
      %2453 = vmatprep.subr.mxu0 0.0
      %2454 = vmatpush1.msra.mxu0 %v2420
      %2455 = vmatprep.subr.mxu0 0.0
      %2456 = vmatpush1.msra.mxu0 %v2421
      %2457 = vmatprep.subr.mxu0 0.0
      %2458 = vmatpush1.msra.mxu0 %v2422
      %2459 = vmatprep.subr.mxu0 0.0
      %2460 = vmatpush1.msra.mxu0 %v2423
      %2461 = vmatprep.subr.mxu0 0.0
      %2462 = vmatpush1.msra.mxu0 %v2424
      %2463 = vmatprep.subr.mxu0 0.0
      %2464 = vmatpush1.msra.mxu0 %v2425
      %2465 = vmatprep.subr.mxu0 0.0
      %2466 = vmatpush1.msra.mxu0 0.0
      %2467 = vmatprep.subr.mxu0 0.0
      %2468 = vmatpush1.msra.mxu0 0.0
      %2469 = vmatprep.subr.mxu0 0.0
      %2470 = vmatpush1.msra.mxu0 0.0
      %2471 = vmatprep.subr.mxu0 0.0
      %2472 = vmatpush1.msra.mxu0 0.0
      %2473 = vmatprep.subr.mxu0 0.0
      %2474 = vmatpush1.msra.mxu0 0.0
      %2475 = vmatprep.subr.mxu0 0.0
      %2476 = vmatpush1.msra.mxu0 0.0
      %2477 = vmatprep.subr.mxu0 0.0
      %2478 = vmatpush1.msra.mxu0 0.0
      %2479 = vmatprep.subr.mxu0 0.0
      %2480 = vmatpush1.msra.mxu0 0.0
      %2481 = vmatprep.subr.mxu0 0.0
      %2482 = vmatpush1.msra.mxu0 0.0
      %2483 = vmatprep.subr.mxu0 0.0
      %2484 = vmatpush1.msra.mxu0 0.0
      %2485 = vmatprep.subr.mxu0 0.0
      %2486 = vmatpush1.msra.mxu0 0.0
      %2487 = vmatprep.subr.mxu0 0.0
      %2488 = vmatpush1.msra.mxu0 0.0
      %2489 = vmatprep.subr.mxu0 0.0
      %2490 = vmatpush1.msra.mxu0 0.0
      %2491 = vmatprep.subr.mxu0 0.0
      %2492 = vmatpush1.msra.mxu0 0.0
      %2493 = vmatprep.subr.mxu0 0.0
      %2494 = vmatpush1.msra.mxu0 0.0
      %2495 = vmatprep.subr.mxu0 0.0
      %2496 = vmatpush1.msra.mxu0 0.0
      %2497 = vmatprep.mubr.f32.mxu0 0.0
      %2498 = vmatmul.mubr.f32.gmra.mrb[0].mxu0 %v2408
      %v2499 = vpop.f32.mrb[0].mxu0
      %v2500 = vadd.f32 %v2431, %v2499
      %v2501 = vpop.f32.mrb[0].mxu0
      %2502 = vmatprep.mubr.f32.mxu0 0.0
      %2503 = vmatmul.mubr.f32.gmra.mrb[0].mxu0 %v2409
      %v2504 = vpop.f32.mrb[0].mxu0
      %v2505 = vadd.f32 %v2431, %v2504
      %v2506 = vpop.f32.mrb[0].mxu0
      %2507 = vdwg.mxu0
      %v2508 = vadd.f32 %v2500, %v2294
      %v2509 = vadd.f32 %v2505, %v2295
      %v2510 = vld [vmem:[%s41] sm:$0x1]
      %v2511 = vld [vmem:[%s43] sm:$0x1]
      %v2512 = vsel %vm970, %v2508, 0.0
      %2513 = vadd.xlane.f32.xlu0 %v2512
      %v2514 = vpop.xlane.xlu0 %2513
      %v2515 = vsel %vm970, %v2509, 0.0
      %2516 = vadd.xlane.f32.xlu0 %v2515
      %v2517 = vpop.xlane.xlu0 %2516
      %v2518 = vmul.f32 %v2514, %v1078
      %v2519 = vmul.f32 %v2517, %v1078
      %v2520 = vsub.f32 %v2508, %v2518
      %v2521 = vsub.f32 %v2509, %v2519
      %v2522 = vmul.f32 %v2520, %v2520
      %v2523 = vmul.f32 %v2521, %v2521
      %v2524 = vsel %vm970, %v2522, 0.0
      %2525 = vadd.xlane.f32.xlu0 %v2524
      %v2526 = vpop.xlane.xlu0 %2525
      %v2527 = vsel %vm970, %v2523, 0.0
      %2528 = vadd.xlane.f32.xlu0 %v2527
      %v2529 = vpop.xlane.xlu0 %2528
      %v2530 = vmul.f32 %v2526, %v1078
      %v2531 = vmul.f32 %v2529, %v1078
      %v2532 = vadd.f32 %v2530, 1e-12
      %v2533 = vadd.f32 %v2531, 1e-12
      %v2534 = vrsqrt.pop %v2532
      %v2535 = vrsqrt.pop %v2533
      %v2536 = vmul.f32 %v2520, %v2534
      %v2537 = vmul.f32 %v2521, %v2535
      %v2539 = vlaneseq
      %v2540 = vshrl.u32 %v2539, 7
      %v2541 = vsub.s32 0, %v2540
      %v2542 = vrot.slane %v2510, %v2541
      %v2544 = vmul.f32 %v2536, %v2542
      %v2545 = vmul.f32 %v2537, %v2542
      %v2547 = vlaneseq
      %v2548 = vshrl.u32 %v2547, 7
      %v2549 = vsub.s32 0, %v2548
      %v2550 = vrot.slane %v2511, %v2549
      %v2552 = vadd.f32 %v2544, %v2550
      %v2553 = vadd.f32 %v2545, %v2550
      %s2554 = scalar_lea.vmem %s27, 1
      %v2555 = vld [vmem:[%s2554] sm:$0x1]
      %s2556 = scalar_lea.vmem %s21, 384
      %v2557 = vld [vmem:[%s2556] sm:$0xff]
      %v2558 = vld [vmem:[%s2556 + $0x8] sm:$0xff]
      %v2559 = vld [vmem:[%s2556 + $0x10] sm:$0xff]
      %v2560 = vld [vmem:[%s2556 + $0x18] sm:$0xff]
      %v2561 = vld [vmem:[%s2556 + $0x20] sm:$0xff]
      %v2562 = vld [vmem:[%s2556 + $0x28] sm:$0xff]
      %v2563 = vld [vmem:[%s2556 + $0x30] sm:$0xff]
      %v2564 = vld [vmem:[%s2556 + $0x38] sm:$0xff]
      %s2565 = scalar_lea.vmem %s23, 6
      %v2566 = vld [vmem:[%s2565] sm:$0x1]
      %v2568 = vlaneseq
      %v2569 = vshrl.u32 %v2568, 7
      %v2570 = vsub.s32 0, %v2569
      %v2571 = vrot.slane %v2566, %v2570
      %v2574 = vsel %vm970, %v2552, 0
      %v2577 = vsel %vm970, %v2553, 0
      %2579 = vmatprep.subr.mxu0 0.0
      %2580 = vmatpush1.msra.mxu0 %v2557
      %2581 = vmatprep.subr.mxu0 0.0
      %2582 = vmatpush1.msra.mxu0 %v2558
      %2583 = vmatprep.subr.mxu0 0.0
      %2584 = vmatpush1.msra.mxu0 %v2559
      %2585 = vmatprep.subr.mxu0 0.0
      %2586 = vmatpush1.msra.mxu0 %v2560
      %2587 = vmatprep.subr.mxu0 0.0
      %2588 = vmatpush1.msra.mxu0 %v2561
      %2589 = vmatprep.subr.mxu0 0.0
      %2590 = vmatpush1.msra.mxu0 %v2562
      %2591 = vmatprep.subr.mxu0 0.0
      %2592 = vmatpush1.msra.mxu0 %v2563
      %2593 = vmatprep.subr.mxu0 0.0
      %2594 = vmatpush1.msra.mxu0 %v2564
      %2595 = vmatprep.subr.mxu0 0.0
      %2596 = vmatpush1.msra.mxu0 0.0
      %2597 = vmatprep.subr.mxu0 0.0
      %2598 = vmatpush1.msra.mxu0 0.0
      %2599 = vmatprep.subr.mxu0 0.0
      %2600 = vmatpush1.msra.mxu0 0.0
      %2601 = vmatprep.subr.mxu0 0.0
      %2602 = vmatpush1.msra.mxu0 0.0
      %2603 = vmatprep.subr.mxu0 0.0
      %2604 = vmatpush1.msra.mxu0 0.0
      %2605 = vmatprep.subr.mxu0 0.0
      %2606 = vmatpush1.msra.mxu0 0.0
      %2607 = vmatprep.subr.mxu0 0.0
      %2608 = vmatpush1.msra.mxu0 0.0
      %2609 = vmatprep.subr.mxu0 0.0
      %2610 = vmatpush1.msra.mxu0 0.0
      %2611 = vmatprep.subr.mxu0 0.0
      %2612 = vmatpush1.msra.mxu0 0.0
      %2613 = vmatprep.subr.mxu0 0.0
      %2614 = vmatpush1.msra.mxu0 0.0
      %2615 = vmatprep.subr.mxu0 0.0
      %2616 = vmatpush1.msra.mxu0 0.0
      %2617 = vmatprep.subr.mxu0 0.0
      %2618 = vmatpush1.msra.mxu0 0.0
      %2619 = vmatprep.subr.mxu0 0.0
      %2620 = vmatpush1.msra.mxu0 0.0
      %2621 = vmatprep.subr.mxu0 0.0
      %2622 = vmatpush1.msra.mxu0 0.0
      %2623 = vmatprep.subr.mxu0 0.0
      %2624 = vmatpush1.msra.mxu0 0.0
      %2625 = vmatprep.subr.mxu0 0.0
      %2626 = vmatpush1.msra.mxu0 0.0
      %2627 = vmatprep.subr.mxu0 0.0
      %2628 = vmatpush1.msra.mxu0 0.0
      %2629 = vmatprep.subr.mxu0 0.0
      %2630 = vmatpush1.msra.mxu0 0.0
      %2631 = vmatprep.subr.mxu0 0.0
      %2632 = vmatpush1.msra.mxu0 0.0
      %2633 = vmatprep.subr.mxu0 0.0
      %2634 = vmatpush1.msra.mxu0 0.0
      %2635 = vmatprep.subr.mxu0 0.0
      %2636 = vmatpush1.msra.mxu0 0.0
      %2637 = vmatprep.subr.mxu0 0.0
      %2638 = vmatpush1.msra.mxu0 0.0
      %2639 = vmatprep.subr.mxu0 0.0
      %2640 = vmatpush1.msra.mxu0 0.0
      %2641 = vmatprep.subr.mxu0 0.0
      %2642 = vmatpush1.msra.mxu0 0.0
      %2643 = vmatprep.mubr.f32.mxu0 0.0
      %2644 = vmatmul.mubr.f32.gmra.mrb[0].mxu0 %v2574
      %v2645 = vpop.f32.mrb[0].mxu0
      %v2646 = vadd.f32 %v2571, %v2645
      %v2647 = vpop.f32.mrb[0].mxu0
      %2648 = vmatprep.mubr.f32.mxu0 0.0
      %2649 = vmatmul.mubr.f32.gmra.mrb[0].mxu0 %v2577
      %v2650 = vpop.f32.mrb[0].mxu0
      %v2651 = vadd.f32 %v2571, %v2650
      %v2652 = vpop.f32.mrb[0].mxu0
      %2653 = vdwg.mxu0
      %s2654 = scalar_lea.vmem %s21, 512
      %v2655 = vld [vmem:[%s2654] sm:$0xff]
      %v2656 = vld [vmem:[%s2654 + $0x8] sm:$0xff]
      %v2657 = vld [vmem:[%s2654 + $0x10] sm:$0xff]
      %v2658 = vld [vmem:[%s2654 + $0x18] sm:$0xff]
      %v2659 = vld [vmem:[%s2654 + $0x20] sm:$0xff]
      %v2660 = vld [vmem:[%s2654 + $0x28] sm:$0xff]
      %v2661 = vld [vmem:[%s2654 + $0x30] sm:$0xff]
      %v2662 = vld [vmem:[%s2654 + $0x38] sm:$0xff]
      %s2663 = scalar_lea.vmem %s23, 8
      %v2664 = vld [vmem:[%s2663] sm:$0x1]
      %v2666 = vlaneseq
      %v2667 = vshrl.u32 %v2666, 7
      %v2668 = vsub.s32 0, %v2667
      %v2669 = vrot.slane %v2664, %v2668
      %2671 = vmatprep.subr.mxu0 0.0
      %2672 = vmatpush1.msra.mxu0 %v2655
      %2673 = vmatprep.subr.mxu0 0.0
      %2674 = vmatpush1.msra.mxu0 %v2656
      %2675 = vmatprep.subr.mxu0 0.0
      %2676 = vmatpush1.msra.mxu0 %v2657
      %2677 = vmatprep.subr.mxu0 0.0
      %2678 = vmatpush1.msra.mxu0 %v2658
      %2679 = vmatprep.subr.mxu0 0.0
      %2680 = vmatpush1.msra.mxu0 %v2659
      %2681 = vmatprep.subr.mxu0 0.0
      %2682 = vmatpush1.msra.mxu0 %v2660
      %2683 = vmatprep.subr.mxu0 0.0
      %2684 = vmatpush1.msra.mxu0 %v2661
      %2685 = vmatprep.subr.mxu0 0.0
      %2686 = vmatpush1.msra.mxu0 %v2662
      %2687 = vmatprep.subr.mxu0 0.0
      %2688 = vmatpush1.msra.mxu0 0.0
      %2689 = vmatprep.subr.mxu0 0.0
      %2690 = vmatpush1.msra.mxu0 0.0
      %2691 = vmatprep.subr.mxu0 0.0
      %2692 = vmatpush1.msra.mxu0 0.0
      %2693 = vmatprep.subr.mxu0 0.0
      %2694 = vmatpush1.msra.mxu0 0.0
      %2695 = vmatprep.subr.mxu0 0.0
      %2696 = vmatpush1.msra.mxu0 0.0
      %2697 = vmatprep.subr.mxu0 0.0
      %2698 = vmatpush1.msra.mxu0 0.0
      %2699 = vmatprep.subr.mxu0 0.0
      %2700 = vmatpush1.msra.mxu0 0.0
      %2701 = vmatprep.subr.mxu0 0.0
      %2702 = vmatpush1.msra.mxu0 0.0
      %2703 = vmatprep.subr.mxu0 0.0
      %2704 = vmatpush1.msra.mxu0 0.0
      %2705 = vmatprep.subr.mxu0 0.0
      %2706 = vmatpush1.msra.mxu0 0.0
      %2707 = vmatprep.subr.mxu0 0.0
      %2708 = vmatpush1.msra.mxu0 0.0
      %2709 = vmatprep.subr.mxu0 0.0
      %2710 = vmatpush1.msra.mxu0 0.0
      %2711 = vmatprep.subr.mxu0 0.0
      %2712 = vmatpush1.msra.mxu0 0.0
      %2713 = vmatprep.subr.mxu0 0.0
      %2714 = vmatpush1.msra.mxu0 0.0
      %2715 = vmatprep.subr.mxu0 0.0
      %2716 = vmatpush1.msra.mxu0 0.0
      %2717 = vmatprep.subr.mxu0 0.0
      %2718 = vmatpush1.msra.mxu0 0.0
      %2719 = vmatprep.subr.mxu0 0.0
      %2720 = vmatpush1.msra.mxu0 0.0
      %2721 = vmatprep.subr.mxu0 0.0
      %2722 = vmatpush1.msra.mxu0 0.0
      %2723 = vmatprep.subr.mxu0 0.0
      %2724 = vmatpush1.msra.mxu0 0.0
      %2725 = vmatprep.subr.mxu0 0.0
      %2726 = vmatpush1.msra.mxu0 0.0
      %2727 = vmatprep.subr.mxu0 0.0
      %2728 = vmatpush1.msra.mxu0 0.0
      %2729 = vmatprep.subr.mxu0 0.0
      %2730 = vmatpush1.msra.mxu0 0.0
      %2731 = vmatprep.subr.mxu0 0.0
      %2732 = vmatpush1.msra.mxu0 0.0
      %2733 = vmatprep.subr.mxu0 0.0
      %2734 = vmatpush1.msra.mxu0 0.0
      %2735 = vmatprep.mubr.f32.mxu0 0.0
      %2736 = vmatmul.mubr.f32.gmra.mrb[0].mxu0 %v2574
      %v2737 = vpop.f32.mrb[0].mxu0
      %v2738 = vadd.f32 %v2669, %v2737
      %v2739 = vpop.f32.mrb[0].mxu0
      %2740 = vmatprep.mubr.f32.mxu0 0.0
      %2741 = vmatmul.mubr.f32.gmra.mrb[0].mxu0 %v2577
      %v2742 = vpop.f32.mrb[0].mxu0
      %v2743 = vadd.f32 %v2669, %v2742
      %v2744 = vpop.f32.mrb[0].mxu0
      %2745 = vdwg.mxu0
      %s2746 = scalar_lea.vmem %s21, 640
      %v2747 = vld [vmem:[%s2746] sm:$0xff]
      %v2748 = vld [vmem:[%s2746 + $0x8] sm:$0xff]
      %v2749 = vld [vmem:[%s2746 + $0x10] sm:$0xff]
      %v2750 = vld [vmem:[%s2746 + $0x18] sm:$0xff]
      %v2751 = vld [vmem:[%s2746 + $0x20] sm:$0xff]
      %v2752 = vld [vmem:[%s2746 + $0x28] sm:$0xff]
      %v2753 = vld [vmem:[%s2746 + $0x30] sm:$0xff]
      %v2754 = vld [vmem:[%s2746 + $0x38] sm:$0xff]
      %s2755 = scalar_lea.vmem %s23, 10
      %v2756 = vld [vmem:[%s2755] sm:$0x1]
      %v2758 = vlaneseq
      %v2759 = vshrl.u32 %v2758, 7
      %v2760 = vsub.s32 0, %v2759
      %v2761 = vrot.slane %v2756, %v2760
      %2763 = vmatprep.subr.mxu0 0.0
      %2764 = vmatpush1.msra.mxu0 %v2747
      %2765 = vmatprep.subr.mxu0 0.0
      %2766 = vmatpush1.msra.mxu0 %v2748
      %2767 = vmatprep.subr.mxu0 0.0
      %2768 = vmatpush1.msra.mxu0 %v2749
      %2769 = vmatprep.subr.mxu0 0.0
      %2770 = vmatpush1.msra.mxu0 %v2750
      %2771 = vmatprep.subr.mxu0 0.0
      %2772 = vmatpush1.msra.mxu0 %v2751
      %2773 = vmatprep.subr.mxu0 0.0
      %2774 = vmatpush1.msra.mxu0 %v2752
      %2775 = vmatprep.subr.mxu0 0.0
      %2776 = vmatpush1.msra.mxu0 %v2753
      %2777 = vmatprep.subr.mxu0 0.0
      %2778 = vmatpush1.msra.mxu0 %v2754
      %2779 = vmatprep.subr.mxu0 0.0
      %2780 = vmatpush1.msra.mxu0 0.0
      %2781 = vmatprep.subr.mxu0 0.0
      %2782 = vmatpush1.msra.mxu0 0.0
      %2783 = vmatprep.subr.mxu0 0.0
      %2784 = vmatpush1.msra.mxu0 0.0
      %2785 = vmatprep.subr.mxu0 0.0
      %2786 = vmatpush1.msra.mxu0 0.0
      %2787 = vmatprep.subr.mxu0 0.0
      %2788 = vmatpush1.msra.mxu0 0.0
      %2789 = vmatprep.subr.mxu0 0.0
      %2790 = vmatpush1.msra.mxu0 0.0
      %2791 = vmatprep.subr.mxu0 0.0
      %2792 = vmatpush1.msra.mxu0 0.0
      %2793 = vmatprep.subr.mxu0 0.0
      %2794 = vmatpush1.msra.mxu0 0.0
      %2795 = vmatprep.subr.mxu0 0.0
      %2796 = vmatpush1.msra.mxu0 0.0
      %2797 = vmatprep.subr.mxu0 0.0
      %2798 = vmatpush1.msra.mxu0 0.0
      %2799 = vmatprep.subr.mxu0 0.0
      %2800 = vmatpush1.msra.mxu0 0.0
      %2801 = vmatprep.subr.mxu0 0.0
      %2802 = vmatpush1.msra.mxu0 0.0
      %2803 = vmatprep.subr.mxu0 0.0
      %2804 = vmatpush1.msra.mxu0 0.0
      %2805 = vmatprep.subr.mxu0 0.0
      %2806 = vmatpush1.msra.mxu0 0.0
      %2807 = vmatprep.subr.mxu0 0.0
      %2808 = vmatpush1.msra.mxu0 0.0
      %2809 = vmatprep.subr.mxu0 0.0
      %2810 = vmatpush1.msra.mxu0 0.0
      %2811 = vmatprep.subr.mxu0 0.0
      %2812 = vmatpush1.msra.mxu0 0.0
      %2813 = vmatprep.subr.mxu0 0.0
      %2814 = vmatpush1.msra.mxu0 0.0
      %2815 = vmatprep.subr.mxu0 0.0
      %2816 = vmatpush1.msra.mxu0 0.0
      %2817 = vmatprep.subr.mxu0 0.0
      %2818 = vmatpush1.msra.mxu0 0.0
      %2819 = vmatprep.subr.mxu0 0.0
      %2820 = vmatpush1.msra.mxu0 0.0
      %2821 = vmatprep.subr.mxu0 0.0
      %2822 = vmatpush1.msra.mxu0 0.0
      %2823 = vmatprep.subr.mxu0 0.0
      %2824 = vmatpush1.msra.mxu0 0.0
      %2825 = vmatprep.subr.mxu0 0.0
      %2826 = vmatpush1.msra.mxu0 0.0
      %2827 = vmatprep.mubr.f32.mxu0 0.0
      %2828 = vmatmul.mubr.f32.gmra.mrb[0].mxu0 %v2574
      %v2829 = vpop.f32.mrb[0].mxu0
      %v2830 = vadd.f32 %v2761, %v2829
      %v2831 = vpop.f32.mrb[0].mxu0
      %2832 = vmatprep.mubr.f32.mxu0 0.0
      %2833 = vmatmul.mubr.f32.gmra.mrb[0].mxu0 %v2577
      %v2834 = vpop.f32.mrb[0].mxu0
      %v2835 = vadd.f32 %v2761, %v2834
      %v2836 = vpop.f32.mrb[0].mxu0
      %2837 = vdwg.mxu0
      %v2839 = vsel %vm1397, %v2646, 0
      %v2842 = vsel %vm1397, %v2651, 0
      %v2845 = vsel %vm1397, %v2738, 0
      %v2848 = vsel %vm1397, %v2743, 0
      %2850 = vmatprep.subr.mxu0 0.0
      %2851 = vmatpush1.xpose.msra.mxu0 %v2845
      %2852 = vmatprep.subr.mxu0 0.0
      %2853 = vmatpush1.xpose.msra.mxu0 %v2848
      %2854 = vmatprep.subr.mxu0 0.0
      %2855 = vmatpush1.xpose.msra.mxu0 0.0
      %2856 = vmatprep.subr.mxu0 0.0
      %2857 = vmatpush1.xpose.msra.mxu0 0.0
      %2858 = vmatprep.subr.mxu0 0.0
      %2859 = vmatpush1.xpose.msra.mxu0 0.0
      %2860 = vmatprep.subr.mxu0 0.0
      %2861 = vmatpush1.xpose.msra.mxu0 0.0
      %2862 = vmatprep.subr.mxu0 0.0
      %2863 = vmatpush1.xpose.msra.mxu0 0.0
      %2864 = vmatprep.subr.mxu0 0.0
      %2865 = vmatpush1.xpose.msra.mxu0 0.0
      %2866 = vmatprep.subr.mxu0 0.0
      %2867 = vmatpush1.xpose.msra.mxu0 0.0
      %2868 = vmatprep.subr.mxu0 0.0
      %2869 = vmatpush1.xpose.msra.mxu0 0.0
      %2870 = vmatprep.subr.mxu0 0.0
      %2871 = vmatpush1.xpose.msra.mxu0 0.0
      %2872 = vmatprep.subr.mxu0 0.0
      %2873 = vmatpush1.xpose.msra.mxu0 0.0
      %2874 = vmatprep.subr.mxu0 0.0
      %2875 = vmatpush1.xpose.msra.mxu0 0.0
      %2876 = vmatprep.subr.mxu0 0.0
      %2877 = vmatpush1.xpose.msra.mxu0 0.0
      %2878 = vmatprep.subr.mxu0 0.0
      %2879 = vmatpush1.xpose.msra.mxu0 0.0
      %2880 = vmatprep.subr.mxu0 0.0
      %2881 = vmatpush1.xpose.msra.mxu0 0.0
      %2882 = vmatprep.subr.mxu0 0.0
      %2883 = vmatpush1.xpose.msra.mxu0 0.0
      %2884 = vmatprep.subr.mxu0 0.0
      %2885 = vmatpush1.xpose.msra.mxu0 0.0
      %2886 = vmatprep.subr.mxu0 0.0
      %2887 = vmatpush1.xpose.msra.mxu0 0.0
      %2888 = vmatprep.subr.mxu0 0.0
      %2889 = vmatpush1.xpose.msra.mxu0 0.0
      %2890 = vmatprep.subr.mxu0 0.0
      %2891 = vmatpush1.xpose.msra.mxu0 0.0
      %2892 = vmatprep.subr.mxu0 0.0
      %2893 = vmatpush1.xpose.msra.mxu0 0.0
      %2894 = vmatprep.subr.mxu0 0.0
      %2895 = vmatpush1.xpose.msra.mxu0 0.0
      %2896 = vmatprep.subr.mxu0 0.0
      %2897 = vmatpush1.xpose.msra.mxu0 0.0
      %2898 = vmatprep.subr.mxu0 0.0
      %2899 = vmatpush1.xpose.msra.mxu0 0.0
      %2900 = vmatprep.subr.mxu0 0.0
      %2901 = vmatpush1.xpose.msra.mxu0 0.0
      %2902 = vmatprep.subr.mxu0 0.0
      %2903 = vmatpush1.xpose.msra.mxu0 0.0
      %2904 = vmatprep.subr.mxu0 0.0
      %2905 = vmatpush1.xpose.msra.mxu0 0.0
      %2906 = vmatprep.subr.mxu0 0.0
      %2907 = vmatpush1.xpose.msra.mxu0 0.0
      %2908 = vmatprep.subr.mxu0 0.0
      %2909 = vmatpush1.xpose.msra.mxu0 0.0
      %2910 = vmatprep.subr.mxu0 0.0
      %2911 = vmatpush1.xpose.msra.mxu0 0.0
      %2912 = vmatprep.subr.mxu0 0.0
      %2913 = vmatpush1.xpose.msra.mxu0 0.0
      %2914 = vmatprep.mubr.f32.mxu0 0.0
      %2915 = vmatmul.mubr.f32.gmra.mrb[0].mxu0 %v2839
      %v2916 = vpop.f32.mrb[0].mxu0
      %v2917 = vadd.f32 0.0, %v2916
      %v2918 = vpop.f32.mrb[0].mxu0
      %2919 = vmatprep.mubr.f32.mxu0 0.0
      %2920 = vmatmul.mubr.f32.gmra.mrb[0].mxu0 %v2842
      %v2921 = vpop.f32.mrb[0].mxu0
      %v2922 = vadd.f32 0.0, %v2921
      %v2923 = vpop.f32.mrb[0].mxu0
      %2924 = vdwg.mxu0
      %v2925 = vmul.f32 %v2917, 0.17677669
      %v2926 = vmul.f32 %v2922, 0.17677669
      %v2927 = vadd.f32 %v2925, %v1491
      %v2928 = vadd.f32 %v2926, %v1491
      %v2929 = vsel %vm1495, %v2927, -inf
      %2930 = vmax.xlane.f32.xlu0 %v2929
      %v2931 = vpop.xlane.xlu0 %2930
      %v2932 = vsel %vm1495, %v2928, -inf
      %2933 = vmax.xlane.f32.xlu0 %v2932
      %v2934 = vpop.xlane.xlu0 %2933
      %v2935 = vsub.f32 %v2927, %v2931
      %v2936 = vsub.f32 %v2928, %v2934
      %v2937 = vmul.f32 %v2935, 1.442695
      %v2938 = vpow.pop %v2937
      %v2939 = vmul.f32 %v2936, 1.442695
      %v2940 = vpow.pop %v2939
      %v2941 = vsel %vm1495, %v2938, 0.0
      %2942 = vadd.xlane.f32.xlu0 %v2941
      %v2943 = vpop.xlane.xlu0 %2942
      %v2944 = vsel %vm1495, %v2940, 0.0
      %2945 = vadd.xlane.f32.xlu0 %v2944
      %v2946 = vpop.xlane.xlu0 %2945
      %v2947 = vrcp.pop %v2943
      %v2948 = vrcp.pop %v2946
      %v2949 = vmul.f32 %v2938, %v2947
      %v2950 = vmul.f32 %v2940, %v2948
      %v2952 = vsel %vm1495, %v2949, 0
      %v2955 = vsel %vm1495, %v2950, 0
      %2957 = vmatprep.subr.mxu0 0.0
      %2958 = vmatpush1.msra.mxu0 %v2830
      %2959 = vmatprep.subr.mxu0 0.0
      %2960 = vmatpush1.msra.mxu0 %v2835
      %2961 = vmatprep.subr.mxu0 0.0
      %2962 = vmatpush1.msra.mxu0 0.0
      %2963 = vmatprep.subr.mxu0 0.0
      %2964 = vmatpush1.msra.mxu0 0.0
      %2965 = vmatprep.subr.mxu0 0.0
      %2966 = vmatpush1.msra.mxu0 0.0
      %2967 = vmatprep.subr.mxu0 0.0
      %2968 = vmatpush1.msra.mxu0 0.0
      %2969 = vmatprep.subr.mxu0 0.0
      %2970 = vmatpush1.msra.mxu0 0.0
      %2971 = vmatprep.subr.mxu0 0.0
      %2972 = vmatpush1.msra.mxu0 0.0
      %2973 = vmatprep.subr.mxu0 0.0
      %2974 = vmatpush1.msra.mxu0 0.0
      %2975 = vmatprep.subr.mxu0 0.0
      %2976 = vmatpush1.msra.mxu0 0.0
      %2977 = vmatprep.subr.mxu0 0.0
      %2978 = vmatpush1.msra.mxu0 0.0
      %2979 = vmatprep.subr.mxu0 0.0
      %2980 = vmatpush1.msra.mxu0 0.0
      %2981 = vmatprep.subr.mxu0 0.0
      %2982 = vmatpush1.msra.mxu0 0.0
      %2983 = vmatprep.subr.mxu0 0.0
      %2984 = vmatpush1.msra.mxu0 0.0
      %2985 = vmatprep.subr.mxu0 0.0
      %2986 = vmatpush1.msra.mxu0 0.0
      %2987 = vmatprep.subr.mxu0 0.0
      %2988 = vmatpush1.msra.mxu0 0.0
      %2989 = vmatprep.subr.mxu0 0.0
      %2990 = vmatpush1.msra.mxu0 0.0
      %2991 = vmatprep.subr.mxu0 0.0
      %2992 = vmatpush1.msra.mxu0 0.0
      %2993 = vmatprep.subr.mxu0 0.0
      %2994 = vmatpush1.msra.mxu0 0.0
      %2995 = vmatprep.subr.mxu0 0.0
      %2996 = vmatpush1.msra.mxu0 0.0
      %2997 = vmatprep.subr.mxu0 0.0
      %2998 = vmatpush1.msra.mxu0 0.0
      %2999 = vmatprep.subr.mxu0 0.0
      %3000 = vmatpush1.msra.mxu0 0.0
      %3001 = vmatprep.subr.mxu0 0.0
      %3002 = vmatpush1.msra.mxu0 0.0
      %3003 = vmatprep.subr.mxu0 0.0
      %3004 = vmatpush1.msra.mxu0 0.0
      %3005 = vmatprep.subr.mxu0 0.0
      %3006 = vmatpush1.msra.mxu0 0.0
      %3007 = vmatprep.subr.mxu0 0.0
      %3008 = vmatpush1.msra.mxu0 0.0
      %3009 = vmatprep.subr.mxu0 0.0
      %3010 = vmatpush1.msra.mxu0 0.0
      %3011 = vmatprep.subr.mxu0 0.0
      %3012 = vmatpush1.msra.mxu0 0.0
      %3013 = vmatprep.subr.mxu0 0.0
      %3014 = vmatpush1.msra.mxu0 0.0
      %3015 = vmatprep.subr.mxu0 0.0
      %3016 = vmatpush1.msra.mxu0 0.0
      %3017 = vmatprep.subr.mxu0 0.0
      %3018 = vmatpush1.msra.mxu0 0.0
      %3019 = vmatprep.subr.mxu0 0.0
      %3020 = vmatpush1.msra.mxu0 0.0
      %3021 = vmatprep.mubr.f32.mxu0 0.0
      %3022 = vmatmul.mubr.f32.gmra.mrb[0].mxu0 %v2952
      %v3023 = vpop.f32.mrb[0].mxu0
      %v3024 = vadd.f32 0.0, %v3023
      %v3025 = vpop.f32.mrb[0].mxu0
      %3026 = vmatprep.mubr.f32.mxu0 0.0
      %3027 = vmatmul.mubr.f32.gmra.mrb[0].mxu0 %v2955
      %v3028 = vpop.f32.mrb[0].mxu0
      %v3029 = vadd.f32 0.0, %v3028
      %v3030 = vpop.f32.mrb[0].mxu0
      %3031 = vdwg.mxu0
      %s3032 = scalar_lea.vmem %s25, 64
      %v3033 = vld [vmem:[%s3032] sm:$0xff]
      %v3034 = vld [vmem:[%s3032 + $0x8] sm:$0xff]
      %v3035 = vld [vmem:[%s3032 + $0x10] sm:$0xff]
      %v3036 = vld [vmem:[%s3032 + $0x18] sm:$0xff]
      %v3038 = vsel %vm1397, %v3024, 0
      %v3041 = vsel %vm1397, %v3029, 0
      %3043 = vmatprep.subr.mxu0 0.0
      %3044 = vmatpush1.msra.mxu0 %v3033
      %3045 = vmatprep.subr.mxu0 0.0
      %3046 = vmatpush1.msra.mxu0 %v3034
      %3047 = vmatprep.subr.mxu0 0.0
      %3048 = vmatpush1.msra.mxu0 %v3035
      %3049 = vmatprep.subr.mxu0 0.0
      %3050 = vmatpush1.msra.mxu0 %v3036
      %3051 = vmatprep.subr.mxu0 0.0
      %3052 = vmatpush1.msra.mxu0 0.0
      %3053 = vmatprep.subr.mxu0 0.0
      %3054 = vmatpush1.msra.mxu0 0.0
      %3055 = vmatprep.subr.mxu0 0.0
      %3056 = vmatpush1.msra.mxu0 0.0
      %3057 = vmatprep.subr.mxu0 0.0
      %3058 = vmatpush1.msra.mxu0 0.0
      %3059 = vmatprep.subr.mxu0 0.0
      %3060 = vmatpush1.msra.mxu0 0.0
      %3061 = vmatprep.subr.mxu0 0.0
      %3062 = vmatpush1.msra.mxu0 0.0
      %3063 = vmatprep.subr.mxu0 0.0
      %3064 = vmatpush1.msra.mxu0 0.0
      %3065 = vmatprep.subr.mxu0 0.0
      %3066 = vmatpush1.msra.mxu0 0.0
      %3067 = vmatprep.subr.mxu0 0.0
      %3068 = vmatpush1.msra.mxu0 0.0
      %3069 = vmatprep.subr.mxu0 0.0
      %3070 = vmatpush1.msra.mxu0 0.0
      %3071 = vmatprep.subr.mxu0 0.0
      %3072 = vmatpush1.msra.mxu0 0.0
      %3073 = vmatprep.subr.mxu0 0.0
      %3074 = vmatpush1.msra.mxu0 0.0
      %3075 = vmatprep.subr.mxu0 0.0
      %3076 = vmatpush1.msra.mxu0 0.0
      %3077 = vmatprep.subr.mxu0 0.0
      %3078 = vmatpush1.msra.mxu0 0.0
      %3079 = vmatprep.subr.mxu0 0.0
      %3080 = vmatpush1.msra.mxu0 0.0
      %3081 = vmatprep.subr.mxu0 0.0
      %3082 = vmatpush1.msra.mxu0 0.0
      %3083 = vmatprep.subr.mxu0 0.0
      %3084 = vmatpush1.msra.mxu0 0.0
      %3085 = vmatprep.subr.mxu0 0.0
      %3086 = vmatpush1.msra.mxu0 0.0
      %3087 = vmatprep.subr.mxu0 0.0
      %3088 = vmatpush1.msra.mxu0 0.0
      %3089 = vmatprep.subr.mxu0 0.0
      %3090 = vmatpush1.msra.mxu0 0.0
      %3091 = vmatprep.subr.mxu0 0.0
      %3092 = vmatpush1.msra.mxu0 0.0
      %3093 = vmatprep.subr.mxu0 0.0
      %3094 = vmatpush1.msra.mxu0 0.0
      %3095 = vmatprep.subr.mxu0 0.0
      %3096 = vmatpush1.msra.mxu0 0.0
      %3097 = vmatprep.subr.mxu0 0.0
      %3098 = vmatpush1.msra.mxu0 0.0
      %3099 = vmatprep.subr.mxu0 0.0
      %3100 = vmatpush1.msra.mxu0 0.0
      %3101 = vmatprep.subr.mxu0 0.0
      %3102 = vmatpush1.msra.mxu0 0.0
      %3103 = vmatprep.subr.mxu0 0.0
      %3104 = vmatpush1.msra.mxu0 0.0
      %3105 = vmatprep.subr.mxu0 0.0
      %3106 = vmatpush1.msra.mxu0 0.0
      %3107 = vmatprep.mubr.f32.mxu0 0.0
      %3108 = vmatmul.mubr.f32.gmra.mrb[0].mxu0 %v3038
      %v3109 = vpop.f32.mrb[0].mxu0
      %v3110 = vadd.f32 0.0, %v3109
      %v3111 = vpop.f32.mrb[0].mxu0
      %3112 = vmatprep.mubr.f32.mxu0 0.0
      %3113 = vmatmul.mubr.f32.gmra.mrb[0].mxu0 %v3041
      %v3114 = vpop.f32.mrb[0].mxu0
      %v3115 = vadd.f32 0.0, %v3114
      %v3116 = vpop.f32.mrb[0].mxu0
      %3117 = vdwg.mxu0
      %v3119 = vlaneseq
      %v3120 = vshrl.u32 %v3119, 7
      %v3121 = vsub.s32 0, %v3120
      %v3122 = vrot.slane %v2555, %v3121
      %v3124 = vadd.f32 %v3122, %v3110
      %v3125 = vadd.f32 %v3122, %v3115
      %s3126 = scalar_lea.vmem %s21, 448
      %v3127 = vld [vmem:[%s3126] sm:$0xff]
      %v3128 = vld [vmem:[%s3126 + $0x8] sm:$0xff]
      %v3129 = vld [vmem:[%s3126 + $0x10] sm:$0xff]
      %v3130 = vld [vmem:[%s3126 + $0x18] sm:$0xff]
      %v3131 = vld [vmem:[%s3126 + $0x20] sm:$0xff]
      %v3132 = vld [vmem:[%s3126 + $0x28] sm:$0xff]
      %v3133 = vld [vmem:[%s3126 + $0x30] sm:$0xff]
      %v3134 = vld [vmem:[%s3126 + $0x38] sm:$0xff]
      %s3135 = scalar_lea.vmem %s23, 7
      %v3136 = vld [vmem:[%s3135] sm:$0x1]
      %v3138 = vlaneseq
      %v3139 = vshrl.u32 %v3138, 7
      %v3140 = vsub.s32 0, %v3139
      %v3141 = vrot.slane %v3136, %v3140
      %3143 = vmatprep.subr.mxu0 0.0
      %3144 = vmatpush1.msra.mxu0 %v3127
      %3145 = vmatprep.subr.mxu0 0.0
      %3146 = vmatpush1.msra.mxu0 %v3128
      %3147 = vmatprep.subr.mxu0 0.0
      %3148 = vmatpush1.msra.mxu0 %v3129
      %3149 = vmatprep.subr.mxu0 0.0
      %3150 = vmatpush1.msra.mxu0 %v3130
      %3151 = vmatprep.subr.mxu0 0.0
      %3152 = vmatpush1.msra.mxu0 %v3131
      %3153 = vmatprep.subr.mxu0 0.0
      %3154 = vmatpush1.msra.mxu0 %v3132
      %3155 = vmatprep.subr.mxu0 0.0
      %3156 = vmatpush1.msra.mxu0 %v3133
      %3157 = vmatprep.subr.mxu0 0.0
      %3158 = vmatpush1.msra.mxu0 %v3134
      %3159 = vmatprep.subr.mxu0 0.0
      %3160 = vmatpush1.msra.mxu0 0.0
      %3161 = vmatprep.subr.mxu0 0.0
      %3162 = vmatpush1.msra.mxu0 0.0
      %3163 = vmatprep.subr.mxu0 0.0
      %3164 = vmatpush1.msra.mxu0 0.0
      %3165 = vmatprep.subr.mxu0 0.0
      %3166 = vmatpush1.msra.mxu0 0.0
      %3167 = vmatprep.subr.mxu0 0.0
      %3168 = vmatpush1.msra.mxu0 0.0
      %3169 = vmatprep.subr.mxu0 0.0
      %3170 = vmatpush1.msra.mxu0 0.0
      %3171 = vmatprep.subr.mxu0 0.0
      %3172 = vmatpush1.msra.mxu0 0.0
      %3173 = vmatprep.subr.mxu0 0.0
      %3174 = vmatpush1.msra.mxu0 0.0
      %3175 = vmatprep.subr.mxu0 0.0
      %3176 = vmatpush1.msra.mxu0 0.0
      %3177 = vmatprep.subr.mxu0 0.0
      %3178 = vmatpush1.msra.mxu0 0.0
      %3179 = vmatprep.subr.mxu0 0.0
      %3180 = vmatpush1.msra.mxu0 0.0
      %3181 = vmatprep.subr.mxu0 0.0
      %3182 = vmatpush1.msra.mxu0 0.0
      %3183 = vmatprep.subr.mxu0 0.0
      %3184 = vmatpush1.msra.mxu0 0.0
      %3185 = vmatprep.subr.mxu0 0.0
      %3186 = vmatpush1.msra.mxu0 0.0
      %3187 = vmatprep.subr.mxu0 0.0
      %3188 = vmatpush1.msra.mxu0 0.0
      %3189 = vmatprep.subr.mxu0 0.0
      %3190 = vmatpush1.msra.mxu0 0.0
      %3191 = vmatprep.subr.mxu0 0.0
      %3192 = vmatpush1.msra.mxu0 0.0
      %3193 = vmatprep.subr.mxu0 0.0
      %3194 = vmatpush1.msra.mxu0 0.0
      %3195 = vmatprep.subr.mxu0 0.0
      %3196 = vmatpush1.msra.mxu0 0.0
      %3197 = vmatprep.subr.mxu0 0.0
      %3198 = vmatpush1.msra.mxu0 0.0
      %3199 = vmatprep.subr.mxu0 0.0
      %3200 = vmatpush1.msra.mxu0 0.0
      %3201 = vmatprep.subr.mxu0 0.0
      %3202 = vmatpush1.msra.mxu0 0.0
      %3203 = vmatprep.subr.mxu0 0.0
      %3204 = vmatpush1.msra.mxu0 0.0
      %3205 = vmatprep.subr.mxu0 0.0
      %3206 = vmatpush1.msra.mxu0 0.0
      %3207 = vmatprep.mubr.f32.mxu0 0.0
      %3208 = vmatmul.mubr.f32.gmra.mrb[0].mxu0 %v2574
      %v3209 = vpop.f32.mrb[0].mxu0
      %v3210 = vadd.f32 %v3141, %v3209
      %v3211 = vpop.f32.mrb[0].mxu0
      %3212 = vmatprep.mubr.f32.mxu0 0.0
      %3213 = vmatmul.mubr.f32.gmra.mrb[0].mxu0 %v2577
      %v3214 = vpop.f32.mrb[0].mxu0
      %v3215 = vadd.f32 %v3141, %v3214
      %v3216 = vpop.f32.mrb[0].mxu0
      %3217 = vdwg.mxu0
      %s3218 = scalar_lea.vmem %s21, 576
      %v3219 = vld [vmem:[%s3218] sm:$0xff]
      %v3220 = vld [vmem:[%s3218 + $0x8] sm:$0xff]
      %v3221 = vld [vmem:[%s3218 + $0x10] sm:$0xff]
      %v3222 = vld [vmem:[%s3218 + $0x18] sm:$0xff]
      %v3223 = vld [vmem:[%s3218 + $0x20] sm:$0xff]
      %v3224 = vld [vmem:[%s3218 + $0x28] sm:$0xff]
      %v3225 = vld [vmem:[%s3218 + $0x30] sm:$0xff]
      %v3226 = vld [vmem:[%s3218 + $0x38] sm:$0xff]
      %s3227 = scalar_lea.vmem %s23, 9
      %v3228 = vld [vmem:[%s3227] sm:$0x1]
      %v3230 = vlaneseq
      %v3231 = vshrl.u32 %v3230, 7
      %v3232 = vsub.s32 0, %v3231
      %v3233 = vrot.slane %v3228, %v3232
      %3235 = vmatprep.subr.mxu0 0.0
      %3236 = vmatpush1.msra.mxu0 %v3219
      %3237 = vmatprep.subr.mxu0 0.0
      %3238 = vmatpush1.msra.mxu0 %v3220
      %3239 = vmatprep.subr.mxu0 0.0
      %3240 = vmatpush1.msra.mxu0 %v3221
      %3241 = vmatprep.subr.mxu0 0.0
      %3242 = vmatpush1.msra.mxu0 %v3222
      %3243 = vmatprep.subr.mxu0 0.0
      %3244 = vmatpush1.msra.mxu0 %v3223
      %3245 = vmatprep.subr.mxu0 0.0
      %3246 = vmatpush1.msra.mxu0 %v3224
      %3247 = vmatprep.subr.mxu0 0.0
      %3248 = vmatpush1.msra.mxu0 %v3225
      %3249 = vmatprep.subr.mxu0 0.0
      %3250 = vmatpush1.msra.mxu0 %v3226
      %3251 = vmatprep.subr.mxu0 0.0
      %3252 = vmatpush1.msra.mxu0 0.0
      %3253 = vmatprep.subr.mxu0 0.0
      %3254 = vmatpush1.msra.mxu0 0.0
      %3255 = vmatprep.subr.mxu0 0.0
      %3256 = vmatpush1.msra.mxu0 0.0
      %3257 = vmatprep.subr.mxu0 0.0
      %3258 = vmatpush1.msra.mxu0 0.0
      %3259 = vmatprep.subr.mxu0 0.0
      %3260 = vmatpush1.msra.mxu0 0.0
      %3261 = vmatprep.subr.mxu0 0.0
      %3262 = vmatpush1.msra.mxu0 0.0
      %3263 = vmatprep.subr.mxu0 0.0
      %3264 = vmatpush1.msra.mxu0 0.0
      %3265 = vmatprep.subr.mxu0 0.0
      %3266 = vmatpush1.msra.mxu0 0.0
      %3267 = vmatprep.subr.mxu0 0.0
      %3268 = vmatpush1.msra.mxu0 0.0
      %3269 = vmatprep.subr.mxu0 0.0
      %3270 = vmatpush1.msra.mxu0 0.0
      %3271 = vmatprep.subr.mxu0 0.0
      %3272 = vmatpush1.msra.mxu0 0.0
      %3273 = vmatprep.subr.mxu0 0.0
      %3274 = vmatpush1.msra.mxu0 0.0
      %3275 = vmatprep.subr.mxu0 0.0
      %3276 = vmatpush1.msra.mxu0 0.0
      %3277 = vmatprep.subr.mxu0 0.0
      %3278 = vmatpush1.msra.mxu0 0.0
      %3279 = vmatprep.subr.mxu0 0.0
      %3280 = vmatpush1.msra.mxu0 0.0
      %3281 = vmatprep.subr.mxu0 0.0
      %3282 = vmatpush1.msra.mxu0 0.0
      %3283 = vmatprep.subr.mxu0 0.0
      %3284 = vmatpush1.msra.mxu0 0.0
      %3285 = vmatprep.subr.mxu0 0.0
      %3286 = vmatpush1.msra.mxu0 0.0
      %3287 = vmatprep.subr.mxu0 0.0
      %3288 = vmatpush1.msra.mxu0 0.0
      %3289 = vmatprep.subr.mxu0 0.0
      %3290 = vmatpush1.msra.mxu0 0.0
      %3291 = vmatprep.subr.mxu0 0.0
      %3292 = vmatpush1.msra.mxu0 0.0
      %3293 = vmatprep.subr.mxu0 0.0
      %3294 = vmatpush1.msra.mxu0 0.0
      %3295 = vmatprep.subr.mxu0 0.0
      %3296 = vmatpush1.msra.mxu0 0.0
      %3297 = vmatprep.subr.mxu0 0.0
      %3298 = vmatpush1.msra.mxu0 0.0
      %3299 = vmatprep.mubr.f32.mxu0 0.0
      %3300 = vmatmul.mubr.f32.gmra.mrb[0].mxu0 %v2574
      %v3301 = vpop.f32.mrb[0].mxu0
      %v3302 = vadd.f32 %v3233, %v3301
      %v3303 = vpop.f32.mrb[0].mxu0
      %3304 = vmatprep.mubr.f32.mxu0 0.0
      %3305 = vmatmul.mubr.f32.gmra.mrb[0].mxu0 %v2577
      %v3306 = vpop.f32.mrb[0].mxu0
      %v3307 = vadd.f32 %v3233, %v3306
      %v3308 = vpop.f32.mrb[0].mxu0
      %3309 = vdwg.mxu0
      %s3310 = scalar_lea.vmem %s21, 704
      %v3311 = vld [vmem:[%s3310] sm:$0xff]
      %v3312 = vld [vmem:[%s3310 + $0x8] sm:$0xff]
      %v3313 = vld [vmem:[%s3310 + $0x10] sm:$0xff]
      %v3314 = vld [vmem:[%s3310 + $0x18] sm:$0xff]
      %v3315 = vld [vmem:[%s3310 + $0x20] sm:$0xff]
      %v3316 = vld [vmem:[%s3310 + $0x28] sm:$0xff]
      %v3317 = vld [vmem:[%s3310 + $0x30] sm:$0xff]
      %v3318 = vld [vmem:[%s3310 + $0x38] sm:$0xff]
      %s3319 = scalar_lea.vmem %s23, 11
      %v3320 = vld [vmem:[%s3319] sm:$0x1]
      %v3322 = vlaneseq
      %v3323 = vshrl.u32 %v3322, 7
      %v3324 = vsub.s32 0, %v3323
      %v3325 = vrot.slane %v3320, %v3324
      %3327 = vmatprep.subr.mxu0 0.0
      %3328 = vmatpush1.msra.mxu0 %v3311
      %3329 = vmatprep.subr.mxu0 0.0
      %3330 = vmatpush1.msra.mxu0 %v3312
      %3331 = vmatprep.subr.mxu0 0.0
      %3332 = vmatpush1.msra.mxu0 %v3313
      %3333 = vmatprep.subr.mxu0 0.0
      %3334 = vmatpush1.msra.mxu0 %v3314
      %3335 = vmatprep.subr.mxu0 0.0
      %3336 = vmatpush1.msra.mxu0 %v3315
      %3337 = vmatprep.subr.mxu0 0.0
      %3338 = vmatpush1.msra.mxu0 %v3316
      %3339 = vmatprep.subr.mxu0 0.0
      %3340 = vmatpush1.msra.mxu0 %v3317
      %3341 = vmatprep.subr.mxu0 0.0
      %3342 = vmatpush1.msra.mxu0 %v3318
      %3343 = vmatprep.subr.mxu0 0.0
      %3344 = vmatpush1.msra.mxu0 0.0
      %3345 = vmatprep.subr.mxu0 0.0
      %3346 = vmatpush1.msra.mxu0 0.0
      %3347 = vmatprep.subr.mxu0 0.0
      %3348 = vmatpush1.msra.mxu0 0.0
      %3349 = vmatprep.subr.mxu0 0.0
      %3350 = vmatpush1.msra.mxu0 0.0
      %3351 = vmatprep.subr.mxu0 0.0
      %3352 = vmatpush1.msra.mxu0 0.0
      %3353 = vmatprep.subr.mxu0 0.0
      %3354 = vmatpush1.msra.mxu0 0.0
      %3355 = vmatprep.subr.mxu0 0.0
      %3356 = vmatpush1.msra.mxu0 0.0
      %3357 = vmatprep.subr.mxu0 0.0
      %3358 = vmatpush1.msra.mxu0 0.0
      %3359 = vmatprep.subr.mxu0 0.0
      %3360 = vmatpush1.msra.mxu0 0.0
      %3361 = vmatprep.subr.mxu0 0.0
      %3362 = vmatpush1.msra.mxu0 0.0
      %3363 = vmatprep.subr.mxu0 0.0
      %3364 = vmatpush1.msra.mxu0 0.0
      %3365 = vmatprep.subr.mxu0 0.0
      %3366 = vmatpush1.msra.mxu0 0.0
      %3367 = vmatprep.subr.mxu0 0.0
      %3368 = vmatpush1.msra.mxu0 0.0
      %3369 = vmatprep.subr.mxu0 0.0
      %3370 = vmatpush1.msra.mxu0 0.0
      %3371 = vmatprep.subr.mxu0 0.0
      %3372 = vmatpush1.msra.mxu0 0.0
      %3373 = vmatprep.subr.mxu0 0.0
      %3374 = vmatpush1.msra.mxu0 0.0
      %3375 = vmatprep.subr.mxu0 0.0
      %3376 = vmatpush1.msra.mxu0 0.0
      %3377 = vmatprep.subr.mxu0 0.0
      %3378 = vmatpush1.msra.mxu0 0.0
      %3379 = vmatprep.subr.mxu0 0.0
      %3380 = vmatpush1.msra.mxu0 0.0
      %3381 = vmatprep.subr.mxu0 0.0
      %3382 = vmatpush1.msra.mxu0 0.0
      %3383 = vmatprep.subr.mxu0 0.0
      %3384 = vmatpush1.msra.mxu0 0.0
      %3385 = vmatprep.subr.mxu0 0.0
      %3386 = vmatpush1.msra.mxu0 0.0
      %3387 = vmatprep.subr.mxu0 0.0
      %3388 = vmatpush1.msra.mxu0 0.0
      %3389 = vmatprep.subr.mxu0 0.0
      %3390 = vmatpush1.msra.mxu0 0.0
      %3391 = vmatprep.mubr.f32.mxu0 0.0
      %3392 = vmatmul.mubr.f32.gmra.mrb[0].mxu0 %v2574
      %v3393 = vpop.f32.mrb[0].mxu0
      %v3394 = vadd.f32 %v3325, %v3393
      %v3395 = vpop.f32.mrb[0].mxu0
      %3396 = vmatprep.mubr.f32.mxu0 0.0
      %3397 = vmatmul.mubr.f32.gmra.mrb[0].mxu0 %v2577
      %v3398 = vpop.f32.mrb[0].mxu0
      %v3399 = vadd.f32 %v3325, %v3398
      %v3400 = vpop.f32.mrb[0].mxu0
      %3401 = vdwg.mxu0
      %v3403 = vsel %vm1397, %v3210, 0
      %v3406 = vsel %vm1397, %v3215, 0
      %v3409 = vsel %vm1397, %v3302, 0
      %v3412 = vsel %vm1397, %v3307, 0
      %3414 = vmatprep.subr.mxu0 0.0
      %3415 = vmatpush1.xpose.msra.mxu0 %v3409
      %3416 = vmatprep.subr.mxu0 0.0
      %3417 = vmatpush1.xpose.msra.mxu0 %v3412
      %3418 = vmatprep.subr.mxu0 0.0
      %3419 = vmatpush1.xpose.msra.mxu0 0.0
      %3420 = vmatprep.subr.mxu0 0.0
      %3421 = vmatpush1.xpose.msra.mxu0 0.0
      %3422 = vmatprep.subr.mxu0 0.0
      %3423 = vmatpush1.xpose.msra.mxu0 0.0
      %3424 = vmatprep.subr.mxu0 0.0
      %3425 = vmatpush1.xpose.msra.mxu0 0.0
      %3426 = vmatprep.subr.mxu0 0.0
      %3427 = vmatpush1.xpose.msra.mxu0 0.0
      %3428 = vmatprep.subr.mxu0 0.0
      %3429 = vmatpush1.xpose.msra.mxu0 0.0
      %3430 = vmatprep.subr.mxu0 0.0
      %3431 = vmatpush1.xpose.msra.mxu0 0.0
      %3432 = vmatprep.subr.mxu0 0.0
      %3433 = vmatpush1.xpose.msra.mxu0 0.0
      %3434 = vmatprep.subr.mxu0 0.0
      %3435 = vmatpush1.xpose.msra.mxu0 0.0
      %3436 = vmatprep.subr.mxu0 0.0
      %3437 = vmatpush1.xpose.msra.mxu0 0.0
      %3438 = vmatprep.subr.mxu0 0.0
      %3439 = vmatpush1.xpose.msra.mxu0 0.0
      %3440 = vmatprep.subr.mxu0 0.0
      %3441 = vmatpush1.xpose.msra.mxu0 0.0
      %3442 = vmatprep.subr.mxu0 0.0
      %3443 = vmatpush1.xpose.msra.mxu0 0.0
      %3444 = vmatprep.subr.mxu0 0.0
      %3445 = vmatpush1.xpose.msra.mxu0 0.0
      %3446 = vmatprep.subr.mxu0 0.0
      %3447 = vmatpush1.xpose.msra.mxu0 0.0
      %3448 = vmatprep.subr.mxu0 0.0
      %3449 = vmatpush1.xpose.msra.mxu0 0.0
      %3450 = vmatprep.subr.mxu0 0.0
      %3451 = vmatpush1.xpose.msra.mxu0 0.0
      %3452 = vmatprep.subr.mxu0 0.0
      %3453 = vmatpush1.xpose.msra.mxu0 0.0
      %3454 = vmatprep.subr.mxu0 0.0
      %3455 = vmatpush1.xpose.msra.mxu0 0.0
      %3456 = vmatprep.subr.mxu0 0.0
      %3457 = vmatpush1.xpose.msra.mxu0 0.0
      %3458 = vmatprep.subr.mxu0 0.0
      %3459 = vmatpush1.xpose.msra.mxu0 0.0
      %3460 = vmatprep.subr.mxu0 0.0
      %3461 = vmatpush1.xpose.msra.mxu0 0.0
      %3462 = vmatprep.subr.mxu0 0.0
      %3463 = vmatpush1.xpose.msra.mxu0 0.0
      %3464 = vmatprep.subr.mxu0 0.0
      %3465 = vmatpush1.xpose.msra.mxu0 0.0
      %3466 = vmatprep.subr.mxu0 0.0
      %3467 = vmatpush1.xpose.msra.mxu0 0.0
      %3468 = vmatprep.subr.mxu0 0.0
      %3469 = vmatpush1.xpose.msra.mxu0 0.0
      %3470 = vmatprep.subr.mxu0 0.0
      %3471 = vmatpush1.xpose.msra.mxu0 0.0
      %3472 = vmatprep.subr.mxu0 0.0
      %3473 = vmatpush1.xpose.msra.mxu0 0.0
      %3474 = vmatprep.subr.mxu0 0.0
      %3475 = vmatpush1.xpose.msra.mxu0 0.0
      %3476 = vmatprep.subr.mxu0 0.0
      %3477 = vmatpush1.xpose.msra.mxu0 0.0
      %3478 = vmatprep.mubr.f32.mxu0 0.0
      %3479 = vmatmul.mubr.f32.gmra.mrb[0].mxu0 %v3403
      %v3480 = vpop.f32.mrb[0].mxu0
      %v3481 = vadd.f32 0.0, %v3480
      %v3482 = vpop.f32.mrb[0].mxu0
      %3483 = vmatprep.mubr.f32.mxu0 0.0
      %3484 = vmatmul.mubr.f32.gmra.mrb[0].mxu0 %v3406
      %v3485 = vpop.f32.mrb[0].mxu0
      %v3486 = vadd.f32 0.0, %v3485
      %v3487 = vpop.f32.mrb[0].mxu0
      %3488 = vdwg.mxu0
      %v3489 = vmul.f32 %v3481, 0.17677669
      %v3490 = vmul.f32 %v3486, 0.17677669
      %v3491 = vadd.f32 %v3489, %v1491
      %v3492 = vadd.f32 %v3490, %v1491
      %v3493 = vsel %vm1495, %v3491, -inf
      %3494 = vmax.xlane.f32.xlu0 %v3493
      %v3495 = vpop.xlane.xlu0 %3494
      %v3496 = vsel %vm1495, %v3492, -inf
      %3497 = vmax.xlane.f32.xlu0 %v3496
      %v3498 = vpop.xlane.xlu0 %3497
      %v3499 = vsub.f32 %v3491, %v3495
      %v3500 = vsub.f32 %v3492, %v3498
      %v3501 = vmul.f32 %v3499, 1.442695
      %v3502 = vpow.pop %v3501
      %v3503 = vmul.f32 %v3500, 1.442695
      %v3504 = vpow.pop %v3503
      %v3505 = vsel %vm1495, %v3502, 0.0
      %3506 = vadd.xlane.f32.xlu0 %v3505
      %v3507 = vpop.xlane.xlu0 %3506
      %v3508 = vsel %vm1495, %v3504, 0.0
      %3509 = vadd.xlane.f32.xlu0 %v3508
      %v3510 = vpop.xlane.xlu0 %3509
      %v3511 = vrcp.pop %v3507
      %v3512 = vrcp.pop %v3510
      %v3513 = vmul.f32 %v3502, %v3511
      %v3514 = vmul.f32 %v3504, %v3512
      %v3516 = vsel %vm1495, %v3513, 0
      %v3519 = vsel %vm1495, %v3514, 0
      %3521 = vmatprep.subr.mxu0 0.0
      %3522 = vmatpush1.msra.mxu0 %v3394
      %3523 = vmatprep.subr.mxu0 0.0
      %3524 = vmatpush1.msra.mxu0 %v3399
      %3525 = vmatprep.subr.mxu0 0.0
      %3526 = vmatpush1.msra.mxu0 0.0
      %3527 = vmatprep.subr.mxu0 0.0
      %3528 = vmatpush1.msra.mxu0 0.0
      %3529 = vmatprep.subr.mxu0 0.0
      %3530 = vmatpush1.msra.mxu0 0.0
      %3531 = vmatprep.subr.mxu0 0.0
      %3532 = vmatpush1.msra.mxu0 0.0
      %3533 = vmatprep.subr.mxu0 0.0
      %3534 = vmatpush1.msra.mxu0 0.0
      %3535 = vmatprep.subr.mxu0 0.0
      %3536 = vmatpush1.msra.mxu0 0.0
      %3537 = vmatprep.subr.mxu0 0.0
      %3538 = vmatpush1.msra.mxu0 0.0
      %3539 = vmatprep.subr.mxu0 0.0
      %3540 = vmatpush1.msra.mxu0 0.0
      %3541 = vmatprep.subr.mxu0 0.0
      %3542 = vmatpush1.msra.mxu0 0.0
      %3543 = vmatprep.subr.mxu0 0.0
      %3544 = vmatpush1.msra.mxu0 0.0
      %3545 = vmatprep.subr.mxu0 0.0
      %3546 = vmatpush1.msra.mxu0 0.0
      %3547 = vmatprep.subr.mxu0 0.0
      %3548 = vmatpush1.msra.mxu0 0.0
      %3549 = vmatprep.subr.mxu0 0.0
      %3550 = vmatpush1.msra.mxu0 0.0
      %3551 = vmatprep.subr.mxu0 0.0
      %3552 = vmatpush1.msra.mxu0 0.0
      %3553 = vmatprep.subr.mxu0 0.0
      %3554 = vmatpush1.msra.mxu0 0.0
      %3555 = vmatprep.subr.mxu0 0.0
      %3556 = vmatpush1.msra.mxu0 0.0
      %3557 = vmatprep.subr.mxu0 0.0
      %3558 = vmatpush1.msra.mxu0 0.0
      %3559 = vmatprep.subr.mxu0 0.0
      %3560 = vmatpush1.msra.mxu0 0.0
      %3561 = vmatprep.subr.mxu0 0.0
      %3562 = vmatpush1.msra.mxu0 0.0
      %3563 = vmatprep.subr.mxu0 0.0
      %3564 = vmatpush1.msra.mxu0 0.0
      %3565 = vmatprep.subr.mxu0 0.0
      %3566 = vmatpush1.msra.mxu0 0.0
      %3567 = vmatprep.subr.mxu0 0.0
      %3568 = vmatpush1.msra.mxu0 0.0
      %3569 = vmatprep.subr.mxu0 0.0
      %3570 = vmatpush1.msra.mxu0 0.0
      %3571 = vmatprep.subr.mxu0 0.0
      %3572 = vmatpush1.msra.mxu0 0.0
      %3573 = vmatprep.subr.mxu0 0.0
      %3574 = vmatpush1.msra.mxu0 0.0
      %3575 = vmatprep.subr.mxu0 0.0
      %3576 = vmatpush1.msra.mxu0 0.0
      %3577 = vmatprep.subr.mxu0 0.0
      %3578 = vmatpush1.msra.mxu0 0.0
      %3579 = vmatprep.subr.mxu0 0.0
      %3580 = vmatpush1.msra.mxu0 0.0
      %3581 = vmatprep.subr.mxu0 0.0
      %3582 = vmatpush1.msra.mxu0 0.0
      %3583 = vmatprep.subr.mxu0 0.0
      %3584 = vmatpush1.msra.mxu0 0.0
      %3585 = vmatprep.mubr.f32.mxu0 0.0
      %3586 = vmatmul.mubr.f32.gmra.mrb[0].mxu0 %v3516
      %v3587 = vpop.f32.mrb[0].mxu0
      %v3588 = vadd.f32 0.0, %v3587
      %v3589 = vpop.f32.mrb[0].mxu0
      %3590 = vmatprep.mubr.f32.mxu0 0.0
      %3591 = vmatmul.mubr.f32.gmra.mrb[0].mxu0 %v3519
      %v3592 = vpop.f32.mrb[0].mxu0
      %v3593 = vadd.f32 0.0, %v3592
      %v3594 = vpop.f32.mrb[0].mxu0
      %3595 = vdwg.mxu0
      %s3596 = scalar_lea.vmem %s25, 96
      %v3597 = vld [vmem:[%s3596] sm:$0xff]
      %v3598 = vld [vmem:[%s3596 + $0x8] sm:$0xff]
      %v3599 = vld [vmem:[%s3596 + $0x10] sm:$0xff]
      %v3600 = vld [vmem:[%s3596 + $0x18] sm:$0xff]
      %v3602 = vsel %vm1397, %v3588, 0
      %v3605 = vsel %vm1397, %v3593, 0
      %3607 = vmatprep.subr.mxu0 0.0
      %3608 = vmatpush1.msra.mxu0 %v3597
      %3609 = vmatprep.subr.mxu0 0.0
      %3610 = vmatpush1.msra.mxu0 %v3598
      %3611 = vmatprep.subr.mxu0 0.0
      %3612 = vmatpush1.msra.mxu0 %v3599
      %3613 = vmatprep.subr.mxu0 0.0
      %3614 = vmatpush1.msra.mxu0 %v3600
      %3615 = vmatprep.subr.mxu0 0.0
      %3616 = vmatpush1.msra.mxu0 0.0
      %3617 = vmatprep.subr.mxu0 0.0
      %3618 = vmatpush1.msra.mxu0 0.0
      %3619 = vmatprep.subr.mxu0 0.0
      %3620 = vmatpush1.msra.mxu0 0.0
      %3621 = vmatprep.subr.mxu0 0.0
      %3622 = vmatpush1.msra.mxu0 0.0
      %3623 = vmatprep.subr.mxu0 0.0
      %3624 = vmatpush1.msra.mxu0 0.0
      %3625 = vmatprep.subr.mxu0 0.0
      %3626 = vmatpush1.msra.mxu0 0.0
      %3627 = vmatprep.subr.mxu0 0.0
      %3628 = vmatpush1.msra.mxu0 0.0
      %3629 = vmatprep.subr.mxu0 0.0
      %3630 = vmatpush1.msra.mxu0 0.0
      %3631 = vmatprep.subr.mxu0 0.0
      %3632 = vmatpush1.msra.mxu0 0.0
      %3633 = vmatprep.subr.mxu0 0.0
      %3634 = vmatpush1.msra.mxu0 0.0
      %3635 = vmatprep.subr.mxu0 0.0
      %3636 = vmatpush1.msra.mxu0 0.0
      %3637 = vmatprep.subr.mxu0 0.0
      %3638 = vmatpush1.msra.mxu0 0.0
      %3639 = vmatprep.subr.mxu0 0.0
      %3640 = vmatpush1.msra.mxu0 0.0
      %3641 = vmatprep.subr.mxu0 0.0
      %3642 = vmatpush1.msra.mxu0 0.0
      %3643 = vmatprep.subr.mxu0 0.0
      %3644 = vmatpush1.msra.mxu0 0.0
      %3645 = vmatprep.subr.mxu0 0.0
      %3646 = vmatpush1.msra.mxu0 0.0
      %3647 = vmatprep.subr.mxu0 0.0
      %3648 = vmatpush1.msra.mxu0 0.0
      %3649 = vmatprep.subr.mxu0 0.0
      %3650 = vmatpush1.msra.mxu0 0.0
      %3651 = vmatprep.subr.mxu0 0.0
      %3652 = vmatpush1.msra.mxu0 0.0
      %3653 = vmatprep.subr.mxu0 0.0
      %3654 = vmatpush1.msra.mxu0 0.0
      %3655 = vmatprep.subr.mxu0 0.0
      %3656 = vmatpush1.msra.mxu0 0.0
      %3657 = vmatprep.subr.mxu0 0.0
      %3658 = vmatpush1.msra.mxu0 0.0
      %3659 = vmatprep.subr.mxu0 0.0
      %3660 = vmatpush1.msra.mxu0 0.0
      %3661 = vmatprep.subr.mxu0 0.0
      %3662 = vmatpush1.msra.mxu0 0.0
      %3663 = vmatprep.subr.mxu0 0.0
      %3664 = vmatpush1.msra.mxu0 0.0
      %3665 = vmatprep.subr.mxu0 0.0
      %3666 = vmatpush1.msra.mxu0 0.0
      %3667 = vmatprep.subr.mxu0 0.0
      %3668 = vmatpush1.msra.mxu0 0.0
      %3669 = vmatprep.subr.mxu0 0.0
      %3670 = vmatpush1.msra.mxu0 0.0
      %3671 = vmatprep.mubr.f32.mxu0 0.0
      %3672 = vmatmul.mubr.f32.gmra.mrb[0].mxu0 %v3602
      %v3673 = vpop.f32.mrb[0].mxu0
      %v3674 = vadd.f32 0.0, %v3673
      %v3675 = vpop.f32.mrb[0].mxu0
      %3676 = vmatprep.mubr.f32.mxu0 0.0
      %3677 = vmatmul.mubr.f32.gmra.mrb[0].mxu0 %v3605
      %v3678 = vpop.f32.mrb[0].mxu0
      %v3679 = vadd.f32 0.0, %v3678
      %v3680 = vpop.f32.mrb[0].mxu0
      %3681 = vdwg.mxu0
      %v3682 = vadd.f32 %v3124, %v3674
      %v3683 = vadd.f32 %v3125, %v3679
      %v3684 = vadd.f32 %v3682, %v2552
      %v3685 = vadd.f32 %v3683, %v2553
      %s3686 = scalar_lea.vmem %s29, 1
      %v3687 = vld [vmem:[%s3686] sm:$0x1]
      %s3688 = scalar_lea.vmem %s31, 1
      %v3689 = vld [vmem:[%s3688] sm:$0x1]
      %v3690 = vsel %vm970, %v3684, 0.0
      %3691 = vadd.xlane.f32.xlu0 %v3690
      %v3692 = vpop.xlane.xlu0 %3691
      %v3693 = vsel %vm970, %v3685, 0.0
      %3694 = vadd.xlane.f32.xlu0 %v3693
      %v3695 = vpop.xlane.xlu0 %3694
      %v3696 = vmul.f32 %v3692, %v1078
      %v3697 = vmul.f32 %v3695, %v1078
      %v3698 = vsub.f32 %v3684, %v3696
      %v3699 = vsub.f32 %v3685, %v3697
      %v3700 = vmul.f32 %v3698, %v3698
      %v3701 = vmul.f32 %v3699, %v3699
      %v3702 = vsel %vm970, %v3700, 0.0
      %3703 = vadd.xlane.f32.xlu0 %v3702
      %v3704 = vpop.xlane.xlu0 %3703
      %v3705 = vsel %vm970, %v3701, 0.0
      %3706 = vadd.xlane.f32.xlu0 %v3705
      %v3707 = vpop.xlane.xlu0 %3706
      %v3708 = vmul.f32 %v3704, %v1078
      %v3709 = vmul.f32 %v3707, %v1078
      %v3710 = vadd.f32 %v3708, 1e-12
      %v3711 = vadd.f32 %v3709, 1e-12
      %v3712 = vrsqrt.pop %v3710
      %v3713 = vrsqrt.pop %v3711
      %v3714 = vmul.f32 %v3698, %v3712
      %v3715 = vmul.f32 %v3699, %v3713
      %v3717 = vlaneseq
      %v3718 = vshrl.u32 %v3717, 7
      %v3719 = vsub.s32 0, %v3718
      %v3720 = vrot.slane %v3687, %v3719
      %v3722 = vmul.f32 %v3714, %v3720
      %v3723 = vmul.f32 %v3715, %v3720
      %v3725 = vlaneseq
      %v3726 = vshrl.u32 %v3725, 7
      %v3727 = vsub.s32 0, %v3726
      %v3728 = vrot.slane %v3689, %v3727
      %v3730 = vadd.f32 %v3722, %v3728
      %v3731 = vadd.f32 %v3723, %v3728
      %s3732 = scalar_lea.vmem %s33, 64
      %v3733 = vld [vmem:[%s3732] sm:$0xff]
      %v3734 = vld [vmem:[%s3732 + $0x8] sm:$0xff]
      %v3735 = vld [vmem:[%s3732 + $0x10] sm:$0xff]
      %v3736 = vld [vmem:[%s3732 + $0x18] sm:$0xff]
      %v3737 = vld [vmem:[%s3732 + $0x20] sm:$0xff]
      %v3738 = vld [vmem:[%s3732 + $0x28] sm:$0xff]
      %v3739 = vld [vmem:[%s3732 + $0x30] sm:$0xff]
      %v3740 = vld [vmem:[%s3732 + $0x38] sm:$0xff]
      %s3741 = scalar_lea.vmem %s35, 1
      %v3742 = vld [vmem:[%s3741] sm:$0x1]
      %v3744 = vlaneseq
      %v3745 = vshrl.u32 %v3744, 7
      %v3746 = vsub.s32 0, %v3745
      %v3747 = vrot.slane %v3742, %v3746
      %v3750 = vsel %vm970, %v3730, 0
      %v3753 = vsel %vm970, %v3731, 0
      %3755 = vmatprep.subr.mxu0 0.0
      %3756 = vmatpush1.msra.mxu0 %v3733
      %3757 = vmatprep.subr.mxu0 0.0
      %3758 = vmatpush1.msra.mxu0 %v3734
      %3759 = vmatprep.subr.mxu0 0.0
      %3760 = vmatpush1.msra.mxu0 %v3735
      %3761 = vmatprep.subr.mxu0 0.0
      %3762 = vmatpush1.msra.mxu0 %v3736
      %3763 = vmatprep.subr.mxu0 0.0
      %3764 = vmatpush1.msra.mxu0 %v3737
      %3765 = vmatprep.subr.mxu0 0.0
      %3766 = vmatpush1.msra.mxu0 %v3738
      %3767 = vmatprep.subr.mxu0 0.0
      %3768 = vmatpush1.msra.mxu0 %v3739
      %3769 = vmatprep.subr.mxu0 0.0
      %3770 = vmatpush1.msra.mxu0 %v3740
      %3771 = vmatprep.subr.mxu0 0.0
      %3772 = vmatpush1.msra.mxu0 0.0
      %3773 = vmatprep.subr.mxu0 0.0
      %3774 = vmatpush1.msra.mxu0 0.0
      %3775 = vmatprep.subr.mxu0 0.0
      %3776 = vmatpush1.msra.mxu0 0.0
      %3777 = vmatprep.subr.mxu0 0.0
      %3778 = vmatpush1.msra.mxu0 0.0
      %3779 = vmatprep.subr.mxu0 0.0
      %3780 = vmatpush1.msra.mxu0 0.0
      %3781 = vmatprep.subr.mxu0 0.0
      %3782 = vmatpush1.msra.mxu0 0.0
      %3783 = vmatprep.subr.mxu0 0.0
      %3784 = vmatpush1.msra.mxu0 0.0
      %3785 = vmatprep.subr.mxu0 0.0
      %3786 = vmatpush1.msra.mxu0 0.0
      %3787 = vmatprep.subr.mxu0 0.0
      %3788 = vmatpush1.msra.mxu0 0.0
      %3789 = vmatprep.subr.mxu0 0.0
      %3790 = vmatpush1.msra.mxu0 0.0
      %3791 = vmatprep.subr.mxu0 0.0
      %3792 = vmatpush1.msra.mxu0 0.0
      %3793 = vmatprep.subr.mxu0 0.0
      %3794 = vmatpush1.msra.mxu0 0.0
      %3795 = vmatprep.subr.mxu0 0.0
      %3796 = vmatpush1.msra.mxu0 0.0
      %3797 = vmatprep.subr.mxu0 0.0
      %3798 = vmatpush1.msra.mxu0 0.0
      %3799 = vmatprep.subr.mxu0 0.0
      %3800 = vmatpush1.msra.mxu0 0.0
      %3801 = vmatprep.subr.mxu0 0.0
      %3802 = vmatpush1.msra.mxu0 0.0
      %3803 = vmatprep.subr.mxu0 0.0
      %3804 = vmatpush1.msra.mxu0 0.0
      %3805 = vmatprep.subr.mxu0 0.0
      %3806 = vmatpush1.msra.mxu0 0.0
      %3807 = vmatprep.subr.mxu0 0.0
      %3808 = vmatpush1.msra.mxu0 0.0
      %3809 = vmatprep.subr.mxu0 0.0
      %3810 = vmatpush1.msra.mxu0 0.0
      %3811 = vmatprep.subr.mxu0 0.0
      %3812 = vmatpush1.msra.mxu0 0.0
      %3813 = vmatprep.subr.mxu0 0.0
      %3814 = vmatpush1.msra.mxu0 0.0
      %3815 = vmatprep.subr.mxu0 0.0
      %3816 = vmatpush1.msra.mxu0 0.0
      %3817 = vmatprep.subr.mxu0 0.0
      %3818 = vmatpush1.msra.mxu0 0.0
      %3819 = vmatprep.mubr.f32.mxu0 0.0
      %3820 = vmatmul.mubr.f32.gmra.mrb[0].mxu0 %v3750
      %v3821 = vpop.f32.mrb[0].mxu0
      %v3822 = vadd.f32 %v3747, %v3821
      %v3823 = vpop.f32.mrb[0].mxu0
      %3824 = vmatprep.mubr.f32.mxu0 0.0
      %3825 = vmatmul.mubr.f32.gmra.mrb[0].mxu0 %v3753
      %v3826 = vpop.f32.mrb[0].mxu0
      %v3827 = vadd.f32 %v3747, %v3826
      %v3828 = vpop.f32.mrb[0].mxu0
      %3829 = vdwg.mxu0
      %v3830 = vmul.f32 %v3822, 0.5
      %v3831 = vmul.f32 %v3827, 0.5
      %v3832 = vmul.f32 %v3822, 0.044715
      %v3833 = vmul.f32 %v3827, 0.044715
      %v3834 = vmul.f32 %v3832, %v3822
      %v3835 = vmul.f32 %v3833, %v3827
      %v3836 = vmul.f32 %v3834, %v3822
      %v3837 = vmul.f32 %v3835, %v3827
      %v3838 = vadd.f32 %v3822, %v3836
      %v3839 = vadd.f32 %v3827, %v3837
      %v3840 = vmul.f32 %v3838, 0.7978846
      %v3841 = vmul.f32 %v3839, 0.7978846
      %v3842 = vtanh.pop %v3840
      %v3843 = vtanh.pop %v3841
      %v3844 = vadd.f32 %v3842, 1.0
      %v3845 = vadd.f32 %v3843, 1.0
      %v3846 = vmul.f32 %v3830, %v3844
      %v3847 = vmul.f32 %v3831, %v3845
      %s3848 = scalar_lea.vmem %s37, 128
      %v3849 = vld [vmem:[%s3848] sm:$0xff]
      %v3850 = vld [vmem:[%s3848 + $0x8] sm:$0xff]
      %v3851 = vld [vmem:[%s3848 + $0x10] sm:$0xff]
      %v3852 = vld [vmem:[%s3848 + $0x18] sm:$0xff]
      %v3853 = vld [vmem:[%s3848 + $0x20] sm:$0xff]
      %v3854 = vld [vmem:[%s3848 + $0x28] sm:$0xff]
      %v3855 = vld [vmem:[%s3848 + $0x30] sm:$0xff]
      %v3856 = vld [vmem:[%s3848 + $0x38] sm:$0xff]
      %v3857 = vld [vmem:[%s3848 + $0x40] sm:$0xff]
      %v3858 = vld [vmem:[%s3848 + $0x48] sm:$0xff]
      %v3859 = vld [vmem:[%s3848 + $0x50] sm:$0xff]
      %v3860 = vld [vmem:[%s3848 + $0x58] sm:$0xff]
      %v3861 = vld [vmem:[%s3848 + $0x60] sm:$0xff]
      %v3862 = vld [vmem:[%s3848 + $0x68] sm:$0xff]
      %v3863 = vld [vmem:[%s3848 + $0x70] sm:$0xff]
      %v3864 = vld [vmem:[%s3848 + $0x78] sm:$0xff]
      %s3865 = scalar_lea.vmem %s39, 1
      %v3866 = vld [vmem:[%s3865] sm:$0x1]
      %v3868 = vlaneseq
      %v3869 = vshrl.u32 %v3868, 7
      %v3870 = vsub.s32 0, %v3869
      %v3871 = vrot.slane %v3866, %v3870
      %3873 = vmatprep.subr.mxu0 0.0
      %3874 = vmatpush1.msra.mxu0 %v3849
      %3875 = vmatprep.subr.mxu0 0.0
      %3876 = vmatpush1.msra.mxu0 %v3850
      %3877 = vmatprep.subr.mxu0 0.0
      %3878 = vmatpush1.msra.mxu0 %v3851
      %3879 = vmatprep.subr.mxu0 0.0
      %3880 = vmatpush1.msra.mxu0 %v3852
      %3881 = vmatprep.subr.mxu0 0.0
      %3882 = vmatpush1.msra.mxu0 %v3853
      %3883 = vmatprep.subr.mxu0 0.0
      %3884 = vmatpush1.msra.mxu0 %v3854
      %3885 = vmatprep.subr.mxu0 0.0
      %3886 = vmatpush1.msra.mxu0 %v3855
      %3887 = vmatprep.subr.mxu0 0.0
      %3888 = vmatpush1.msra.mxu0 %v3856
      %3889 = vmatprep.subr.mxu0 0.0
      %3890 = vmatpush1.msra.mxu0 %v3857
      %3891 = vmatprep.subr.mxu0 0.0
      %3892 = vmatpush1.msra.mxu0 %v3858
      %3893 = vmatprep.subr.mxu0 0.0
      %3894 = vmatpush1.msra.mxu0 %v3859
      %3895 = vmatprep.subr.mxu0 0.0
      %3896 = vmatpush1.msra.mxu0 %v3860
      %3897 = vmatprep.subr.mxu0 0.0
      %3898 = vmatpush1.msra.mxu0 %v3861
      %3899 = vmatprep.subr.mxu0 0.0
      %3900 = vmatpush1.msra.mxu0 %v3862
      %3901 = vmatprep.subr.mxu0 0.0
      %3902 = vmatpush1.msra.mxu0 %v3863
      %3903 = vmatprep.subr.mxu0 0.0
      %3904 = vmatpush1.msra.mxu0 %v3864
      %3905 = vmatprep.subr.mxu0 0.0
      %3906 = vmatpush1.msra.mxu0 0.0
      %3907 = vmatprep.subr.mxu0 0.0
      %3908 = vmatpush1.msra.mxu0 0.0
      %3909 = vmatprep.subr.mxu0 0.0
      %3910 = vmatpush1.msra.mxu0 0.0
      %3911 = vmatprep.subr.mxu0 0.0
      %3912 = vmatpush1.msra.mxu0 0.0
      %3913 = vmatprep.subr.mxu0 0.0
      %3914 = vmatpush1.msra.mxu0 0.0
      %3915 = vmatprep.subr.mxu0 0.0
      %3916 = vmatpush1.msra.mxu0 0.0
      %3917 = vmatprep.subr.mxu0 0.0
      %3918 = vmatpush1.msra.mxu0 0.0
      %3919 = vmatprep.subr.mxu0 0.0
      %3920 = vmatpush1.msra.mxu0 0.0
      %3921 = vmatprep.subr.mxu0 0.0
      %3922 = vmatpush1.msra.mxu0 0.0
      %3923 = vmatprep.subr.mxu0 0.0
      %3924 = vmatpush1.msra.mxu0 0.0
      %3925 = vmatprep.subr.mxu0 0.0
      %3926 = vmatpush1.msra.mxu0 0.0
      %3927 = vmatprep.subr.mxu0 0.0
      %3928 = vmatpush1.msra.mxu0 0.0
      %3929 = vmatprep.subr.mxu0 0.0
      %3930 = vmatpush1.msra.mxu0 0.0
      %3931 = vmatprep.subr.mxu0 0.0
      %3932 = vmatpush1.msra.mxu0 0.0
      %3933 = vmatprep.subr.mxu0 0.0
      %3934 = vmatpush1.msra.mxu0 0.0
      %3935 = vmatprep.subr.mxu0 0.0
      %3936 = vmatpush1.msra.mxu0 0.0
      %3937 = vmatprep.mubr.f32.mxu0 0.0
      %3938 = vmatmul.mubr.f32.gmra.mrb[0].mxu0 %v3846
      %v3939 = vpop.f32.mrb[0].mxu0
      %v3940 = vadd.f32 %v3871, %v3939
      %v3941 = vpop.f32.mrb[0].mxu0
      %3942 = vmatprep.mubr.f32.mxu0 0.0
      %3943 = vmatmul.mubr.f32.gmra.mrb[0].mxu0 %v3847
      %v3944 = vpop.f32.mrb[0].mxu0
      %v3945 = vadd.f32 %v3871, %v3944
      %v3946 = vpop.f32.mrb[0].mxu0
      %3947 = vdwg.mxu0
      %v3948 = vadd.f32 %v3940, %v3730
      %v3949 = vadd.f32 %v3945, %v3731
      %s3950 = scalar_lea.vmem %s41, 1
      %v3951 = vld [vmem:[%s3950] sm:$0x1]
      %s3952 = scalar_lea.vmem %s43, 1
      %v3953 = vld [vmem:[%s3952] sm:$0x1]
      %v3954 = vsel %vm970, %v3948, 0.0
      %3955 = vadd.xlane.f32.xlu0 %v3954
      %v3956 = vpop.xlane.xlu0 %3955
      %v3957 = vsel %vm970, %v3949, 0.0
      %3958 = vadd.xlane.f32.xlu0 %v3957
      %v3959 = vpop.xlane.xlu0 %3958
      %v3960 = vmul.f32 %v3956, %v1078
      %v3961 = vmul.f32 %v3959, %v1078
      %v3962 = vsub.f32 %v3948, %v3960
      %v3963 = vsub.f32 %v3949, %v3961
      %v3964 = vmul.f32 %v3962, %v3962
      %v3965 = vmul.f32 %v3963, %v3963
      %v3966 = vsel %vm970, %v3964, 0.0
      %3967 = vadd.xlane.f32.xlu0 %v3966
      %v3968 = vpop.xlane.xlu0 %3967
      %v3969 = vsel %vm970, %v3965, 0.0
      %3970 = vadd.xlane.f32.xlu0 %v3969
      %v3971 = vpop.xlane.xlu0 %3970
      %v3972 = vmul.f32 %v3968, %v1078
      %v3973 = vmul.f32 %v3971, %v1078
      %v3974 = vadd.f32 %v3972, 1e-12
      %v3975 = vadd.f32 %v3973, 1e-12
      %v3976 = vrsqrt.pop %v3974
      %v3977 = vrsqrt.pop %v3975
      %v3978 = vmul.f32 %v3962, %v3976
      %v3979 = vmul.f32 %v3963, %v3977
      %v3981 = vlaneseq
      %v3982 = vshrl.u32 %v3981, 7
      %v3983 = vsub.s32 0, %v3982
      %v3984 = vrot.slane %v3951, %v3983
      %v3986 = vmul.f32 %v3978, %v3984
      %v3987 = vmul.f32 %v3979, %v3984
      %v3989 = vlaneseq
      %v3990 = vshrl.u32 %v3989, 7
      %v3991 = vsub.s32 0, %v3990
      %v3992 = vrot.slane %v3953, %v3991
      %v3994 = vadd.f32 %v3986, %v3992
      %v3995 = vadd.f32 %v3987, %v3992
      %v3996 = vld [vmem:[%s45] sm:$0xff]
      %v3997 = vld [vmem:[%s45 + $0x8] sm:$0xff]
      %v3998 = vld [vmem:[%s45 + $0x10] sm:$0xff]
      %v3999 = vld [vmem:[%s45 + $0x18] sm:$0xff]
      %v4000 = vld [vmem:[%s45 + $0x20] sm:$0xff]
      %v4001 = vld [vmem:[%s45 + $0x28] sm:$0xff]
      %v4002 = vld [vmem:[%s45 + $0x30] sm:$0xff]
      %v4003 = vld [vmem:[%s45 + $0x38] sm:$0xff]
      %v4004 = vld [vmem:[%s47] sm:$0x1]
      %v4006 = vlaneseq
      %v4007 = vshrl.u32 %v4006, 7
      %v4008 = vsub.s32 0, %v4007
      %v4009 = vrot.slane %v4004, %v4008
      %v4012 = vsel %vm970, %v3994, 0
      %v4015 = vsel %vm970, %v3995, 0
      %4017 = vmatprep.subr.mxu0 0.0
      %4018 = vmatpush1.msra.mxu0 %v3996
      %4019 = vmatprep.subr.mxu0 0.0
      %4020 = vmatpush1.msra.mxu0 %v3997
      %4021 = vmatprep.subr.mxu0 0.0
      %4022 = vmatpush1.msra.mxu0 %v3998
      %4023 = vmatprep.subr.mxu0 0.0
      %4024 = vmatpush1.msra.mxu0 %v3999
      %4025 = vmatprep.subr.mxu0 0.0
      %4026 = vmatpush1.msra.mxu0 %v4000
      %4027 = vmatprep.subr.mxu0 0.0
      %4028 = vmatpush1.msra.mxu0 %v4001
      %4029 = vmatprep.subr.mxu0 0.0
      %4030 = vmatpush1.msra.mxu0 %v4002
      %4031 = vmatprep.subr.mxu0 0.0
      %4032 = vmatpush1.msra.mxu0 %v4003
      %4033 = vmatprep.subr.mxu0 0.0
      %4034 = vmatpush1.msra.mxu0 0.0
      %4035 = vmatprep.subr.mxu0 0.0
      %4036 = vmatpush1.msra.mxu0 0.0
      %4037 = vmatprep.subr.mxu0 0.0
      %4038 = vmatpush1.msra.mxu0 0.0
      %4039 = vmatprep.subr.mxu0 0.0
      %4040 = vmatpush1.msra.mxu0 0.0
      %4041 = vmatprep.subr.mxu0 0.0
      %4042 = vmatpush1.msra.mxu0 0.0
      %4043 = vmatprep.subr.mxu0 0.0
      %4044 = vmatpush1.msra.mxu0 0.0
      %4045 = vmatprep.subr.mxu0 0.0
      %4046 = vmatpush1.msra.mxu0 0.0
      %4047 = vmatprep.subr.mxu0 0.0
      %4048 = vmatpush1.msra.mxu0 0.0
      %4049 = vmatprep.subr.mxu0 0.0
      %4050 = vmatpush1.msra.mxu0 0.0
      %4051 = vmatprep.subr.mxu0 0.0
      %4052 = vmatpush1.msra.mxu0 0.0
      %4053 = vmatprep.subr.mxu0 0.0
      %4054 = vmatpush1.msra.mxu0 0.0
      %4055 = vmatprep.subr.mxu0 0.0
      %4056 = vmatpush1.msra.mxu0 0.0
      %4057 = vmatprep.subr.mxu0 0.0
      %4058 = vmatpush1.msra.mxu0 0.0
      %4059 = vmatprep.subr.mxu0 0.0
      %4060 = vmatpush1.msra.mxu0 0.0
      %4061 = vmatprep.subr.mxu0 0.0
      %4062 = vmatpush1.msra.mxu0 0.0
      %4063 = vmatprep.subr.mxu0 0.0
      %4064 = vmatpush1.msra.mxu0 0.0
      %4065 = vmatprep.subr.mxu0 0.0
      %4066 = vmatpush1.msra.mxu0 0.0
      %4067 = vmatprep.subr.mxu0 0.0
      %4068 = vmatpush1.msra.mxu0 0.0
      %4069 = vmatprep.subr.mxu0 0.0
      %4070 = vmatpush1.msra.mxu0 0.0
      %4071 = vmatprep.subr.mxu0 0.0
      %4072 = vmatpush1.msra.mxu0 0.0
      %4073 = vmatprep.subr.mxu0 0.0
      %4074 = vmatpush1.msra.mxu0 0.0
      %4075 = vmatprep.subr.mxu0 0.0
      %4076 = vmatpush1.msra.mxu0 0.0
      %4077 = vmatprep.subr.mxu0 0.0
      %4078 = vmatpush1.msra.mxu0 0.0
      %4079 = vmatprep.subr.mxu0 0.0
      %4080 = vmatpush1.msra.mxu0 0.0
      %4081 = vmatprep.mubr.f32.mxu0 0.0
      %4082 = vmatmul.mubr.f32.gmra.mrb[0].mxu0 %v4012
      %v4083 = vpop.f32.mrb[0].mxu0
      %v4084 = vadd.f32 %v4009, %v4083
      %v4085 = vpop.f32.mrb[0].mxu0
      %4086 = vmatprep.mubr.f32.mxu0 0.0
      %4087 = vmatmul.mubr.f32.gmra.mrb[0].mxu0 %v4015
      %v4088 = vpop.f32.mrb[0].mxu0
      %v4089 = vadd.f32 %v4009, %v4088
      %v4090 = vpop.f32.mrb[0].mxu0
      %4091 = vdwg.mxu0
      %v4092 = vmul.f32 %v4084, 0.5
      %v4093 = vmul.f32 %v4089, 0.5
      %v4094 = vmul.f32 %v4084, 0.044715
      %v4095 = vmul.f32 %v4089, 0.044715
      %v4096 = vmul.f32 %v4094, %v4084
      %v4097 = vmul.f32 %v4095, %v4089
      %v4098 = vmul.f32 %v4096, %v4084
      %v4099 = vmul.f32 %v4097, %v4089
      %v4100 = vadd.f32 %v4084, %v4098
      %v4101 = vadd.f32 %v4089, %v4099
      %v4102 = vmul.f32 %v4100, 0.7978846
      %v4103 = vmul.f32 %v4101, 0.7978846
      %v4104 = vtanh.pop %v4102
      %v4105 = vtanh.pop %v4103
      %v4106 = vadd.f32 %v4104, 1.0
      %v4107 = vadd.f32 %v4105, 1.0
      %v4108 = vmul.f32 %v4092, %v4106
      %v4109 = vmul.f32 %v4093, %v4107
      %v4110 = vld [vmem:[%s49] sm:$0x1]
      %v4111 = vld [vmem:[%s51] sm:$0x1]
      %v4112 = vsel %vm970, %v4108, 0.0
      %4113 = vadd.xlane.f32.xlu0 %v4112
      %v4114 = vpop.xlane.xlu0 %4113
      %v4115 = vsel %vm970, %v4109, 0.0
      %4116 = vadd.xlane.f32.xlu0 %v4115
      %v4117 = vpop.xlane.xlu0 %4116
      %v4118 = vmul.f32 %v4114, %v1078
      %v4119 = vmul.f32 %v4117, %v1078
      %v4120 = vsub.f32 %v4108, %v4118
      %v4121 = vsub.f32 %v4109, %v4119
      %v4122 = vmul.f32 %v4120, %v4120
      %v4123 = vmul.f32 %v4121, %v4121
      %v4124 = vsel %vm970, %v4122, 0.0
      %4125 = vadd.xlane.f32.xlu0 %v4124
      %v4126 = vpop.xlane.xlu0 %4125
      %v4127 = vsel %vm970, %v4123, 0.0
      %4128 = vadd.xlane.f32.xlu0 %v4127
      %v4129 = vpop.xlane.xlu0 %4128
      %v4130 = vmul.f32 %v4126, %v1078
      %v4131 = vmul.f32 %v4129, %v1078
      %v4132 = vadd.f32 %v4130, 1e-12
      %v4133 = vadd.f32 %v4131, 1e-12
      %v4134 = vrsqrt.pop %v4132
      %v4135 = vrsqrt.pop %v4133
      %v4136 = vmul.f32 %v4120, %v4134
      %v4137 = vmul.f32 %v4121, %v4135
      %v4139 = vlaneseq
      %v4140 = vshrl.u32 %v4139, 7
      %v4141 = vsub.s32 0, %v4140
      %v4142 = vrot.slane %v4110, %v4141
      %v4144 = vmul.f32 %v4136, %v4142
      %v4145 = vmul.f32 %v4137, %v4142
      %v4147 = vlaneseq
      %v4148 = vshrl.u32 %v4147, 7
      %v4149 = vsub.s32 0, %v4148
      %v4150 = vrot.slane %v4111, %v4149
      %v4152 = vadd.f32 %v4144, %v4150
      %v4153 = vadd.f32 %v4145, %v4150
      %v4154 = vld [vmem:[%s53] sm:$0xff]
      %v4155 = vld [vmem:[%s53 + $0x8] sm:$0xff]
      %v4156 = vld [vmem:[%s53 + $0x10] sm:$0xff]
      %v4157 = vld [vmem:[%s53 + $0x18] sm:$0xff]
      %v4158 = vld [vmem:[%s53 + $0x20] sm:$0xff]
      %v4159 = vld [vmem:[%s53 + $0x28] sm:$0xff]
      %v4160 = vld [vmem:[%s53 + $0x30] sm:$0xff]
      %v4161 = vld [vmem:[%s53 + $0x38] sm:$0xff]
      %v4162 = vld [vmem:[%s53 + $0x40] sm:$0xff]
      %v4163 = vld [vmem:[%s53 + $0x48] sm:$0xff]
      %v4164 = vld [vmem:[%s53 + $0x50] sm:$0xff]
      %v4165 = vld [vmem:[%s53 + $0x58] sm:$0xff]
      %v4166 = vld [vmem:[%s53 + $0x60] sm:$0xff]
      %v4167 = vld [vmem:[%s53 + $0x68] sm:$0xff]
      %v4168 = vld [vmem:[%s53 + $0x70] sm:$0xff]
      %v4169 = vld [vmem:[%s53 + $0x78] sm:$0xff]
      %v4170 = vld [vmem:[%s55] sm:$0x1]
      %v4172 = vlaneseq
      %v4173 = vshrl.u32 %v4172, 7
      %v4174 = vsub.s32 0, %v4173
      %v4175 = vrot.slane %v4170, %v4174
      %v4178 = vsel %vm970, %v4152, 0
      %v4181 = vsel %vm970, %v4153, 0
      %v4184 = vsel %vm970, %v4154, 0
      %v4187 = vsel %vm970, %v4155, 0
      %v4190 = vsel %vm970, %v4156, 0
      %v4193 = vsel %vm970, %v4157, 0
      %v4196 = vsel %vm970, %v4158, 0
      %v4199 = vsel %vm970, %v4159, 0
      %v4202 = vsel %vm970, %v4160, 0
      %v4205 = vsel %vm970, %v4161, 0
      %v4208 = vsel %vm970, %v4162, 0
      %v4211 = vsel %vm970, %v4163, 0
      %v4214 = vsel %vm970, %v4164, 0
      %v4217 = vsel %vm970, %v4165, 0
      %v4220 = vsel %vm970, %v4166, 0
      %v4223 = vsel %vm970, %v4167, 0
      %v4226 = vsel %vm970, %v4168, 0
      %v4229 = vsel %vm970, %v4169, 0
      %4231 = vmatprep.subr.mxu0 0.0
      %4232 = vmatpush1.xpose.msra.mxu0 %v4184
      %4233 = vmatprep.subr.mxu0 0.0
      %4234 = vmatpush1.xpose.msra.mxu0 %v4187
      %4235 = vmatprep.subr.mxu0 0.0
      %4236 = vmatpush1.xpose.msra.mxu0 %v4190
      %4237 = vmatprep.subr.mxu0 0.0
      %4238 = vmatpush1.xpose.msra.mxu0 %v4193
      %4239 = vmatprep.subr.mxu0 0.0
      %4240 = vmatpush1.xpose.msra.mxu0 %v4196
      %4241 = vmatprep.subr.mxu0 0.0
      %4242 = vmatpush1.xpose.msra.mxu0 %v4199
      %4243 = vmatprep.subr.mxu0 0.0
      %4244 = vmatpush1.xpose.msra.mxu0 %v4202
      %4245 = vmatprep.subr.mxu0 0.0
      %4246 = vmatpush1.xpose.msra.mxu0 %v4205
      %4247 = vmatprep.subr.mxu0 0.0
      %4248 = vmatpush1.xpose.msra.mxu0 %v4208
      %4249 = vmatprep.subr.mxu0 0.0
      %4250 = vmatpush1.xpose.msra.mxu0 %v4211
      %4251 = vmatprep.subr.mxu0 0.0
      %4252 = vmatpush1.xpose.msra.mxu0 %v4214
      %4253 = vmatprep.subr.mxu0 0.0
      %4254 = vmatpush1.xpose.msra.mxu0 %v4217
      %4255 = vmatprep.subr.mxu0 0.0
      %4256 = vmatpush1.xpose.msra.mxu0 %v4220
      %4257 = vmatprep.subr.mxu0 0.0
      %4258 = vmatpush1.xpose.msra.mxu0 %v4223
      %4259 = vmatprep.subr.mxu0 0.0
      %4260 = vmatpush1.xpose.msra.mxu0 %v4226
      %4261 = vmatprep.subr.mxu0 0.0
      %4262 = vmatpush1.xpose.msra.mxu0 %v4229
      %4263 = vmatprep.subr.mxu0 0.0
      %4264 = vmatpush1.xpose.msra.mxu0 0.0
      %4265 = vmatprep.subr.mxu0 0.0
      %4266 = vmatpush1.xpose.msra.mxu0 0.0
      %4267 = vmatprep.subr.mxu0 0.0
      %4268 = vmatpush1.xpose.msra.mxu0 0.0
      %4269 = vmatprep.subr.mxu0 0.0
      %4270 = vmatpush1.xpose.msra.mxu0 0.0
      %4271 = vmatprep.subr.mxu0 0.0
      %4272 = vmatpush1.xpose.msra.mxu0 0.0
      %4273 = vmatprep.subr.mxu0 0.0
      %4274 = vmatpush1.xpose.msra.mxu0 0.0
      %4275 = vmatprep.subr.mxu0 0.0
      %4276 = vmatpush1.xpose.msra.mxu0 0.0
      %4277 = vmatprep.subr.mxu0 0.0
      %4278 = vmatpush1.xpose.msra.mxu0 0.0
      %4279 = vmatprep.subr.mxu0 0.0
      %4280 = vmatpush1.xpose.msra.mxu0 0.0
      %4281 = vmatprep.subr.mxu0 0.0
      %4282 = vmatpush1.xpose.msra.mxu0 0.0
      %4283 = vmatprep.subr.mxu0 0.0
      %4284 = vmatpush1.xpose.msra.mxu0 0.0
      %4285 = vmatprep.subr.mxu0 0.0
      %4286 = vmatpush1.xpose.msra.mxu0 0.0
      %4287 = vmatprep.subr.mxu0 0.0
      %4288 = vmatpush1.xpose.msra.mxu0 0.0
      %4289 = vmatprep.subr.mxu0 0.0
      %4290 = vmatpush1.xpose.msra.mxu0 0.0
      %4291 = vmatprep.subr.mxu0 0.0
      %4292 = vmatpush1.xpose.msra.mxu0 0.0
      %4293 = vmatprep.subr.mxu0 0.0
      %4294 = vmatpush1.xpose.msra.mxu0 0.0
      %4295 = vmatprep.mubr.f32.mxu0 0.0
      %4296 = vmatmul.mubr.f32.gmra.mrb[0].mxu0 %v4178
      %v4297 = vpop.f32.mrb[0].mxu0
      %v4298 = vadd.f32 %v4175, %v4297
      %v4299 = vpop.f32.mrb[0].mxu0
      %4300 = vmatprep.mubr.f32.mxu0 0.0
      %4301 = vmatmul.mubr.f32.gmra.mrb[0].mxu0 %v4181
      %v4302 = vpop.f32.mrb[0].mxu0
      %v4303 = vadd.f32 %v4175, %v4302
      %v4304 = vpop.f32.mrb[0].mxu0
      %4305 = vdwg.mxu0
      %4306 = vst [vmem:[%s956] sm:$0xff] %v4298
      %4307 = vst [vmem:[%s956 + $0x8] sm:$0xff] %v4303
      %v4308 = vld [vmem:[%s951] sm:$0xff]
      %v4309 = vld [vmem:[%s951 + $0x8] sm:$0xff]
      %4310 = vmax.xlane.f32.xlu0 %v4298
      %v4311 = vpop.xlane.xlu0 %4310
      %4312 = vmax.xlane.f32.xlu0 %v4303
      %v4313 = vpop.xlane.xlu0 %4312
      %v4314 = vsub.f32 %v4298, %v4311
      %v4315 = vsub.f32 %v4303, %v4313
      %v4316 = vmul.f32 %v4314, 1.442695
      %v4317 = vpow.pop %v4316
      %v4318 = vmul.f32 %v4315, 1.442695
      %v4319 = vpow.pop %v4318
      %4320 = vadd.xlane.f32.xlu0 %v4317
      %v4321 = vpop.xlane.xlu0 %4320
      %4322 = vadd.xlane.f32.xlu0 %v4319
      %v4323 = vpop.xlane.xlu0 %4322
      %v4324 = vlog2.pop %v4321
      %v4325 = vmul.f32 %v4324, 0.6931472
      %v4326 = vlog2.pop %v4323
      %v4327 = vmul.f32 %v4326, 0.6931472
      %v4328 = vadd.f32 %v4325, %v4311
      %v4329 = vadd.f32 %v4327, %v4313
      %v4330 = vlaneseq
      %v4331 = vand.u32 %v4330, 127
      %4332 = vset.pattern.permute.xlu0 0
      %4333 = vperm.xlu0 %4332, %v4308
      %v4334 = vpop.permute.xlu0 %4333
      %4335 = vset.pattern.permute.xlu0 0
      %4336 = vperm.xlu0 %4335, %v4309
      %v4337 = vpop.permute.xlu0 %4336
      %vm4338 = vcmp.eq.s32.totalorder %v4331, %v4334
      %vm4339 = vcmp.eq.s32.totalorder %v4331, %v4337
      %v4340 = vsel %vm4338, %v4298, 0.0
      %v4341 = vsel %vm4339, %v4303, 0.0
      %4342 = vadd.xlane.f32.xlu0 %v4340
      %v4343 = vpop.xlane.xlu0 %4342
      %4344 = vadd.xlane.f32.xlu0 %v4341
      %v4345 = vpop.xlane.xlu0 %4344
      %vm4346 = vcmp.ne.s32.totalorder %v4308, 4294967196
      %vm4347 = vcmp.ne.s32.totalorder %v4309, 4294967196
      %v4348 = vsel %vm4346, 1, 0
      %v4349 = vsel %vm4347, 1, 0
      %v4350 = vcvt.s32.f32 %v4348
      %v4351 = vcvt.s32.f32 %v4349
      %v4352 = vsub.f32 %v4328, %v4343
      %v4353 = vsub.f32 %v4329, %v4345
      %v4354 = vmul.f32 %v4352, %v4350
      %v4355 = vmul.f32 %v4353, %v4351
      %vm4356 = vcmask 7168
      %v4357 = vsel %vm4356, %v4354, 0.0
      %v4358 = vsel %vm4356, %v4355, 0.0
      %v4359 = vadd.f32 %v4357, %v4358
      %4360 = vadd.xlane.f32.xlu0 %v4359
      %v4361 = vpop.xlane.xlu0 %4360
      %v4362 = vrot.slane %v4361, 4
      %v4363 = vadd.f32 %v4361, %v4362
      %v4364 = vrot.slane %v4363, 2
      %v4365 = vadd.f32 %v4363, %v4364
      %v4366 = vrot.slane %v4365, 1
      %v4367 = vadd.f32 %v4365, %v4366
      %s4368 = vtos %v4367
      %v4369 = vsel %vm4356, %v4350, 0.0
      %v4370 = vsel %vm4356, %v4351, 0.0
      %v4371 = vadd.f32 %v4369, %v4370
      %4372 = vadd.xlane.f32.xlu0 %v4371
      %v4373 = vpop.xlane.xlu0 %4372
      %v4374 = vrot.slane %v4373, 4
      %v4375 = vadd.f32 %v4373, %v4374
      %v4376 = vrot.slane %v4375, 2
      %v4377 = vadd.f32 %v4375, %v4376
      %v4378 = vrot.slane %v4377, 1
      %v4379 = vadd.f32 %v4377, %v4378
      %s4380 = vtos %v4379
      %vm4381 = vcmp.eq.s32.totalorder %v4331, 0
      %vm4382 = vcmp.eq.s32.totalorder %v4331, 1
      %v4383 = vstv %s4380
      %v4384 = vsel %vm4382, %v4383, 0.0
      %v4385 = vstv %s4368
      %v4386 = vsel %vm4381, %v4385, %v4384
      %4387 = vst [vmem:[%s959] sm:$0x1] %v4386
      %p4388 = scmp.lt.s32.totalorder %s71, 1
      %s4389 = scalar_select %p4388, %s71, 1
      %s4390 = smul.addr %s4389, 2
      %s4391 = smul.addr %s4390, 8
      %s4392 = scalar_lea.vmem %s57, %s4391
      %p4393 = scmp.lt.s32.totalorder %s71, 1
      %s4394 = scalar_select %p4393, %s71, 1
      %s4395 = scalar_lea.vmem %s59, %s4394
      // Predicated region
      $region133: #{forward.1} parent=131 // pred_check
        %p4396 = pneg %p697
      $region134: #{forward.1} parent=131 // pred_check_branch
        %4398 = sbr.rel (%p4396) target = $region136
      $region135: #{forward.1} parent=131 // pred_region
        _
      $region136: #{forward.1} parent=131 // pred_fallthru
        _
      // Predicated region
      $region137: #{forward.1} parent=131 // pred_check
        %p4399 = pneg %p723
      $region138: #{forward.1} parent=131 // pred_check_branch
        %4401 = sbr.rel (%p4399) target = $region140
      $region139: #{forward.1} parent=131 // pred_region
        _
      $region140: #{forward.1} parent=131 // pred_fallthru
        _
    $region132: #{forward.1} parent=5 // pred_fallthru
      _
    %p4402 = scmp.le.s32.totalorder 2, %s66
    // Predicated region
    $region141: #{forward.1} parent=5 // pred_check
      %p4403 = pneg %p4402
    $region142: #{forward.1} parent=5 // pred_check_branch
      %4405 = sbr.rel (%p4403) target = $region144
    $region143: #{forward.1} parent=5 // pred_region
      %s4406 = ssub.s32 %s66, 2
      // Predicated region
      $region145: #{forward.1} parent=143 // pred_check
        %p4407 = pneg %p703
      $region146: #{forward.1} parent=143 // pred_check_branch
        %4409 = sbr.rel (%p4407) target = $region148
      $region147: #{forward.1} parent=143 // pred_region
        %p4410 = scmp.lt.s32.totalorder %s72, 1
        %s4411 = scalar_select %p4410, %s72, 1
        %s4412 = smul.addr %s4411, 2
        %s4413 = smul.addr %s4412, 8
        %s4414 = scalar_lea.vmem %s57, %s4413
      $region148: #{forward.1} parent=143 // pred_fallthru
        _
      // Predicated region
      $region149: #{forward.1} parent=143 // pred_check
        %p4415 = pneg %p729
      $region150: #{forward.1} parent=143 // pred_check_branch
        %4417 = sbr.rel (%p4415) target = $region152
      $region151: #{forward.1} parent=143 // pred_region
        %p4418 = scmp.lt.s32.totalorder %s72, 1
        %s4419 = scalar_select %p4418, %s72, 1
        %s4420 = scalar_lea.vmem %s59, %s4419
      $region152: #{forward.1} parent=143 // pred_fallthru
        _
    $region144: #{forward.1} parent=5 // pred_fallthru
      _
  $region6: #{forward.1} parent=0 // loop_footer
    %s70 = sadd.s32 1, %s66
  $region7: #{forward.1} parent=0 // loop_footer_branch
    %65 = sbr.rel target = $region3
  $region8: #{forward.1} parent=0 // loop_exit
    _

</llo_original>
